<compile_context>
chip_gen: v7x
topology: tpu7x:2x2x1
jax: 0.10.0
libtpu: 0.0.40
codegen_flags: <defaults>
</compile_context>

<pallas_src>
import functools

import jax
import jax.numpy as jnp
import numpy as np
from jax.experimental import pallas as pl
from jax.experimental.pallas import tpu as pltpu


def _leaky_relu(v, slope=0.1):
    return jnp.where(v > 0, v, slope * v)


# ----------------------------------------------------------------------------
# Fused kernel: whole MultiGroupConv1d for one (batch, group) pair per grid step.
# ----------------------------------------------------------------------------
def _mgc_kernel(T, C, K, dilations, matmul_dtype, *refs):
    L = len(dilations)
    nc = 2 * L
    max_pad = (K - 1) * max(dilations)

    x_ref = refs[0]
    cache_refs = refs[1:1 + nc]
    w1_ref, b1_ref, w2_ref, b2_ref, wout_ref = refs[1 + nc:6 + nc]
    y_ref = refs[6 + nc]
    cache_out_refs = refs[7 + nc:7 + 2 * nc]
    xp_ref = refs[7 + 2 * nc]                 # (max_pad + T, C) VMEM staging

    g = pl.program_id(1)

    def causal_conv(a, cache_ref, cache_out_ref, w, b, dil):
        """a: (T, C) activated input -> (T, C) conv output; also writes new cache."""
        pad = (K - 1) * dil
        base = max_pad - pad
        # Causally padded sequence lives in rows [base, max_pad + T) of the scratch.
        xp_ref[base:base + pad, :] = cache_ref[0, 0].astype(jnp.float32)
        xp_ref[max_pad:max_pad + T, :] = a
        # New cache = last `pad` samples of the padded (activated) sequence.
        cache_out_ref[0, 0] = xp_ref[base + T:base + T + pad, :].astype(
            cache_out_ref.dtype)
        # im2col: one (T, K*C) x (K*C, C) MXU matmul instead of K per-tap matmuls.
        cols = jnp.concatenate(
            [xp_ref[base + k * dil:base + k * dil + T, :] for k in range(K)],
            axis=1)
        out = jnp.dot(cols.astype(matmul_dtype), w.astype(matmul_dtype),
                      preferred_element_type=jnp.float32)
        return out + b

    # x.repeat(1, groups, 1): every group starts from the same (T, C) input tile.
    xg = x_ref[0].astype(jnp.float32)
    ci = 0
    for l in range(L):
        # convs1[l]: dilated grouped causal conv on LeakyReLU(x)
        xt = causal_conv(_leaky_relu(xg), cache_refs[ci], cache_out_refs[ci],
                         w1_ref[l, 0], b1_ref[l, 0], dilations[l])
        ci += 1
        # convs2[l]: dilation-1 grouped causal conv on LeakyReLU(xt)
        xt = causal_conv(_leaky_relu(xt), cache_refs[ci], cache_out_refs[ci],
                         w2_ref[l, 0], b2_ref[l, 0], 1)
        ci += 1
        xg = xt + xg                                   # residual

    # conv_out (1x1, C*groups -> C): accumulate per-group contributions across the
    # innermost grid axis into the VMEM-resident output block.
    contrib = jnp.dot(xg.astype(matmul_dtype), wout_ref[0].astype(matmul_dtype),
                      preferred_element_type=jnp.float32)

    @pl.when(g == 0)
    def _():
        y_ref[0] = contrib.astype(y_ref.dtype)

    @pl.when(g > 0)
    def _():
        y_ref[0] = y_ref[0] + contrib.astype(y_ref.dtype)


# ----------------------------------------------------------------------------
# Weight packing: PyTorch Conv1d layouts -> kernel layouts (tap-major im2col).
# ----------------------------------------------------------------------------
def _pack_kernel_weights(params):
    C = params["channels"]
    G = params["groups"]
    K = params["kernel_size"]
    L = len(params["dilations"])

    def conv_w(w):      # torch grouped weight (G*C, C, K) -> (G, K*C, C)
        w = w.reshape(G, C, C, K)             # (g, o, i, k)
        w = jnp.transpose(w, (0, 3, 2, 1))    # (g, k, i, o)
        return w.reshape(G, K * C, C)         # rows: k*C + i

    def conv_b(b):      # (G*C,) -> (G, 1, C)
        return b.reshape(G, 1, C)

    w1 = jnp.stack([conv_w(params["convs1"][l]["w"]) for l in range(L)])
    b1 = jnp.stack([conv_b(params["convs1"][l]["b"]) for l in range(L)])
    w2 = jnp.stack([conv_w(params["convs2"][l]["w"]) for l in range(L)])
    b2 = jnp.stack([conv_b(params["convs2"][l]["b"]) for l in range(L)])
    wo = params["conv_out_w"][:, :, 0]                 # (C_out, G*C_in)
    wo = wo.reshape(C, G, C).transpose(1, 2, 0)        # (G, C_in, C_out)
    return w1, b1, w2, b2, wo


# ----------------------------------------------------------------------------
# Wrapper: PyTorch NCT interface -> fused Pallas kernel.
# ----------------------------------------------------------------------------
def multi_group_conv1d_forward(x_nct, cache_list_nct, params,
                               matmul_dtype=jnp.float32):
    """x_nct: (B, C, T); cache_list_nct: 2L tensors (B, C*groups, pad_l) NCT layout."""
    C = params["channels"]
    G = params["groups"]
    K = params["kernel_size"]
    dilations = tuple(params["dilations"])
    L = len(dilations)
    B, Cx, T = x_nct.shape
    assert Cx == C

    pads = []
    for d in dilations:
        pads += [(K - 1) * d, (K - 1)]
    max_pad = (K - 1) * max(dilations)

    # NCT -> kernel layouts: activations (B, T, C); caches (B, G, pad, C).
    x = jnp.transpose(x_nct, (0, 2, 1))
    caches = [c.reshape(B, G, C, p).transpose(0, 1, 3, 2)
              for c, p in zip(cache_list_nct, pads)]
    w1, b1, w2, b2, wout = _pack_kernel_weights(params)

    kernel = functools.partial(_mgc_kernel, T, C, K, dilations, matmul_dtype)

    in_specs = [pl.BlockSpec((1, T, C), lambda b, g: (b, 0, 0))]
    in_specs += [pl.BlockSpec((1, 1, p, C), lambda b, g: (b, g, 0, 0))
                 for p in pads]
    in_specs += [
        pl.BlockSpec((L, 1, K * C, C), lambda b, g: (0, g, 0, 0)),   # w1 (per group)
        pl.BlockSpec((L, 1, 1, C), lambda b, g: (0, g, 0, 0)),       # b1
        pl.BlockSpec((L, 1, K * C, C), lambda b, g: (0, g, 0, 0)),   # w2
        pl.BlockSpec((L, 1, 1, C), lambda b, g: (0, g, 0, 0)),       # b2
        pl.BlockSpec((1, C, C), lambda b, g: (g, 0, 0)),             # conv_out
    ]
    out_specs = [pl.BlockSpec((1, T, C), lambda b, g: (b, 0, 0))]
    out_specs += [pl.BlockSpec((1, 1, p, C), lambda b, g: (b, g, 0, 0))
                  for p in pads]
    out_shape = [jax.ShapeDtypeStruct((B, T, C), jnp.float32)]
    out_shape += [jax.ShapeDtypeStruct((B, G, p, C), jnp.float32) for p in pads]

    outs = pl.pallas_call(
        kernel,
        grid=(B, G),
        in_specs=in_specs,
        out_specs=out_specs,
        out_shape=out_shape,
        scratch_shapes=[pltpu.VMEM((max_pad + T, C), jnp.float32)],
        compiler_params=pltpu.CompilerParams(
            dimension_semantics=("parallel", "arbitrary")),
    )(x, *caches, w1, b1, w2, b2, wout)

    y = outs[0]
    cache_out = outs[1:]
    y_nct = jnp.transpose(y, (0, 2, 1))
    cache_out_nct = [c.transpose(0, 1, 3, 2).reshape(B, G * C, p)
                     for c, p in zip(cache_out, pads)]
    return y_nct, cache_out_nct


# ----------------------------------------------------------------------------
# Parameters / cache init (PyTorch layouts) and pure-JAX reference.
# ----------------------------------------------------------------------------
def init_multi_group_conv1d_params(key, channels=128, groups=3,
                                   kernel_size=3, dilations=(1, 3, 5)):
    Cg = channels * groups
    scale = 0.05
    params = {"channels": channels, "groups": groups,
              "kernel_size": kernel_size, "dilations": tuple(dilations),
              "convs1": [], "convs2": []}
    for _ in dilations:
        key, k1, k2, k3, k4 = jax.random.split(key, 5)
        params["convs1"].append({
            "w": scale * jax.random.normal(k1, (Cg, channels, kernel_size), jnp.float32),
            "b": scale * jax.random.normal(k2, (Cg,), jnp.float32)})
        params["convs2"].append({
            "w": scale * jax.random.normal(k3, (Cg, channels, kernel_size), jnp.float32),
            "b": scale * jax.random.normal(k4, (Cg,), jnp.float32)})
    key, k5 = jax.random.split(key)
    params["conv_out_w"] = scale * jax.random.normal(
        k5, (channels, Cg, 1), jnp.float32)
    return params


def initialize_cache(batch, params):
    """Zero caches in PyTorch NCT layout, ordered [convs1[l], convs2[l]] per layer."""
    C, G, K = params["channels"], params["groups"], params["kernel_size"]
    caches = []
    for d in params["dilations"]:
        caches.append(jnp.zeros((batch, C * G, (K - 1) * d), jnp.float32))
        caches.append(jnp.zeros((batch, C * G, (K - 1)), jnp.float32))
    return caches


def reference_forward(x_nct, cache_list_nct, params):
    """Pure-JAX reference mirroring the PyTorch MultiGroupConv1d math (NCT layout)."""
    C, G, K = params["channels"], params["groups"], params["kernel_size"]
    lrelu = lambda v: jnp.where(v > 0, v, 0.1 * v)

    def grouped_causal_conv(x, cache, w, b, dil):
        pad = (K - 1) * dil
        T = x.shape[-1]
        B = x.shape[0]
        xcat = jnp.concatenate([cache, x], axis=-1)          # (B, G*C, pad+T)
        cache_out = xcat[..., -pad:]
        xg = xcat.reshape(B, G, C, pad + T)                  # (b, g, i, t)
        wg = w.reshape(G, C, C, K)                           # (g, o, i, k)
        y = jnp.zeros((B, G, C, T), jnp.float32)
        for k in range(K):
            y = y + jnp.einsum("bgit,goi->bgot",
                               xg[..., k * dil:k * dil + T], wg[..., k])
        y = y.reshape(B, G * C, T) + b[None, :, None]
        return y, cache_out

    x = jnp.tile(x_nct, (1, G, 1))                           # repeat(1, groups, 1)
    cache_out = []
    ci = 0
    for l, d in enumerate(params["dilations"]):
        xt, co = grouped_causal_conv(lrelu(x), cache_list_nct[ci],
                                     params["convs1"][l]["w"],
                                     params["convs1"][l]["b"], d)
        cache_out.append(co); ci += 1
        xt, co = grouped_causal_conv(lrelu(xt), cache_list_nct[ci],
                                     params["convs2"][l]["w"],
                                     params["convs2"][l]["b"], 1)
        cache_out.append(co); ci += 1
        x = xt + x
    wo = params["conv_out_w"][:, :, 0]                       # (C_out, G*C_in)
    y = jnp.einsum("bct,oc->bot", x, wo)
    return y, cache_out


if __name__ == "__main__":
    B, channels, groups, T = 2, 128, 3, 16

    key = jax.random.PRNGKey(0)
    key, kx, kp = jax.random.split(key, 3)

    params = init_multi_group_conv1d_params(kp, channels=channels, groups=groups)
    x = jax.random.normal(kx, (B, channels, T), jnp.float32)

    # Non-zero caches to exercise the streaming path.
    caches = initialize_cache(B, params)
    ckeys = jax.random.split(key, len(caches))
    caches = [0.5 * jax.random.normal(k, c.shape, jnp.float32)
              for k, c in zip(ckeys, caches)]

    y, cache_out = multi_group_conv1d_forward(x, caches, params)
    y = jax.block_until_ready(y)
    cache_out = [jax.block_until_ready(c) for c in cache_out]

    assert y.shape == (B, channels, T), y.shape

    y_ref, cache_ref = reference_forward(x, caches, params)
    np.testing.assert_allclose(np.asarray(y), np.asarray(y_ref),
                               rtol=1e-3, atol=1e-3)
    for co, cr in zip(cache_out, cache_ref):
        np.testing.assert_allclose(np.asarray(co), np.asarray(cr),
                                   rtol=1e-3, atol=1e-3)
    print("KERNEL_OK")
</pallas_src>

<mosaic_0001>
module attributes {stable_mosaic.version = 11 : i64} {
  func.func @_mgc_kernel(%arg0: i32, %arg1: i32, %arg2: memref<1x16x128xf32, #tpu.memory_space<vmem>>, %arg3: memref<1x1x2x128xf32, #tpu.memory_space<vmem>>, %arg4: memref<1x1x2x128xf32, #tpu.memory_space<vmem>>, %arg5: memref<1x1x6x128xf32, #tpu.memory_space<vmem>>, %arg6: memref<1x1x2x128xf32, #tpu.memory_space<vmem>>, %arg7: memref<1x1x10x128xf32, #tpu.memory_space<vmem>>, %arg8: memref<1x1x2x128xf32, #tpu.memory_space<vmem>>, %arg9: memref<3x1x384x128xf32, #tpu.memory_space<vmem>>, %arg10: memref<3x1x1x128xf32, #tpu.memory_space<vmem>>, %arg11: memref<3x1x384x128xf32, #tpu.memory_space<vmem>>, %arg12: memref<3x1x1x128xf32, #tpu.memory_space<vmem>>, %arg13: memref<1x128x128xf32, #tpu.memory_space<vmem>>, %arg14: memref<1x16x128xf32, #tpu.memory_space<vmem>>, %arg15: memref<1x1x2x128xf32, #tpu.memory_space<vmem>>, %arg16: memref<1x1x2x128xf32, #tpu.memory_space<vmem>>, %arg17: memref<1x1x6x128xf32, #tpu.memory_space<vmem>>, %arg18: memref<1x1x2x128xf32, #tpu.memory_space<vmem>>, %arg19: memref<1x1x10x128xf32, #tpu.memory_space<vmem>>, %arg20: memref<1x1x2x128xf32, #tpu.memory_space<vmem>>, %arg21: memref<26x128xf32, #tpu.memory_space<vmem>>) attributes {dimension_semantics = [#tpu.dimension_semantics<parallel>, #tpu.dimension_semantics<arbitrary>], iteration_bounds = array<i64: 2, 3>, scalar_prefetch = 0 : i64, scratch_operands = 1 : i64, tpu.core_type = #tpu.core_type<tc>, window_params = [{transform_indices = @transform_0, window_bounds = array<i64: 1, 16, 128>}, {transform_indices = @transform_1, window_bounds = array<i64: 1, 1, 2, 128>}, {transform_indices = @transform_2, window_bounds = array<i64: 1, 1, 2, 128>}, {transform_indices = @transform_3, window_bounds = array<i64: 1, 1, 6, 128>}, {transform_indices = @transform_4, window_bounds = array<i64: 1, 1, 2, 128>}, {transform_indices = @transform_5, window_bounds = array<i64: 1, 1, 10, 128>}, {transform_indices = @transform_6, window_bounds = array<i64: 1, 1, 2, 128>}, {transform_indices = @transform_7, window_bounds = array<i64: 3, 1, 384, 128>}, {transform_indices = @transform_8, window_bounds = array<i64: 3, 1, 1, 128>}, {transform_indices = @transform_9, window_bounds = array<i64: 3, 1, 384, 128>}, {transform_indices = @transform_10, window_bounds = array<i64: 3, 1, 1, 128>}, {transform_indices = @transform_11, window_bounds = array<i64: 1, 128, 128>}, {transform_indices = @transform_12, window_bounds = array<i64: 1, 16, 128>}, {transform_indices = @transform_13, window_bounds = array<i64: 1, 1, 2, 128>}, {transform_indices = @transform_14, window_bounds = array<i64: 1, 1, 2, 128>}, {transform_indices = @transform_15, window_bounds = array<i64: 1, 1, 6, 128>}, {transform_indices = @transform_16, window_bounds = array<i64: 1, 1, 2, 128>}, {transform_indices = @transform_17, window_bounds = array<i64: 1, 1, 10, 128>}, {transform_indices = @transform_18, window_bounds = array<i64: 1, 1, 2, 128>}]} {
    %c0 = arith.constant 0 : index
    %c0_0 = arith.constant 0 : index
    %c0_1 = arith.constant 0 : index
    %0 = vector.load %arg2[%c0, %c0_0, %c0_1] : memref<1x16x128xf32, #tpu.memory_space<vmem>>, vector<1x16x128xf32>
    %1 = vector.shape_cast %0 : vector<1x16x128xf32> to vector<16x128xf32>
    %cst = arith.constant 0.000000e+00 : f32
    %2 = vector.broadcast %cst : f32 to vector<16x128xf32>
    %3 = arith.cmpf ogt, %1, %2 : vector<16x128xf32>
    %cst_2 = arith.constant 1.000000e-01 : f32
    %4 = vector.broadcast %cst_2 : f32 to vector<16x128xf32>
    %5 = arith.mulf %4, %1 : vector<16x128xf32>
    %6 = arith.select %3, %1, %5 : vector<16x128xi1>, vector<16x128xf32>
    %c0_3 = arith.constant 0 : index
    %c0_4 = arith.constant 0 : index
    %c0_5 = arith.constant 0 : index
    %c0_6 = arith.constant 0 : index
    %7 = vector.load %arg9[%c0_3, %c0_4, %c0_5, %c0_6] : memref<3x1x384x128xf32, #tpu.memory_space<vmem>>, vector<1x1x384x128xf32>
    %8 = vector.shape_cast %7 : vector<1x1x384x128xf32> to vector<384x128xf32>
    %c0_7 = arith.constant 0 : index
    %c0_8 = arith.constant 0 : index
    %c0_9 = arith.constant 0 : index
    %c0_10 = arith.constant 0 : index
    %9 = vector.load %arg10[%c0_7, %c0_8, %c0_9, %c0_10] : memref<3x1x1x128xf32, #tpu.memory_space<vmem>>, vector<1x1x1x128xf32>
    %10 = vector.shape_cast %9 : vector<1x1x1x128xf32> to vector<1x128xf32>
    %c0_11 = arith.constant 0 : index
    %c0_12 = arith.constant 0 : index
    %c0_13 = arith.constant 0 : index
    %c0_14 = arith.constant 0 : index
    %11 = vector.load %arg3[%c0_11, %c0_12, %c0_13, %c0_14] : memref<1x1x2x128xf32, #tpu.memory_space<vmem>>, vector<1x1x2x128xf32>
    %12 = vector.shape_cast %11 : vector<1x1x2x128xf32> to vector<2x128xf32>
    %c8 = arith.constant 8 : index
    %c0_15 = arith.constant 0 : index
    %13 = vector.load %arg21[%c8, %c0_15] : memref<26x128xf32, #tpu.memory_space<vmem>>, vector<2x128xf32>
    tpu.vector_store %arg21[%c8, %c0_15], %12 {strides = array<i32>} : memref<26x128xf32, #tpu.memory_space<vmem>>, vector<2x128xf32>,
    %c10 = arith.constant 10 : index
    %c0_16 = arith.constant 0 : index
    %14 = vector.load %arg21[%c10, %c0_16] : memref<26x128xf32, #tpu.memory_space<vmem>>, vector<16x128xf32>
    tpu.vector_store %arg21[%c10, %c0_16], %6 {strides = array<i32>} : memref<26x128xf32, #tpu.memory_space<vmem>>, vector<16x128xf32>,
    %c24 = arith.constant 24 : index
    %c0_17 = arith.constant 0 : index
    %15 = vector.load %arg21[%c24, %c0_17] : memref<26x128xf32, #tpu.memory_space<vmem>>, vector<2x128xf32>
    %c0_18 = arith.constant 0 : index
    %c0_19 = arith.constant 0 : index
    %c0_20 = arith.constant 0 : index
    %c0_21 = arith.constant 0 : index
    %16 = vector.load %arg15[%c0_18, %c0_19, %c0_20, %c0_21] : memref<1x1x2x128xf32, #tpu.memory_space<vmem>>, vector<1x1x2x128xf32>
    %17 = vector.shape_cast %16 : vector<1x1x2x128xf32> to vector<2x128xf32>
    %18 = vector.shape_cast %15 : vector<2x128xf32> to vector<1x1x2x128xf32>
    tpu.vector_store %arg15[%c0_18, %c0_19, %c0_20, %c0_21], %18 {strides = array<i32>} : memref<1x1x2x128xf32, #tpu.memory_space<vmem>>, vector<1x1x2x128xf32>,
    %c8_22 = arith.constant 8 : index
    %c0_23 = arith.constant 0 : index
    %19 = vector.load %arg21[%c8_22, %c0_23] : memref<26x128xf32, #tpu.memory_space<vmem>>, vector<16x128xf32>
    %c9 = arith.constant 9 : index
    %c0_24 = arith.constant 0 : index
    %20 = vector.load %arg21[%c9, %c0_24] : memref<26x128xf32, #tpu.memory_space<vmem>>, vector<16x128xf32>
    %c10_25 = arith.constant 10 : index
    %c0_26 = arith.constant 0 : index
    %21 = vector.load %arg21[%c10_25, %c0_26] : memref<26x128xf32, #tpu.memory_space<vmem>>, vector<16x128xf32>
    %22 = tpu.concatenate %19, %20, %21 in 1 : vector<16x128xf32>, vector<16x128xf32>, vector<16x128xf32> -> vector<16x384xf32>
    %cst_27 = arith.constant dense<0.000000e+00> : vector<16x128xf32>
    %23 = tpu.matmul %22, %8, %cst_27 {dimension_numbers = #tpu.dot_dimension_numbers<[1], [0], [0], [1], [0, 0, 1, 1], [], []>} : vector<16x384xf32>, vector<384x128xf32>, vector<16x128xf32> -> vector<16x128xf32>
    %24 = vector.broadcast %10 : vector<1x128xf32> to vector<16x128xf32>
    %25 = arith.addf %23, %24 : vector<16x128xf32>
    %cst_28 = arith.constant 0.000000e+00 : f32
    %26 = vector.broadcast %cst_28 : f32 to vector<16x128xf32>
    %27 = arith.cmpf ogt, %25, %26 : vector<16x128xf32>
    %cst_29 = arith.constant 1.000000e-01 : f32
    %28 = vector.broadcast %cst_29 : f32 to vector<16x128xf32>
    %29 = arith.mulf %28, %25 : vector<16x128xf32>
    %30 = arith.select %27, %25, %29 : vector<16x128xi1>, vector<16x128xf32>
    %c0_30 = arith.constant 0 : index
    %c0_31 = arith.constant 0 : index
    %c0_32 = arith.constant 0 : index
    %c0_33 = arith.constant 0 : index
    %31 = vector.load %arg11[%c0_30, %c0_31, %c0_32, %c0_33] : memref<3x1x384x128xf32, #tpu.memory_space<vmem>>, vector<1x1x384x128xf32>
    %32 = vector.shape_cast %31 : vector<1x1x384x128xf32> to vector<384x128xf32>
    %c0_34 = arith.constant 0 : index
    %c0_35 = arith.constant 0 : index
    %c0_36 = arith.constant 0 : index
    %c0_37 = arith.constant 0 : index
    %33 = vector.load %arg12[%c0_34, %c0_35, %c0_36, %c0_37] : memref<3x1x1x128xf32, #tpu.memory_space<vmem>>, vector<1x1x1x128xf32>
    %34 = vector.shape_cast %33 : vector<1x1x1x128xf32> to vector<1x128xf32>
    %c0_38 = arith.constant 0 : index
    %c0_39 = arith.constant 0 : index
    %c0_40 = arith.constant 0 : index
    %c0_41 = arith.constant 0 : index
    %35 = vector.load %arg4[%c0_38, %c0_39, %c0_40, %c0_41] : memref<1x1x2x128xf32, #tpu.memory_space<vmem>>, vector<1x1x2x128xf32>
    %36 = vector.shape_cast %35 : vector<1x1x2x128xf32> to vector<2x128xf32>
    %c8_42 = arith.constant 8 : index
    %c0_43 = arith.constant 0 : index
    %37 = vector.load %arg21[%c8_42, %c0_43] : memref<26x128xf32, #tpu.memory_space<vmem>>, vector<2x128xf32>
    tpu.vector_store %arg21[%c8_42, %c0_43], %36 {strides = array<i32>} : memref<26x128xf32, #tpu.memory_space<vmem>>, vector<2x128xf32>,
    %c10_44 = arith.constant 10 : index
    %c0_45 = arith.constant 0 : index
    %38 = vector.load %arg21[%c10_44, %c0_45] : memref<26x128xf32, #tpu.memory_space<vmem>>, vector<16x128xf32>
    tpu.vector_store %arg21[%c10_44, %c0_45], %30 {strides = array<i32>} : memref<26x128xf32, #tpu.memory_space<vmem>>, vector<16x128xf32>,
    %c24_46 = arith.constant 24 : index
    %c0_47 = arith.constant 0 : index
    %39 = vector.load %arg21[%c24_46, %c0_47] : memref<26x128xf32, #tpu.memory_space<vmem>>, vector<2x128xf32>
    %c0_48 = arith.constant 0 : index
    %c0_49 = arith.constant 0 : index
    %c0_50 = arith.constant 0 : index
    %c0_51 = arith.constant 0 : index
    %40 = vector.load %arg16[%c0_48, %c0_49, %c0_50, %c0_51] : memref<1x1x2x128xf32, #tpu.memory_space<vmem>>, vector<1x1x2x128xf32>
    %41 = vector.shape_cast %40 : vector<1x1x2x128xf32> to vector<2x128xf32>
    %42 = vector.shape_cast %39 : vector<2x128xf32> to vector<1x1x2x128xf32>
    tpu.vector_store %arg16[%c0_48, %c0_49, %c0_50, %c0_51], %42 {strides = array<i32>} : memref<1x1x2x128xf32, #tpu.memory_space<vmem>>, vector<1x1x2x128xf32>,
    %c8_52 = arith.constant 8 : index
    %c0_53 = arith.constant 0 : index
    %43 = vector.load %arg21[%c8_52, %c0_53] : memref<26x128xf32, #tpu.memory_space<vmem>>, vector<16x128xf32>
    %c9_54 = arith.constant 9 : index
    %c0_55 = arith.constant 0 : index
    %44 = vector.load %arg21[%c9_54, %c0_55] : memref<26x128xf32, #tpu.memory_space<vmem>>, vector<16x128xf32>
    %c10_56 = arith.constant 10 : index
    %c0_57 = arith.constant 0 : index
    %45 = vector.load %arg21[%c10_56, %c0_57] : memref<26x128xf32, #tpu.memory_space<vmem>>, vector<16x128xf32>
    %46 = tpu.concatenate %43, %44, %45 in 1 : vector<16x128xf32>, vector<16x128xf32>, vector<16x128xf32> -> vector<16x384xf32>
    %cst_58 = arith.constant dense<0.000000e+00> : vector<16x128xf32>
    %47 = tpu.matmul %46, %32, %cst_58 {dimension_numbers = #tpu.dot_dimension_numbers<[1], [0], [0], [1], [0, 0, 1, 1], [], []>} : vector<16x384xf32>, vector<384x128xf32>, vector<16x128xf32> -> vector<16x128xf32>
    %48 = vector.broadcast %34 : vector<1x128xf32> to vector<16x128xf32>
    %49 = arith.addf %47, %48 : vector<16x128xf32>
    %50 = arith.addf %49, %1 : vector<16x128xf32>
    %cst_59 = arith.constant 0.000000e+00 : f32
    %51 = vector.broadcast %cst_59 : f32 to vector<16x128xf32>
    %52 = arith.cmpf ogt, %50, %51 : vector<16x128xf32>
    %cst_60 = arith.constant 1.000000e-01 : f32
    %53 = vector.broadcast %cst_60 : f32 to vector<16x128xf32>
    %54 = arith.mulf %53, %50 : vector<16x128xf32>
    %55 = arith.select %52, %50, %54 : vector<16x128xi1>, vector<16x128xf32>
    %c1 = arith.constant 1 : index
    %c0_61 = arith.constant 0 : index
    %c0_62 = arith.constant 0 : index
    %c0_63 = arith.constant 0 : index
    %56 = vector.load %arg9[%c1, %c0_61, %c0_62, %c0_63] : memref<3x1x384x128xf32, #tpu.memory_space<vmem>>, vector<1x1x384x128xf32>
    %57 = vector.shape_cast %56 : vector<1x1x384x128xf32> to vector<384x128xf32>
    %c1_64 = arith.constant 1 : index
    %c0_65 = arith.constant 0 : index
    %c0_66 = arith.constant 0 : index
    %c0_67 = arith.constant 0 : index
    %58 = vector.load %arg10[%c1_64, %c0_65, %c0_66, %c0_67] : memref<3x1x1x128xf32, #tpu.memory_space<vmem>>, vector<1x1x1x128xf32>
    %59 = vector.shape_cast %58 : vector<1x1x1x128xf32> to vector<1x128xf32>
    %c0_68 = arith.constant 0 : index
    %c0_69 = arith.constant 0 : index
    %c0_70 = arith.constant 0 : index
    %c0_71 = arith.constant 0 : index
    %60 = vector.load %arg5[%c0_68, %c0_69, %c0_70, %c0_71] : memref<1x1x6x128xf32, #tpu.memory_space<vmem>>, vector<1x1x6x128xf32>
    %61 = vector.shape_cast %60 : vector<1x1x6x128xf32> to vector<6x128xf32>
    %c4 = arith.constant 4 : index
    %c0_72 = arith.constant 0 : index
    %62 = vector.load %arg21[%c4, %c0_72] : memref<26x128xf32, #tpu.memory_space<vmem>>, vector<6x128xf32>
    tpu.vector_store %arg21[%c4, %c0_72], %61 {strides = array<i32>} : memref<26x128xf32, #tpu.memory_space<vmem>>, vector<6x128xf32>,
    %c10_73 = arith.constant 10 : index
    %c0_74 = arith.constant 0 : index
    %63 = vector.load %arg21[%c10_73, %c0_74] : memref<26x128xf32, #tpu.memory_space<vmem>>, vector<16x128xf32>
    tpu.vector_store %arg21[%c10_73, %c0_74], %55 {strides = array<i32>} : memref<26x128xf32, #tpu.memory_space<vmem>>, vector<16x128xf32>,
    %c20 = arith.constant 20 : index
    %c0_75 = arith.constant 0 : index
    %64 = vector.load %arg21[%c20, %c0_75] : memref<26x128xf32, #tpu.memory_space<vmem>>, vector<6x128xf32>
    %c0_76 = arith.constant 0 : index
    %c0_77 = arith.constant 0 : index
    %c0_78 = arith.constant 0 : index
    %c0_79 = arith.constant 0 : index
    %65 = vector.load %arg17[%c0_76, %c0_77, %c0_78, %c0_79] : memref<1x1x6x128xf32, #tpu.memory_space<vmem>>, vector<1x1x6x128xf32>
    %66 = vector.shape_cast %65 : vector<1x1x6x128xf32> to vector<6x128xf32>
    %67 = vector.shape_cast %64 : vector<6x128xf32> to vector<1x1x6x128xf32>
    tpu.vector_store %arg17[%c0_76, %c0_77, %c0_78, %c0_79], %67 {strides = array<i32>} : memref<1x1x6x128xf32, #tpu.memory_space<vmem>>, vector<1x1x6x128xf32>,
    %c4_80 = arith.constant 4 : index
    %c0_81 = arith.constant 0 : index
    %68 = vector.load %arg21[%c4_80, %c0_81] : memref<26x128xf32, #tpu.memory_space<vmem>>, vector<16x128xf32>
    %c7 = arith.constant 7 : index
    %c0_82 = arith.constant 0 : index
    %69 = vector.load %arg21[%c7, %c0_82] : memref<26x128xf32, #tpu.memory_space<vmem>>, vector<16x128xf32>
    %c10_83 = arith.constant 10 : index
    %c0_84 = arith.constant 0 : index
    %70 = vector.load %arg21[%c10_83, %c0_84] : memref<26x128xf32, #tpu.memory_space<vmem>>, vector<16x128xf32>
    %71 = tpu.concatenate %68, %69, %70 in 1 : vector<16x128xf32>, vector<16x128xf32>, vector<16x128xf32> -> vector<16x384xf32>
    %cst_85 = arith.constant dense<0.000000e+00> : vector<16x128xf32>
    %72 = tpu.matmul %71, %57, %cst_85 {dimension_numbers = #tpu.dot_dimension_numbers<[1], [0], [0], [1], [0, 0, 1, 1], [], []>} : vector<16x384xf32>, vector<384x128xf32>, vector<16x128xf32> -> vector<16x128xf32>
    %73 = vector.broadcast %59 : vector<1x128xf32> to vector<16x128xf32>
    %74 = arith.addf %72, %73 : vector<16x128xf32>
    %cst_86 = arith.constant 0.000000e+00 : f32
    %75 = vector.broadcast %cst_86 : f32 to vector<16x128xf32>
    %76 = arith.cmpf ogt, %74, %75 : vector<16x128xf32>
    %cst_87 = arith.constant 1.000000e-01 : f32
    %77 = vector.broadcast %cst_87 : f32 to vector<16x128xf32>
    %78 = arith.mulf %77, %74 : vector<16x128xf32>
    %79 = arith.select %76, %74, %78 : vector<16x128xi1>, vector<16x128xf32>
    %c1_88 = arith.constant 1 : index
    %c0_89 = arith.constant 0 : index
    %c0_90 = arith.constant 0 : index
    %c0_91 = arith.constant 0 : index
    %80 = vector.load %arg11[%c1_88, %c0_89, %c0_90, %c0_91] : memref<3x1x384x128xf32, #tpu.memory_space<vmem>>, vector<1x1x384x128xf32>
    %81 = vector.shape_cast %80 : vector<1x1x384x128xf32> to vector<384x128xf32>
    %c1_92 = arith.constant 1 : index
    %c0_93 = arith.constant 0 : index
    %c0_94 = arith.constant 0 : index
    %c0_95 = arith.constant 0 : index
    %82 = vector.load %arg12[%c1_92, %c0_93, %c0_94, %c0_95] : memref<3x1x1x128xf32, #tpu.memory_space<vmem>>, vector<1x1x1x128xf32>
    %83 = vector.shape_cast %82 : vector<1x1x1x128xf32> to vector<1x128xf32>
    %c0_96 = arith.constant 0 : index
    %c0_97 = arith.constant 0 : index
    %c0_98 = arith.constant 0 : index
    %c0_99 = arith.constant 0 : index
    %84 = vector.load %arg6[%c0_96, %c0_97, %c0_98, %c0_99] : memref<1x1x2x128xf32, #tpu.memory_space<vmem>>, vector<1x1x2x128xf32>
    %85 = vector.shape_cast %84 : vector<1x1x2x128xf32> to vector<2x128xf32>
    %c8_100 = arith.constant 8 : index
    %c0_101 = arith.constant 0 : index
    %86 = vector.load %arg21[%c8_100, %c0_101] : memref<26x128xf32, #tpu.memory_space<vmem>>, vector<2x128xf32>
    tpu.vector_store %arg21[%c8_100, %c0_101], %85 {strides = array<i32>} : memref<26x128xf32, #tpu.memory_space<vmem>>, vector<2x128xf32>,
    %c10_102 = arith.constant 10 : index
    %c0_103 = arith.constant 0 : index
    %87 = vector.load %arg21[%c10_102, %c0_103] : memref<26x128xf32, #tpu.memory_space<vmem>>, vector<16x128xf32>
    tpu.vector_store %arg21[%c10_102, %c0_103], %79 {strides = array<i32>} : memref<26x128xf32, #tpu.memory_space<vmem>>, vector<16x128xf32>,
    %c24_104 = arith.constant 24 : index
    %c0_105 = arith.constant 0 : index
    %88 = vector.load %arg21[%c24_104, %c0_105] : memref<26x128xf32, #tpu.memory_space<vmem>>, vector<2x128xf32>
    %c0_106 = arith.constant 0 : index
    %c0_107 = arith.constant 0 : index
    %c0_108 = arith.constant 0 : index
    %c0_109 = arith.constant 0 : index
    %89 = vector.load %arg18[%c0_106, %c0_107, %c0_108, %c0_109] : memref<1x1x2x128xf32, #tpu.memory_space<vmem>>, vector<1x1x2x128xf32>
    %90 = vector.shape_cast %89 : vector<1x1x2x128xf32> to vector<2x128xf32>
    %91 = vector.shape_cast %88 : vector<2x128xf32> to vector<1x1x2x128xf32>
    tpu.vector_store %arg18[%c0_106, %c0_107, %c0_108, %c0_109], %91 {strides = array<i32>} : memref<1x1x2x128xf32, #tpu.memory_space<vmem>>, vector<1x1x2x128xf32>,
    %c8_110 = arith.constant 8 : index
    %c0_111 = arith.constant 0 : index
    %92 = vector.load %arg21[%c8_110, %c0_111] : memref<26x128xf32, #tpu.memory_space<vmem>>, vector<16x128xf32>
    %c9_112 = arith.constant 9 : index
    %c0_113 = arith.constant 0 : index
    %93 = vector.load %arg21[%c9_112, %c0_113] : memref<26x128xf32, #tpu.memory_space<vmem>>, vector<16x128xf32>
    %c10_114 = arith.constant 10 : index
    %c0_115 = arith.constant 0 : index
    %94 = vector.load %arg21[%c10_114, %c0_115] : memref<26x128xf32, #tpu.memory_space<vmem>>, vector<16x128xf32>
    %95 = tpu.concatenate %92, %93, %94 in 1 : vector<16x128xf32>, vector<16x128xf32>, vector<16x128xf32> -> vector<16x384xf32>
    %cst_116 = arith.constant dense<0.000000e+00> : vector<16x128xf32>
    %96 = tpu.matmul %95, %81, %cst_116 {dimension_numbers = #tpu.dot_dimension_numbers<[1], [0], [0], [1], [0, 0, 1, 1], [], []>} : vector<16x384xf32>, vector<384x128xf32>, vector<16x128xf32> -> vector<16x128xf32>
    %97 = vector.broadcast %83 : vector<1x128xf32> to vector<16x128xf32>
    %98 = arith.addf %96, %97 : vector<16x128xf32>
    %99 = arith.addf %98, %50 : vector<16x128xf32>
    %cst_117 = arith.constant 0.000000e+00 : f32
    %100 = vector.broadcast %cst_117 : f32 to vector<16x128xf32>
    %101 = arith.cmpf ogt, %99, %100 : vector<16x128xf32>
    %cst_118 = arith.constant 1.000000e-01 : f32
    %102 = vector.broadcast %cst_118 : f32 to vector<16x128xf32>
    %103 = arith.mulf %102, %99 : vector<16x128xf32>
    %104 = arith.select %101, %99, %103 : vector<16x128xi1>, vector<16x128xf32>
    %c2 = arith.constant 2 : index
    %c0_119 = arith.constant 0 : index
    %c0_120 = arith.constant 0 : index
    %c0_121 = arith.constant 0 : index
    %105 = vector.load %arg9[%c2, %c0_119, %c0_120, %c0_121] : memref<3x1x384x128xf32, #tpu.memory_space<vmem>>, vector<1x1x384x128xf32>
    %106 = vector.shape_cast %105 : vector<1x1x384x128xf32> to vector<384x128xf32>
    %c2_122 = arith.constant 2 : index
    %c0_123 = arith.constant 0 : index
    %c0_124 = arith.constant 0 : index
    %c0_125 = arith.constant 0 : index
    %107 = vector.load %arg10[%c2_122, %c0_123, %c0_124, %c0_125] : memref<3x1x1x128xf32, #tpu.memory_space<vmem>>, vector<1x1x1x128xf32>
    %108 = vector.shape_cast %107 : vector<1x1x1x128xf32> to vector<1x128xf32>
    %c0_126 = arith.constant 0 : index
    %c0_127 = arith.constant 0 : index
    %c0_128 = arith.constant 0 : index
    %c0_129 = arith.constant 0 : index
    %109 = vector.load %arg7[%c0_126, %c0_127, %c0_128, %c0_129] : memref<1x1x10x128xf32, #tpu.memory_space<vmem>>, vector<1x1x10x128xf32>
    %110 = vector.shape_cast %109 : vector<1x1x10x128xf32> to vector<10x128xf32>
    %c0_130 = arith.constant 0 : index
    %c0_131 = arith.constant 0 : index
    %111 = vector.load %arg21[%c0_130, %c0_131] : memref<26x128xf32, #tpu.memory_space<vmem>>, vector<10x128xf32>
    tpu.vector_store %arg21[%c0_130, %c0_131], %110 {strides = array<i32>} : memref<26x128xf32, #tpu.memory_space<vmem>>, vector<10x128xf32>,
    %c10_132 = arith.constant 10 : index
    %c0_133 = arith.constant 0 : index
    %112 = vector.load %arg21[%c10_132, %c0_133] : memref<26x128xf32, #tpu.memory_space<vmem>>, vector<16x128xf32>
    tpu.vector_store %arg21[%c10_132, %c0_133], %104 {strides = array<i32>} : memref<26x128xf32, #tpu.memory_space<vmem>>, vector<16x128xf32>,
    %c16 = arith.constant 16 : index
    %c0_134 = arith.constant 0 : index
    %113 = vector.load %arg21[%c16, %c0_134] : memref<26x128xf32, #tpu.memory_space<vmem>>, vector<10x128xf32>
    %c0_135 = arith.constant 0 : index
    %c0_136 = arith.constant 0 : index
    %c0_137 = arith.constant 0 : index
    %c0_138 = arith.constant 0 : index
    %114 = vector.load %arg19[%c0_135, %c0_136, %c0_137, %c0_138] : memref<1x1x10x128xf32, #tpu.memory_space<vmem>>, vector<1x1x10x128xf32>
    %115 = vector.shape_cast %114 : vector<1x1x10x128xf32> to vector<10x128xf32>
    %116 = vector.shape_cast %113 : vector<10x128xf32> to vector<1x1x10x128xf32>
    tpu.vector_store %arg19[%c0_135, %c0_136, %c0_137, %c0_138], %116 {strides = array<i32>} : memref<1x1x10x128xf32, #tpu.memory_space<vmem>>, vector<1x1x10x128xf32>,
    %c0_139 = arith.constant 0 : index
    %c0_140 = arith.constant 0 : index
    %117 = vector.load %arg21[%c0_139, %c0_140] : memref<26x128xf32, #tpu.memory_space<vmem>>, vector<16x128xf32>
    %c5 = arith.constant 5 : index
    %c0_141 = arith.constant 0 : index
    %118 = vector.load %arg21[%c5, %c0_141] : memref<26x128xf32, #tpu.memory_space<vmem>>, vector<16x128xf32>
    %c10_142 = arith.constant 10 : index
    %c0_143 = arith.constant 0 : index
    %119 = vector.load %arg21[%c10_142, %c0_143] : memref<26x128xf32, #tpu.memory_space<vmem>>, vector<16x128xf32>
    %120 = tpu.concatenate %117, %118, %119 in 1 : vector<16x128xf32>, vector<16x128xf32>, vector<16x128xf32> -> vector<16x384xf32>
    %cst_144 = arith.constant dense<0.000000e+00> : vector<16x128xf32>
    %121 = tpu.matmul %120, %106, %cst_144 {dimension_numbers = #tpu.dot_dimension_numbers<[1], [0], [0], [1], [0, 0, 1, 1], [], []>} : vector<16x384xf32>, vector<384x128xf32>, vector<16x128xf32> -> vector<16x128xf32>
    %122 = vector.broadcast %108 : vector<1x128xf32> to vector<16x128xf32>
    %123 = arith.addf %121, %122 : vector<16x128xf32>
    %cst_145 = arith.constant 0.000000e+00 : f32
    %124 = vector.broadcast %cst_145 : f32 to vector<16x128xf32>
    %125 = arith.cmpf ogt, %123, %124 : vector<16x128xf32>
    %cst_146 = arith.constant 1.000000e-01 : f32
    %126 = vector.broadcast %cst_146 : f32 to vector<16x128xf32>
    %127 = arith.mulf %126, %123 : vector<16x128xf32>
    %128 = arith.select %125, %123, %127 : vector<16x128xi1>, vector<16x128xf32>
    %c2_147 = arith.constant 2 : index
    %c0_148 = arith.constant 0 : index
    %c0_149 = arith.constant 0 : index
    %c0_150 = arith.constant 0 : index
    %129 = vector.load %arg11[%c2_147, %c0_148, %c0_149, %c0_150] : memref<3x1x384x128xf32, #tpu.memory_space<vmem>>, vector<1x1x384x128xf32>
    %130 = vector.shape_cast %129 : vector<1x1x384x128xf32> to vector<384x128xf32>
    %c2_151 = arith.constant 2 : index
    %c0_152 = arith.constant 0 : index
    %c0_153 = arith.constant 0 : index
    %c0_154 = arith.constant 0 : index
    %131 = vector.load %arg12[%c2_151, %c0_152, %c0_153, %c0_154] : memref<3x1x1x128xf32, #tpu.memory_space<vmem>>, vector<1x1x1x128xf32>
    %132 = vector.shape_cast %131 : vector<1x1x1x128xf32> to vector<1x128xf32>
    %c0_155 = arith.constant 0 : index
    %c0_156 = arith.constant 0 : index
    %c0_157 = arith.constant 0 : index
    %c0_158 = arith.constant 0 : index
    %133 = vector.load %arg8[%c0_155, %c0_156, %c0_157, %c0_158] : memref<1x1x2x128xf32, #tpu.memory_space<vmem>>, vector<1x1x2x128xf32>
    %134 = vector.shape_cast %133 : vector<1x1x2x128xf32> to vector<2x128xf32>
    %c8_159 = arith.constant 8 : index
    %c0_160 = arith.constant 0 : index
    %135 = vector.load %arg21[%c8_159, %c0_160] : memref<26x128xf32, #tpu.memory_space<vmem>>, vector<2x128xf32>
    tpu.vector_store %arg21[%c8_159, %c0_160], %134 {strides = array<i32>} : memref<26x128xf32, #tpu.memory_space<vmem>>, vector<2x128xf32>,
    %c10_161 = arith.constant 10 : index
    %c0_162 = arith.constant 0 : index
    %136 = vector.load %arg21[%c10_161, %c0_162] : memref<26x128xf32, #tpu.memory_space<vmem>>, vector<16x128xf32>
    tpu.vector_store %arg21[%c10_161, %c0_162], %128 {strides = array<i32>} : memref<26x128xf32, #tpu.memory_space<vmem>>, vector<16x128xf32>,
    %c24_163 = arith.constant 24 : index
    %c0_164 = arith.constant 0 : index
    %137 = vector.load %arg21[%c24_163, %c0_164] : memref<26x128xf32, #tpu.memory_space<vmem>>, vector<2x128xf32>
    %c0_165 = arith.constant 0 : index
    %c0_166 = arith.constant 0 : index
    %c0_167 = arith.constant 0 : index
    %c0_168 = arith.constant 0 : index
    %138 = vector.load %arg20[%c0_165, %c0_166, %c0_167, %c0_168] : memref<1x1x2x128xf32, #tpu.memory_space<vmem>>, vector<1x1x2x128xf32>
    %139 = vector.shape_cast %138 : vector<1x1x2x128xf32> to vector<2x128xf32>
    %140 = vector.shape_cast %137 : vector<2x128xf32> to vector<1x1x2x128xf32>
    tpu.vector_store %arg20[%c0_165, %c0_166, %c0_167, %c0_168], %140 {strides = array<i32>} : memref<1x1x2x128xf32, #tpu.memory_space<vmem>>, vector<1x1x2x128xf32>,
    %c8_169 = arith.constant 8 : index
    %c0_170 = arith.constant 0 : index
    %141 = vector.load %arg21[%c8_169, %c0_170] : memref<26x128xf32, #tpu.memory_space<vmem>>, vector<16x128xf32>
    %c9_171 = arith.constant 9 : index
    %c0_172 = arith.constant 0 : index
    %142 = vector.load %arg21[%c9_171, %c0_172] : memref<26x128xf32, #tpu.memory_space<vmem>>, vector<16x128xf32>
    %c10_173 = arith.constant 10 : index
    %c0_174 = arith.constant 0 : index
    %143 = vector.load %arg21[%c10_173, %c0_174] : memref<26x128xf32, #tpu.memory_space<vmem>>, vector<16x128xf32>
    %144 = tpu.concatenate %141, %142, %143 in 1 : vector<16x128xf32>, vector<16x128xf32>, vector<16x128xf32> -> vector<16x384xf32>
    %cst_175 = arith.constant dense<0.000000e+00> : vector<16x128xf32>
    %145 = tpu.matmul %144, %130, %cst_175 {dimension_numbers = #tpu.dot_dimension_numbers<[1], [0], [0], [1], [0, 0, 1, 1], [], []>} : vector<16x384xf32>, vector<384x128xf32>, vector<16x128xf32> -> vector<16x128xf32>
    %146 = vector.broadcast %132 : vector<1x128xf32> to vector<16x128xf32>
    %147 = arith.addf %145, %146 : vector<16x128xf32>
    %148 = arith.addf %147, %99 : vector<16x128xf32>
    %c0_176 = arith.constant 0 : index
    %c0_177 = arith.constant 0 : index
    %c0_178 = arith.constant 0 : index
    %149 = vector.load %arg13[%c0_176, %c0_177, %c0_178] : memref<1x128x128xf32, #tpu.memory_space<vmem>>, vector<1x128x128xf32>
    %150 = vector.shape_cast %149 : vector<1x128x128xf32> to vector<128x128xf32>
    %cst_179 = arith.constant dense<0.000000e+00> : vector<16x128xf32>
    %151 = tpu.matmul %148, %150, %cst_179 {dimension_numbers = #tpu.dot_dimension_numbers<[1], [0], [0], [1], [0, 0, 1, 1], [], []>} : vector<16x128xf32>, vector<128x128xf32>, vector<16x128xf32> -> vector<16x128xf32>
    %c0_i32 = arith.constant 0 : i32
    %152 = arith.cmpi eq, %arg1, %c0_i32 : i32
    %153 = arith.extui %152 : i1 to i32
    %c0_i32_180 = arith.constant 0 : i32
    %154 = arith.cmpi ne, %153, %c0_i32_180 : i32
    scf.if %154 {
      %c0_183 = arith.constant 0 : index
      %c0_184 = arith.constant 0 : index
      %c0_185 = arith.constant 0 : index
      %158 = vector.load %arg14[%c0_183, %c0_184, %c0_185] : memref<1x16x128xf32, #tpu.memory_space<vmem>>, vector<1x16x128xf32>
      %159 = vector.shape_cast %158 : vector<1x16x128xf32> to vector<16x128xf32>
      %160 = vector.shape_cast %151 : vector<16x128xf32> to vector<1x16x128xf32>
      tpu.vector_store %arg14[%c0_183, %c0_184, %c0_185], %160 {strides = array<i32>} : memref<1x16x128xf32, #tpu.memory_space<vmem>>, vector<1x16x128xf32>,
    } else {
    }
    %c0_i32_181 = arith.constant 0 : i32
    %155 = arith.cmpi sgt, %arg1, %c0_i32_181 : i32
    %156 = arith.extui %155 : i1 to i32
    %c0_i32_182 = arith.constant 0 : i32
    %157 = arith.cmpi ne, %156, %c0_i32_182 : i32
    scf.if %157 {
      %c0_183 = arith.constant 0 : index
      %c0_184 = arith.constant 0 : index
      %c0_185 = arith.constant 0 : index
      %158 = vector.load %arg14[%c0_183, %c0_184, %c0_185] : memref<1x16x128xf32, #tpu.memory_space<vmem>>, vector<1x16x128xf32>
      %159 = vector.shape_cast %158 : vector<1x16x128xf32> to vector<16x128xf32>
      %160 = arith.addf %159, %151 : vector<16x128xf32>
      %c0_186 = arith.constant 0 : index
      %c0_187 = arith.constant 0 : index
      %c0_188 = arith.constant 0 : index
      %161 = vector.load %arg14[%c0_186, %c0_187, %c0_188] : memref<1x16x128xf32, #tpu.memory_space<vmem>>, vector<1x16x128xf32>
      %162 = vector.shape_cast %161 : vector<1x16x128xf32> to vector<16x128xf32>
      %163 = vector.shape_cast %160 : vector<16x128xf32> to vector<1x16x128xf32>
      tpu.vector_store %arg14[%c0_186, %c0_187, %c0_188], %163 {strides = array<i32>} : memref<1x16x128xf32, #tpu.memory_space<vmem>>, vector<1x16x128xf32>,
    } else {
    }
    return
  }
  func.func @transform_0(%arg0: i32, %arg1: i32) -> (i32, i32, i32) {
    %c0_i32 = arith.constant 0 : i32
    %c0_i32_0 = arith.constant 0 : i32
    %c0_i32_1 = arith.constant 0 : i32
    return %arg0, %c0_i32, %c0_i32_0 : i32, i32, i32
  }
  func.func @transform_1(%arg0: i32, %arg1: i32) -> (i32, i32, i32, i32) {
    %c0_i32 = arith.constant 0 : i32
    %c0_i32_0 = arith.constant 0 : i32
    %c0_i32_1 = arith.constant 0 : i32
    return %arg0, %arg1, %c0_i32, %c0_i32_0 : i32, i32, i32, i32
  }
  func.func @transform_2(%arg0: i32, %arg1: i32) -> (i32, i32, i32, i32) {
    %c0_i32 = arith.constant 0 : i32
    %c0_i32_0 = arith.constant 0 : i32
    %c0_i32_1 = arith.constant 0 : i32
    return %arg0, %arg1, %c0_i32, %c0_i32_0 : i32, i32, i32, i32
  }
  func.func @transform_3(%arg0: i32, %arg1: i32) -> (i32, i32, i32, i32) {
    %c0_i32 = arith.constant 0 : i32
    %c0_i32_0 = arith.constant 0 : i32
    %c0_i32_1 = arith.constant 0 : i32
    return %arg0, %arg1, %c0_i32, %c0_i32_0 : i32, i32, i32, i32
  }
  func.func @transform_4(%arg0: i32, %arg1: i32) -> (i32, i32, i32, i32) {
    %c0_i32 = arith.constant 0 : i32
    %c0_i32_0 = arith.constant 0 : i32
    %c0_i32_1 = arith.constant 0 : i32
    return %arg0, %arg1, %c0_i32, %c0_i32_0 : i32, i32, i32, i32
  }
  func.func @transform_5(%arg0: i32, %arg1: i32) -> (i32, i32, i32, i32) {
    %c0_i32 = arith.constant 0 : i32
    %c0_i32_0 = arith.constant 0 : i32
    %c0_i32_1 = arith.constant 0 : i32
    return %arg0, %arg1, %c0_i32, %c0_i32_0 : i32, i32, i32, i32
  }
  func.func @transform_6(%arg0: i32, %arg1: i32) -> (i32, i32, i32, i32) {
    %c0_i32 = arith.constant 0 : i32
    %c0_i32_0 = arith.constant 0 : i32
    %c0_i32_1 = arith.constant 0 : i32
    return %arg0, %arg1, %c0_i32, %c0_i32_0 : i32, i32, i32, i32
  }
  func.func @transform_7(%arg0: i32, %arg1: i32) -> (i32, i32, i32, i32) {
    %c0_i32 = arith.constant 0 : i32
    %c0_i32_0 = arith.constant 0 : i32
    %c0_i32_1 = arith.constant 0 : i32
    %c0_i32_2 = arith.constant 0 : i32
    return %c0_i32, %arg1, %c0_i32_0, %c0_i32_1 : i32, i32, i32, i32
  }
  func.func @transform_8(%arg0: i32, %arg1: i32) -> (i32, i32, i32, i32) {
    %c0_i32 = arith.constant 0 : i32
    %c0_i32_0 = arith.constant 0 : i32
    %c0_i32_1 = arith.constant 0 : i32
    %c0_i32_2 = arith.constant 0 : i32
    return %c0_i32, %arg1, %c0_i32_0, %c0_i32_1 : i32, i32, i32, i32
  }
  func.func @transform_9(%arg0: i32, %arg1: i32) -> (i32, i32, i32, i32) {
    %c0_i32 = arith.constant 0 : i32
    %c0_i32_0 = arith.constant 0 : i32
    %c0_i32_1 = arith.constant 0 : i32
    %c0_i32_2 = arith.constant 0 : i32
    return %c0_i32, %arg1, %c0_i32_0, %c0_i32_1 : i32, i32, i32, i32
  }
  func.func @transform_10(%arg0: i32, %arg1: i32) -> (i32, i32, i32, i32) {
    %c0_i32 = arith.constant 0 : i32
    %c0_i32_0 = arith.constant 0 : i32
    %c0_i32_1 = arith.constant 0 : i32
    %c0_i32_2 = arith.constant 0 : i32
    return %c0_i32, %arg1, %c0_i32_0, %c0_i32_1 : i32, i32, i32, i32
  }
  func.func @transform_11(%arg0: i32, %arg1: i32) -> (i32, i32, i32) {
    %c0_i32 = arith.constant 0 : i32
    %c0_i32_0 = arith.constant 0 : i32
    %c0_i32_1 = arith.constant 0 : i32
    return %arg1, %c0_i32, %c0_i32_0 : i32, i32, i32
  }
  func.func @transform_12(%arg0: i32, %arg1: i32) -> (i32, i32, i32) {
    %c0_i32 = arith.constant 0 : i32
    %c0_i32_0 = arith.constant 0 : i32
    %c0_i32_1 = arith.constant 0 : i32
    return %arg0, %c0_i32, %c0_i32_0 : i32, i32, i32
  }
  func.func @transform_13(%arg0: i32, %arg1: i32) -> (i32, i32, i32, i32) {
    %c0_i32 = arith.constant 0 : i32
    %c0_i32_0 = arith.constant 0 : i32
    %c0_i32_1 = arith.constant 0 : i32
    return %arg0, %arg1, %c0_i32, %c0_i32_0 : i32, i32, i32, i32
  }
  func.func @transform_14(%arg0: i32, %arg1: i32) -> (i32, i32, i32, i32) {
    %c0_i32 = arith.constant 0 : i32
    %c0_i32_0 = arith.constant 0 : i32
    %c0_i32_1 = arith.constant 0 : i32
    return %arg0, %arg1, %c0_i32, %c0_i32_0 : i32, i32, i32, i32
  }
  func.func @transform_15(%arg0: i32, %arg1: i32) -> (i32, i32, i32, i32) {
    %c0_i32 = arith.constant 0 : i32
    %c0_i32_0 = arith.constant 0 : i32
    %c0_i32_1 = arith.constant 0 : i32
    return %arg0, %arg1, %c0_i32, %c0_i32_0 : i32, i32, i32, i32
  }
  func.func @transform_16(%arg0: i32, %arg1: i32) -> (i32, i32, i32, i32) {
    %c0_i32 = arith.constant 0 : i32
    %c0_i32_0 = arith.constant 0 : i32
    %c0_i32_1 = arith.constant 0 : i32
    return %arg0, %arg1, %c0_i32, %c0_i32_0 : i32, i32, i32, i32
  }
  func.func @transform_17(%arg0: i32, %arg1: i32) -> (i32, i32, i32, i32) {
    %c0_i32 = arith.constant 0 : i32
    %c0_i32_0 = arith.constant 0 : i32
    %c0_i32_1 = arith.constant 0 : i32
    return %arg0, %arg1, %c0_i32, %c0_i32_0 : i32, i32, i32, i32
  }
  func.func @transform_18(%arg0: i32, %arg1: i32) -> (i32, i32, i32, i32) {
    %c0_i32 = arith.constant 0 : i32
    %c0_i32_0 = arith.constant 0 : i32
    %c0_i32_1 = arith.constant 0 : i32
    return %arg0, %arg1, %c0_i32, %c0_i32_0 : i32, i32, i32, i32
  }
}

</mosaic_0001>

<llo_original>
// kernel: tpu_custom_call.1
$region0: #{tpu_custom_call.1}
  #allocation0 [shape = 'u32[]', space=smem, size = 0x4, offset = 0x4, fixed_abs, tag = 'smem constant byte address 0x4 - core index']
  #allocation1 [shape = 'u32[144,128]{1,0:T(1,128)}', space=vmem, size = 0x12000, scoped, tag = 'internal scratch']
  #allocation2 [shape = 'f32[26,128]{1,0:T(8,128)}', space=vmem, size = 0x4000, scoped, tag = 'scratch operand']
  #allocation27 [shape = 's32[]', space=sflag, size = 0x4, offset = 0, fixed_abs, tag = 'sflag constant byte address 0x0 - dummy sync flag']
  #allocation29 [shape = 's32[]', space=sflag, size = 0x4, offset = 0, fixed_abs, tag = 'sflag constant byte address 0x0 - dummy sync flag']
  %s0 = inlined_call_operand.hbm [shape: f32[2,16,128], index: 0, kind: input, shape index: {}]
  %s1 = inlined_call_operand.hbm [shape: f32[2,3,2,128], index: 1, kind: input, shape index: {}]
  %s2 = inlined_call_operand.hbm [shape: f32[2,3,2,128], index: 2, kind: input, shape index: {}]
  %s3 = inlined_call_operand.vmem [shape: f32[2,3,6,128], index: 3, kind: input, shape index: {}]
  %s4 = inlined_call_operand.hbm [shape: f32[2,3,2,128], index: 4, kind: input, shape index: {}]
  %s5 = inlined_call_operand.vmem [shape: f32[2,3,10,128], index: 5, kind: input, shape index: {}]
  %s6 = inlined_call_operand.hbm [shape: f32[2,3,2,128], index: 6, kind: input, shape index: {}]
  %s7 = inlined_call_operand.hbm [shape: f32[3,3,384,128], index: 7, kind: input, shape index: {}]
  %s8 = inlined_call_operand.hbm [shape: f32[3,3,1,128], index: 8, kind: input, shape index: {}]
  %s9 = inlined_call_operand.hbm [shape: f32[3,3,384,128], index: 9, kind: input, shape index: {}]
  %s10 = inlined_call_operand.hbm [shape: f32[3,3,1,128], index: 10, kind: input, shape index: {}]
  %s11 = inlined_call_operand.hbm [shape: f32[3,128,128], index: 11, kind: input, shape index: {}]
  %s12 = inlined_call_operand.hbm [shape: f32[2,16,128], index: 12, kind: output, shape index: {0}]
  %s13 = inlined_call_operand.hbm [shape: f32[2,3,2,128], index: 13, kind: output, shape index: {1}]
  %s14 = inlined_call_operand.hbm [shape: f32[2,3,2,128], index: 14, kind: output, shape index: {2}]
  %s15 = inlined_call_operand.vmem [shape: f32[2,3,6,128], index: 15, kind: output, shape index: {3}]
  %s16 = inlined_call_operand.hbm [shape: f32[2,3,2,128], index: 16, kind: output, shape index: {4}]
  %s17 = inlined_call_operand.vmem [shape: f32[2,3,10,128], index: 17, kind: output, shape index: {5}]
  %s18 = inlined_call_operand.hbm [shape: f32[2,3,2,128], index: 18, kind: output, shape index: {6}]
  %19 = xla_tuple %s12, %s13, %s14, %s15, %s16, %s17, %s18
  %s20 = sld [smem:[#allocation0]]
  $region177: #{tpu_custom_call.1} parent=0
    _
  %s22 = ssub.s32 1, %s20
  %s23 = scalar_select 0, %s22, %s20
  $region1: #{tpu_custom_call.1} parent=0
    #allocation3 [shape = 'u8[16384]{0}', space=vmem, size = 0x4000, scoped, tag = 'input window, operand 0']
    #allocation4 [shape = 's32[2]{0}', space=sflag, size = 0x8, scoped, tag = 'scoped memory for tpu_custom_call.1']
    #allocation5 [shape = 's32[2]{0}', space=sflag, size = 0x8, scoped, tag = 'scoped memory for tpu_custom_call.1']
    #allocation6 [shape = 'u8[2048]{0}', space=vmem, size = 0x800, scoped, tag = 'input window, operand 1']
    #allocation7 [shape = 's32[2]{0}', space=sflag, size = 0x8, scoped, tag = 'scoped memory for tpu_custom_call.1']
    #allocation8 [shape = 'u8[2048]{0}', space=vmem, size = 0x800, scoped, tag = 'input window, operand 2']
    #allocation9 [shape = 'u8[2048]{0}', space=vmem, size = 0x800, scoped, tag = 'input window, operand 4']
    #allocation10 [shape = 's32[2]{0}', space=sflag, size = 0x8, scoped, tag = 'scoped memory for tpu_custom_call.1']
    #allocation11 [shape = 'u8[2048]{0}', space=vmem, size = 0x800, scoped, tag = 'input window, operand 6']
    #allocation12 [shape = 'u8[1179648]{0}', space=vmem, size = 0x120000, scoped, tag = 'input window, operand 7']
    #allocation13 [shape = 's32[2]{0}', space=sflag, size = 0x8, scoped, tag = 'scoped memory for tpu_custom_call.1']
    #allocation14 [shape = 'u8[3072]{0}', space=vmem, size = 0xc00, scoped, tag = 'input window, operand 8']
    #allocation15 [shape = 'u8[1179648]{0}', space=vmem, size = 0x120000, scoped, tag = 'input window, operand 9']
    #allocation16 [shape = 's32[2]{0}', space=sflag, size = 0x8, scoped, tag = 'scoped memory for tpu_custom_call.1']
    #allocation17 [shape = 'u8[3072]{0}', space=vmem, size = 0xc00, scoped, tag = 'input window, operand 10']
    #allocation18 [shape = 'u8[131072]{0}', space=vmem, size = 0x20000, scoped, tag = 'input window, operand 11']
    #allocation19 [shape = 's32[2]{0}', space=sflag, size = 0x8, scoped, tag = 'scoped memory for tpu_custom_call.1']
    #allocation20 [shape = 'u8[16384]{0}', space=vmem, size = 0x4000, scoped, tag = 'output window, operand 0']
    #allocation21 [shape = 'u8[2048]{0}', space=vmem, size = 0x800, scoped, tag = 'output window, operand 1']
    #allocation22 [shape = 's32[2]{0}', space=sflag, size = 0x8, scoped, tag = 'scoped memory for tpu_custom_call.1']
    #allocation23 [shape = 'u8[2048]{0}', space=vmem, size = 0x800, scoped, tag = 'output window, operand 2']
    #allocation24 [shape = 'u8[2048]{0}', space=vmem, size = 0x800, scoped, tag = 'output window, operand 4']
    #allocation25 [shape = 's32[2]{0}', space=sflag, size = 0x8, scoped, tag = 'scoped memory for tpu_custom_call.1']
    #allocation26 [shape = 'u8[2048]{0}', space=vmem, size = 0x800, scoped, tag = 'output window, operand 6']
    %24 = vsyncpa [#allocation4], 0
    %s25 = scalar_lea.sflag [#allocation4], 1
    %26 = vsyncpa %s25, 0
    %27 = vsyncpa [#allocation7], 0
    %s28 = scalar_lea.sflag [#allocation7], 1
    %29 = vsyncpa %s28, 0
    %30 = vsyncpa [#allocation10], 0
    %s31 = scalar_lea.sflag [#allocation10], 1
    %32 = vsyncpa %s31, 0
    %33 = vsyncpa [#allocation13], 0
    %s34 = scalar_lea.sflag [#allocation13], 1
    %35 = vsyncpa %s34, 0
    %36 = vsyncpa [#allocation16], 0
    %s37 = scalar_lea.sflag [#allocation16], 1
    %38 = vsyncpa %s37, 0
    %39 = vsyncpa [#allocation19], 0
    %s40 = scalar_lea.sflag [#allocation19], 1
    %41 = vsyncpa %s40, 0
    %42 = vsyncpa [#allocation5], 0
    %s43 = scalar_lea.sflag [#allocation5], 1
    %44 = vsyncpa %s43, 0
    %45 = vsyncpa [#allocation22], 0
    %s46 = scalar_lea.sflag [#allocation22], 1
    %47 = vsyncpa %s46, 0
    %48 = vsyncpa [#allocation25], 0
    %s49 = scalar_lea.sflag [#allocation25], 1
    %50 = vsyncpa %s49, 0
    loop: start=0, step=1, limit=8
    $region2: #{tpu_custom_call.1} parent=1 // loop_pre_header
      _
    $region3: #{tpu_custom_call.1} parent=1 // loop_header
      %s52 = sphi 0, %s56
      %p53 = scmp.ge.s32.totalorder %s52, 8
      %s59 = sphi 0, %s71
      %s60 = sphi 0, %s67
      %s61 = sphi 0, %s59
      %s62 = sphi 0, %s60
      %s63 = sphi 0, %s61
      %s64 = sphi 0, %s62
      %s74 = sphi 0, %s76
      %s77 = sphi 0, %s74
      %s78 = sphi 0, %s77
      %s94 = sphi 0, %s78
      %s102 = sphi 0, %s104
      %s105 = sphi 0, %s102
      %s106 = sphi 0, %s105
      %s122 = sphi 0, %s106
      %s130 = sphi 0, %s132
      %s133 = sphi 0, %s130
      %s134 = sphi 0, %s133
      %s150 = sphi 0, %s134
      %s158 = sphi 0, %s160
      %s161 = sphi 0, %s158
      %s162 = sphi 0, %s161
      %s178 = sphi 0, %s162
      %s186 = sphi 0, %s188
      %s189 = sphi 0, %s186
      %s190 = sphi 0, %s189
      %s206 = sphi 0, %s190
      %s214 = sphi 0, %s216
      %s217 = sphi 0, %s214
      %s218 = sphi 0, %s217
      %s234 = sphi 0, %s218
      %s242 = sphi 0, %s244
      %s245 = sphi 0, %s242
      %s246 = sphi 0, %s245
      %s262 = sphi 0, %s246
      %s268 = sphi 0, %s270
      %s271 = sphi 0, %s268
      %s272 = sphi 0, %s271
      %s288 = sphi 0, %s272
      %s294 = sphi 0, %s296
      %s297 = sphi 0, %s294
      %s298 = sphi 0, %s297
      %s314 = sphi 0, %s298
      %s320 = sphi 0, %s322
      %s323 = sphi 0, %s320
      %s324 = sphi 0, %s323
      %s340 = sphi 0, %s324
      %s346 = sphi 0, %s348
      %s349 = sphi 0, %s346
      %s350 = sphi 0, %s349
      %s366 = sphi 0, %s350
      %s372 = sphi 0, %s374
      %s375 = sphi 0, %s372
      %s376 = sphi 0, %s375
      %s392 = sphi 0, %s376
      %s398 = sphi 0, %s400
      %s401 = sphi 0, %s398
      %s402 = sphi 0, %s401
      %s418 = sphi 0, %s402
      %s426 = sphi 0, %s428
      %s429 = sphi 0, %s426
      %s430 = sphi 0, %s429
      %s446 = sphi 0, %s430
      %s454 = sphi 0, %s456
      %s457 = sphi 0, %s454
      %s458 = sphi 0, %s457
      %s474 = sphi 0, %s458
      %s482 = sphi 0, %s484
      %s485 = sphi 0, %s482
      %s486 = sphi 0, %s485
      %s502 = sphi 0, %s486
      %s510 = sphi 0, %s512
      %s513 = sphi 0, %s510
      %s514 = sphi 0, %s513
      %s530 = sphi 0, %s514
      %s538 = sphi 0, %s540
      %s541 = sphi 0, %s538
      %s542 = sphi 0, %s541
      %s558 = sphi 0, %s542
      %s566 = sphi 0, %s568
      %s569 = sphi 0, %s566
      %s570 = sphi 0, %s569
      %s586 = sphi 0, %s570
    $region4: #{tpu_custom_call.1} parent=1 // loop_header_branch
      %55 = sbr.rel (%p53) target = $region8
    $region5: #{tpu_custom_call.1} parent=1 // loop_body
      %s57 = ssub.s32 %s52, 1
      %s58 = ssub.s32 %s52, 2
      %s65 = sadd.s32 1, %s60
      %p66 = scmp.ge.s32.totalorder %s65, 3
      %s67 = scalar_select %p66, 0, %s65
      %s68 = sadd.s32 1, %s59
      %s69 = scalar_select %p66, %s68, %s59
      %p70 = scmp.ge.s32.totalorder %s69, 2
      %s71 = scalar_select %p70, 0, %s69
      %s72 = ssub.s32 %s59, %s71
      %p73 = scmp.eq.s32.totalorder %s72, 0
      %s75 = sadd.s32 %s74, 1
      %s76 = scalar_select %p73, %s74, %s75
      %p79 = pneg %p73
      %p80 = scmp.eq.s32.totalorder %s52, 5
      %p81 = por %p79, %p80
      %p82 = scmp.ne.s32.totalorder %s74, %s77
      %p83 = scmp.eq.s32.totalorder %s52, 0
      %p84 = por %p82, %p83
      %p85 = scmp.ne.s32.totalorder %s74, %s77
      %p86 = scmp.eq.s32.totalorder %s57, 5
      %p87 = por %p85, %p86
      %p88 = scmp.ne.s32.totalorder %s77, %s78
      %p89 = scmp.eq.s32.totalorder %s57, 0
      %p90 = por %p88, %p89
      %p91 = scmp.ne.s32.totalorder %s77, %s78
      %p92 = scmp.eq.s32.totalorder %s58, 5
      %p93 = por %p91, %p92
      %p95 = scmp.ne.s32.totalorder %s78, %s94
      %p96 = scmp.eq.s32.totalorder %s58, 0
      %p97 = por %p95, %p96
      %s98 = ssub.s32 %s59, %s71
      %s99 = ssub.s32 %s60, %s67
      %s100 = sor.u32 %s98, %s99
      %p101 = scmp.eq.s32.totalorder %s100, 0
      %s103 = sadd.s32 %s102, 1
      %s104 = scalar_select %p101, %s102, %s103
      %p107 = pneg %p101
      %p108 = scmp.eq.s32.totalorder %s52, 5
      %p109 = por %p107, %p108
      %p110 = scmp.ne.s32.totalorder %s102, %s105
      %p111 = scmp.eq.s32.totalorder %s52, 0
      %p112 = por %p110, %p111
      %p113 = scmp.ne.s32.totalorder %s102, %s105
      %p114 = scmp.eq.s32.totalorder %s57, 5
      %p115 = por %p113, %p114
      %p116 = scmp.ne.s32.totalorder %s105, %s106
      %p117 = scmp.eq.s32.totalorder %s57, 0
      %p118 = por %p116, %p117
      %p119 = scmp.ne.s32.totalorder %s105, %s106
      %p120 = scmp.eq.s32.totalorder %s58, 5
      %p121 = por %p119, %p120
      %p123 = scmp.ne.s32.totalorder %s106, %s122
      %p124 = scmp.eq.s32.totalorder %s58, 0
      %p125 = por %p123, %p124
      %s126 = ssub.s32 %s59, %s71
      %s127 = ssub.s32 %s60, %s67
      %s128 = sor.u32 %s126, %s127
      %p129 = scmp.eq.s32.totalorder %s128, 0
      %s131 = sadd.s32 %s130, 1
      %s132 = scalar_select %p129, %s130, %s131
      %p135 = pneg %p129
      %p136 = scmp.eq.s32.totalorder %s52, 5
      %p137 = por %p135, %p136
      %p138 = scmp.ne.s32.totalorder %s130, %s133
      %p139 = scmp.eq.s32.totalorder %s52, 0
      %p140 = por %p138, %p139
      %p141 = scmp.ne.s32.totalorder %s130, %s133
      %p142 = scmp.eq.s32.totalorder %s57, 5
      %p143 = por %p141, %p142
      %p144 = scmp.ne.s32.totalorder %s133, %s134
      %p145 = scmp.eq.s32.totalorder %s57, 0
      %p146 = por %p144, %p145
      %p147 = scmp.ne.s32.totalorder %s133, %s134
      %p148 = scmp.eq.s32.totalorder %s58, 5
      %p149 = por %p147, %p148
      %p151 = scmp.ne.s32.totalorder %s134, %s150
      %p152 = scmp.eq.s32.totalorder %s58, 0
      %p153 = por %p151, %p152
      %s154 = ssub.s32 %s59, %s71
      %s155 = ssub.s32 %s60, %s67
      %s156 = sor.u32 %s154, %s155
      %p157 = scmp.eq.s32.totalorder %s156, 0
      %s159 = sadd.s32 %s158, 1
      %s160 = scalar_select %p157, %s158, %s159
      %p163 = pneg %p157
      %p164 = scmp.eq.s32.totalorder %s52, 5
      %p165 = por %p163, %p164
      %p166 = scmp.ne.s32.totalorder %s158, %s161
      %p167 = scmp.eq.s32.totalorder %s52, 0
      %p168 = por %p166, %p167
      %p169 = scmp.ne.s32.totalorder %s158, %s161
      %p170 = scmp.eq.s32.totalorder %s57, 5
      %p171 = por %p169, %p170
      %p172 = scmp.ne.s32.totalorder %s161, %s162
      %p173 = scmp.eq.s32.totalorder %s57, 0
      %p174 = por %p172, %p173
      %p175 = scmp.ne.s32.totalorder %s161, %s162
      %p176 = scmp.eq.s32.totalorder %s58, 5
      %p177 = por %p175, %p176
      %p179 = scmp.ne.s32.totalorder %s162, %s178
      %p180 = scmp.eq.s32.totalorder %s58, 0
      %p181 = por %p179, %p180
      %s182 = ssub.s32 %s59, %s71
      %s183 = ssub.s32 %s60, %s67
      %s184 = sor.u32 %s182, %s183
      %p185 = scmp.eq.s32.totalorder %s184, 0
      %s187 = sadd.s32 %s186, 1
      %s188 = scalar_select %p185, %s186, %s187
      %p191 = pneg %p185
      %p192 = scmp.eq.s32.totalorder %s52, 5
      %p193 = por %p191, %p192
      %p194 = scmp.ne.s32.totalorder %s186, %s189
      %p195 = scmp.eq.s32.totalorder %s52, 0
      %p196 = por %p194, %p195
      %p197 = scmp.ne.s32.totalorder %s186, %s189
      %p198 = scmp.eq.s32.totalorder %s57, 5
      %p199 = por %p197, %p198
      %p200 = scmp.ne.s32.totalorder %s189, %s190
      %p201 = scmp.eq.s32.totalorder %s57, 0
      %p202 = por %p200, %p201
      %p203 = scmp.ne.s32.totalorder %s189, %s190
      %p204 = scmp.eq.s32.totalorder %s58, 5
      %p205 = por %p203, %p204
      %p207 = scmp.ne.s32.totalorder %s190, %s206
      %p208 = scmp.eq.s32.totalorder %s58, 0
      %p209 = por %p207, %p208
      %s210 = ssub.s32 %s59, %s71
      %s211 = ssub.s32 %s60, %s67
      %s212 = sor.u32 %s210, %s211
      %p213 = scmp.eq.s32.totalorder %s212, 0
      %s215 = sadd.s32 %s214, 1
      %s216 = scalar_select %p213, %s214, %s215
      %p219 = pneg %p213
      %p220 = scmp.eq.s32.totalorder %s52, 5
      %p221 = por %p219, %p220
      %p222 = scmp.ne.s32.totalorder %s214, %s217
      %p223 = scmp.eq.s32.totalorder %s52, 0
      %p224 = por %p222, %p223
      %p225 = scmp.ne.s32.totalorder %s214, %s217
      %p226 = scmp.eq.s32.totalorder %s57, 5
      %p227 = por %p225, %p226
      %p228 = scmp.ne.s32.totalorder %s217, %s218
      %p229 = scmp.eq.s32.totalorder %s57, 0
      %p230 = por %p228, %p229
      %p231 = scmp.ne.s32.totalorder %s217, %s218
      %p232 = scmp.eq.s32.totalorder %s58, 5
      %p233 = por %p231, %p232
      %p235 = scmp.ne.s32.totalorder %s218, %s234
      %p236 = scmp.eq.s32.totalorder %s58, 0
      %p237 = por %p235, %p236
      %s238 = ssub.s32 %s59, %s71
      %s239 = ssub.s32 %s60, %s67
      %s240 = sor.u32 %s238, %s239
      %p241 = scmp.eq.s32.totalorder %s240, 0
      %s243 = sadd.s32 %s242, 1
      %s244 = scalar_select %p241, %s242, %s243
      %p247 = pneg %p241
      %p248 = scmp.eq.s32.totalorder %s52, 5
      %p249 = por %p247, %p248
      %p250 = scmp.ne.s32.totalorder %s242, %s245
      %p251 = scmp.eq.s32.totalorder %s52, 0
      %p252 = por %p250, %p251
      %p253 = scmp.ne.s32.totalorder %s242, %s245
      %p254 = scmp.eq.s32.totalorder %s57, 5
      %p255 = por %p253, %p254
      %p256 = scmp.ne.s32.totalorder %s245, %s246
      %p257 = scmp.eq.s32.totalorder %s57, 0
      %p258 = por %p256, %p257
      %p259 = scmp.ne.s32.totalorder %s245, %s246
      %p260 = scmp.eq.s32.totalorder %s58, 5
      %p261 = por %p259, %p260
      %p263 = scmp.ne.s32.totalorder %s246, %s262
      %p264 = scmp.eq.s32.totalorder %s58, 0
      %p265 = por %p263, %p264
      %s266 = ssub.s32 %s60, %s67
      %p267 = scmp.eq.s32.totalorder %s266, 0
      %s269 = sadd.s32 %s268, 1
      %s270 = scalar_select %p267, %s268, %s269
      %p273 = pneg %p267
      %p274 = scmp.eq.s32.totalorder %s52, 5
      %p275 = por %p273, %p274
      %p276 = scmp.ne.s32.totalorder %s268, %s271
      %p277 = scmp.eq.s32.totalorder %s52, 0
      %p278 = por %p276, %p277
      %p279 = scmp.ne.s32.totalorder %s268, %s271
      %p280 = scmp.eq.s32.totalorder %s57, 5
      %p281 = por %p279, %p280
      %p282 = scmp.ne.s32.totalorder %s271, %s272
      %p283 = scmp.eq.s32.totalorder %s57, 0
      %p284 = por %p282, %p283
      %p285 = scmp.ne.s32.totalorder %s271, %s272
      %p286 = scmp.eq.s32.totalorder %s58, 5
      %p287 = por %p285, %p286
      %p289 = scmp.ne.s32.totalorder %s272, %s288
      %p290 = scmp.eq.s32.totalorder %s58, 0
      %p291 = por %p289, %p290
      %s292 = ssub.s32 %s60, %s67
      %p293 = scmp.eq.s32.totalorder %s292, 0
      %s295 = sadd.s32 %s294, 1
      %s296 = scalar_select %p293, %s294, %s295
      %p299 = pneg %p293
      %p300 = scmp.eq.s32.totalorder %s52, 5
      %p301 = por %p299, %p300
      %p302 = scmp.ne.s32.totalorder %s294, %s297
      %p303 = scmp.eq.s32.totalorder %s52, 0
      %p304 = por %p302, %p303
      %p305 = scmp.ne.s32.totalorder %s294, %s297
      %p306 = scmp.eq.s32.totalorder %s57, 5
      %p307 = por %p305, %p306
      %p308 = scmp.ne.s32.totalorder %s297, %s298
      %p309 = scmp.eq.s32.totalorder %s57, 0
      %p310 = por %p308, %p309
      %p311 = scmp.ne.s32.totalorder %s297, %s298
      %p312 = scmp.eq.s32.totalorder %s58, 5
      %p313 = por %p311, %p312
      %p315 = scmp.ne.s32.totalorder %s298, %s314
      %p316 = scmp.eq.s32.totalorder %s58, 0
      %p317 = por %p315, %p316
      %s318 = ssub.s32 %s60, %s67
      %p319 = scmp.eq.s32.totalorder %s318, 0
      %s321 = sadd.s32 %s320, 1
      %s322 = scalar_select %p319, %s320, %s321
      %p325 = pneg %p319
      %p326 = scmp.eq.s32.totalorder %s52, 5
      %p327 = por %p325, %p326
      %p328 = scmp.ne.s32.totalorder %s320, %s323
      %p329 = scmp.eq.s32.totalorder %s52, 0
      %p330 = por %p328, %p329
      %p331 = scmp.ne.s32.totalorder %s320, %s323
      %p332 = scmp.eq.s32.totalorder %s57, 5
      %p333 = por %p331, %p332
      %p334 = scmp.ne.s32.totalorder %s323, %s324
      %p335 = scmp.eq.s32.totalorder %s57, 0
      %p336 = por %p334, %p335
      %p337 = scmp.ne.s32.totalorder %s323, %s324
      %p338 = scmp.eq.s32.totalorder %s58, 5
      %p339 = por %p337, %p338
      %p341 = scmp.ne.s32.totalorder %s324, %s340
      %p342 = scmp.eq.s32.totalorder %s58, 0
      %p343 = por %p341, %p342
      %s344 = ssub.s32 %s60, %s67
      %p345 = scmp.eq.s32.totalorder %s344, 0
      %s347 = sadd.s32 %s346, 1
      %s348 = scalar_select %p345, %s346, %s347
      %p351 = pneg %p345
      %p352 = scmp.eq.s32.totalorder %s52, 5
      %p353 = por %p351, %p352
      %p354 = scmp.ne.s32.totalorder %s346, %s349
      %p355 = scmp.eq.s32.totalorder %s52, 0
      %p356 = por %p354, %p355
      %p357 = scmp.ne.s32.totalorder %s346, %s349
      %p358 = scmp.eq.s32.totalorder %s57, 5
      %p359 = por %p357, %p358
      %p360 = scmp.ne.s32.totalorder %s349, %s350
      %p361 = scmp.eq.s32.totalorder %s57, 0
      %p362 = por %p360, %p361
      %p363 = scmp.ne.s32.totalorder %s349, %s350
      %p364 = scmp.eq.s32.totalorder %s58, 5
      %p365 = por %p363, %p364
      %p367 = scmp.ne.s32.totalorder %s350, %s366
      %p368 = scmp.eq.s32.totalorder %s58, 0
      %p369 = por %p367, %p368
      %s370 = ssub.s32 %s60, %s67
      %p371 = scmp.eq.s32.totalorder %s370, 0
      %s373 = sadd.s32 %s372, 1
      %s374 = scalar_select %p371, %s372, %s373
      %p377 = pneg %p371
      %p378 = scmp.eq.s32.totalorder %s52, 5
      %p379 = por %p377, %p378
      %p380 = scmp.ne.s32.totalorder %s372, %s375
      %p381 = scmp.eq.s32.totalorder %s52, 0
      %p382 = por %p380, %p381
      %p383 = scmp.ne.s32.totalorder %s372, %s375
      %p384 = scmp.eq.s32.totalorder %s57, 5
      %p385 = por %p383, %p384
      %p386 = scmp.ne.s32.totalorder %s375, %s376
      %p387 = scmp.eq.s32.totalorder %s57, 0
      %p388 = por %p386, %p387
      %p389 = scmp.ne.s32.totalorder %s375, %s376
      %p390 = scmp.eq.s32.totalorder %s58, 5
      %p391 = por %p389, %p390
      %p393 = scmp.ne.s32.totalorder %s376, %s392
      %p394 = scmp.eq.s32.totalorder %s58, 0
      %p395 = por %p393, %p394
      %s396 = ssub.s32 %s59, %s71
      %p397 = scmp.eq.s32.totalorder %s396, 0
      %s399 = sadd.s32 %s398, 1
      %s400 = scalar_select %p397, %s398, %s399
      %p403 = pneg %p397
      %p404 = scmp.eq.s32.totalorder %s52, 5
      %p405 = por %p403, %p404
      %p406 = scmp.ne.s32.totalorder %s398, %s401
      %p407 = scmp.eq.s32.totalorder %s52, 0
      %p408 = por %p406, %p407
      %p409 = scmp.ne.s32.totalorder %s398, %s401
      %p410 = scmp.eq.s32.totalorder %s57, 5
      %p411 = por %p409, %p410
      %p412 = scmp.ne.s32.totalorder %s401, %s402
      %p413 = scmp.eq.s32.totalorder %s57, 0
      %p414 = por %p412, %p413
      %p415 = scmp.ne.s32.totalorder %s401, %s402
      %p416 = scmp.eq.s32.totalorder %s58, 5
      %p417 = por %p415, %p416
      %p419 = scmp.ne.s32.totalorder %s402, %s418
      %p420 = scmp.eq.s32.totalorder %s58, 0
      %p421 = por %p419, %p420
      %s422 = ssub.s32 %s59, %s71
      %s423 = ssub.s32 %s60, %s67
      %s424 = sor.u32 %s422, %s423
      %p425 = scmp.eq.s32.totalorder %s424, 0
      %s427 = sadd.s32 %s426, 1
      %s428 = scalar_select %p425, %s426, %s427
      %p431 = pneg %p425
      %p432 = scmp.eq.s32.totalorder %s52, 5
      %p433 = por %p431, %p432
      %p434 = scmp.ne.s32.totalorder %s426, %s429
      %p435 = scmp.eq.s32.totalorder %s52, 0
      %p436 = por %p434, %p435
      %p437 = scmp.ne.s32.totalorder %s426, %s429
      %p438 = scmp.eq.s32.totalorder %s57, 5
      %p439 = por %p437, %p438
      %p440 = scmp.ne.s32.totalorder %s429, %s430
      %p441 = scmp.eq.s32.totalorder %s57, 0
      %p442 = por %p440, %p441
      %p443 = scmp.ne.s32.totalorder %s429, %s430
      %p444 = scmp.eq.s32.totalorder %s58, 5
      %p445 = por %p443, %p444
      %p447 = scmp.ne.s32.totalorder %s430, %s446
      %p448 = scmp.eq.s32.totalorder %s58, 0
      %p449 = por %p447, %p448
      %s450 = ssub.s32 %s59, %s71
      %s451 = ssub.s32 %s60, %s67
      %s452 = sor.u32 %s450, %s451
      %p453 = scmp.eq.s32.totalorder %s452, 0
      %s455 = sadd.s32 %s454, 1
      %s456 = scalar_select %p453, %s454, %s455
      %p459 = pneg %p453
      %p460 = scmp.eq.s32.totalorder %s52, 5
      %p461 = por %p459, %p460
      %p462 = scmp.ne.s32.totalorder %s454, %s457
      %p463 = scmp.eq.s32.totalorder %s52, 0
      %p464 = por %p462, %p463
      %p465 = scmp.ne.s32.totalorder %s454, %s457
      %p466 = scmp.eq.s32.totalorder %s57, 5
      %p467 = por %p465, %p466
      %p468 = scmp.ne.s32.totalorder %s457, %s458
      %p469 = scmp.eq.s32.totalorder %s57, 0
      %p470 = por %p468, %p469
      %p471 = scmp.ne.s32.totalorder %s457, %s458
      %p472 = scmp.eq.s32.totalorder %s58, 5
      %p473 = por %p471, %p472
      %p475 = scmp.ne.s32.totalorder %s458, %s474
      %p476 = scmp.eq.s32.totalorder %s58, 0
      %p477 = por %p475, %p476
      %s478 = ssub.s32 %s59, %s71
      %s479 = ssub.s32 %s60, %s67
      %s480 = sor.u32 %s478, %s479
      %p481 = scmp.eq.s32.totalorder %s480, 0
      %s483 = sadd.s32 %s482, 1
      %s484 = scalar_select %p481, %s482, %s483
      %p487 = pneg %p481
      %p488 = scmp.eq.s32.totalorder %s52, 5
      %p489 = por %p487, %p488
      %p490 = scmp.ne.s32.totalorder %s482, %s485
      %p491 = scmp.eq.s32.totalorder %s52, 0
      %p492 = por %p490, %p491
      %p493 = scmp.ne.s32.totalorder %s482, %s485
      %p494 = scmp.eq.s32.totalorder %s57, 5
      %p495 = por %p493, %p494
      %p496 = scmp.ne.s32.totalorder %s485, %s486
      %p497 = scmp.eq.s32.totalorder %s57, 0
      %p498 = por %p496, %p497
      %p499 = scmp.ne.s32.totalorder %s485, %s486
      %p500 = scmp.eq.s32.totalorder %s58, 5
      %p501 = por %p499, %p500
      %p503 = scmp.ne.s32.totalorder %s486, %s502
      %p504 = scmp.eq.s32.totalorder %s58, 0
      %p505 = por %p503, %p504
      %s506 = ssub.s32 %s59, %s71
      %s507 = ssub.s32 %s60, %s67
      %s508 = sor.u32 %s506, %s507
      %p509 = scmp.eq.s32.totalorder %s508, 0
      %s511 = sadd.s32 %s510, 1
      %s512 = scalar_select %p509, %s510, %s511
      %p515 = pneg %p509
      %p516 = scmp.eq.s32.totalorder %s52, 5
      %p517 = por %p515, %p516
      %p518 = scmp.ne.s32.totalorder %s510, %s513
      %p519 = scmp.eq.s32.totalorder %s52, 0
      %p520 = por %p518, %p519
      %p521 = scmp.ne.s32.totalorder %s510, %s513
      %p522 = scmp.eq.s32.totalorder %s57, 5
      %p523 = por %p521, %p522
      %p524 = scmp.ne.s32.totalorder %s513, %s514
      %p525 = scmp.eq.s32.totalorder %s57, 0
      %p526 = por %p524, %p525
      %p527 = scmp.ne.s32.totalorder %s513, %s514
      %p528 = scmp.eq.s32.totalorder %s58, 5
      %p529 = por %p527, %p528
      %p531 = scmp.ne.s32.totalorder %s514, %s530
      %p532 = scmp.eq.s32.totalorder %s58, 0
      %p533 = por %p531, %p532
      %s534 = ssub.s32 %s59, %s71
      %s535 = ssub.s32 %s60, %s67
      %s536 = sor.u32 %s534, %s535
      %p537 = scmp.eq.s32.totalorder %s536, 0
      %s539 = sadd.s32 %s538, 1
      %s540 = scalar_select %p537, %s538, %s539
      %p543 = pneg %p537
      %p544 = scmp.eq.s32.totalorder %s52, 5
      %p545 = por %p543, %p544
      %p546 = scmp.ne.s32.totalorder %s538, %s541
      %p547 = scmp.eq.s32.totalorder %s52, 0
      %p548 = por %p546, %p547
      %p549 = scmp.ne.s32.totalorder %s538, %s541
      %p550 = scmp.eq.s32.totalorder %s57, 5
      %p551 = por %p549, %p550
      %p552 = scmp.ne.s32.totalorder %s541, %s542
      %p553 = scmp.eq.s32.totalorder %s57, 0
      %p554 = por %p552, %p553
      %p555 = scmp.ne.s32.totalorder %s541, %s542
      %p556 = scmp.eq.s32.totalorder %s58, 5
      %p557 = por %p555, %p556
      %p559 = scmp.ne.s32.totalorder %s542, %s558
      %p560 = scmp.eq.s32.totalorder %s58, 0
      %p561 = por %p559, %p560
      %s562 = ssub.s32 %s59, %s71
      %s563 = ssub.s32 %s60, %s67
      %s564 = sor.u32 %s562, %s563
      %p565 = scmp.eq.s32.totalorder %s564, 0
      %s567 = sadd.s32 %s566, 1
      %s568 = scalar_select %p565, %s566, %s567
      %p571 = pneg %p565
      %p572 = scmp.eq.s32.totalorder %s52, 5
      %p573 = por %p571, %p572
      %p574 = scmp.ne.s32.totalorder %s566, %s569
      %p575 = scmp.eq.s32.totalorder %s52, 0
      %p576 = por %p574, %p575
      %p577 = scmp.ne.s32.totalorder %s566, %s569
      %p578 = scmp.eq.s32.totalorder %s57, 5
      %p579 = por %p577, %p578
      %p580 = scmp.ne.s32.totalorder %s569, %s570
      %p581 = scmp.eq.s32.totalorder %s57, 0
      %p582 = por %p580, %p581
      %p583 = scmp.ne.s32.totalorder %s569, %s570
      %p584 = scmp.eq.s32.totalorder %s58, 5
      %p585 = por %p583, %p584
      %p587 = scmp.ne.s32.totalorder %s570, %s586
      %p588 = scmp.eq.s32.totalorder %s58, 0
      %p589 = por %p587, %p588
      %p590 = scmp.le.s32.totalorder 1, %s52
      %p591 = scmp.lt.s32.totalorder %s52, 7
      %p592 = pnand %p590, %p591
      %p593 = pneg %p592
      // Predicated region
      $region9: #{tpu_custom_call.1} parent=5 // pred_check
        _
      $region10: #{tpu_custom_call.1} parent=5 // pred_check_branch
        %595 = sbr.rel (%p592) target = $region12
      $region11: #{tpu_custom_call.1} parent=5 // pred_region
        %s596 = ssub.s32 %s52, 1
      $region12: #{tpu_custom_call.1} parent=5 // pred_fallthru
        _
      %p597 = scmp.lt.s32.totalorder %s52, 6
      // Predicated region
      $region13: #{tpu_custom_call.1} parent=5 // pred_check
        %p598 = pneg %p597
      $region14: #{tpu_custom_call.1} parent=5 // pred_check_branch
        %600 = sbr.rel (%p598) target = $region16
      $region15: #{tpu_custom_call.1} parent=5 // pred_region
        // Predicated region
        $region17: #{tpu_custom_call.1} parent=15 // pred_check
          %p601 = pneg %p84
        $region18: #{tpu_custom_call.1} parent=15 // pred_check_branch
          %603 = sbr.rel (%p601) target = $region20
        $region19: #{tpu_custom_call.1} parent=15 // pred_region
          %s604 = sand.u32 %s74, 1
          %s605 = scalar_lea.sflag [#allocation4], %s604
          %s606 = sand.u32 %s74, 1
          %s607 = smul.addr %s606, 16
          %s608 = scalar_lea.vmem [#allocation3], %s607
          %s610 = ssub.s32 256, 256
          %611 = vsyncadd %s605, %s610
          %s612 = smul.addr %s59, 2
          %s613 = smul.addr %s612, 128
          %s614 = scalar_lea.hbm %s0, %s613
          %s615 = sshll.u32 %s608, 4
          %s616 = int_to_ptr.vmem [resolvable:$true] %s615
          %621 = dma.hbm_to_vmem [thread:$0]  %s614, 256, %s616, %s605, 128, 128, 8
        $region20: #{tpu_custom_call.1} parent=15 // pred_fallthru
          _
        // Predicated region
        $region21: #{tpu_custom_call.1} parent=15 // pred_check
          %p622 = pneg %p112
        $region22: #{tpu_custom_call.1} parent=15 // pred_check_branch
          %624 = sbr.rel (%p622) target = $region24
        $region23: #{tpu_custom_call.1} parent=15 // pred_region
          %s625 = sand.u32 %s52, 1
          %s626 = scalar_lea.sflag [#allocation7], %s625
          %s627 = sand.u32 %s102, 1
          %s628 = smul.addr %s627, 2
          %s629 = scalar_lea.vmem [#allocation6], %s628
          %s631 = ssub.s32 32, 32
          %632 = vsyncadd %s626, %s631
          %s633 = smul.addr %s59, 3
          %s634 = sadd.s32 %s60, %s633
          %s635 = smul.addr %s634, 32
          %s636 = scalar_lea.hbm %s1, %s635
          %s638 = sshll.u32 %s629, 4
          %s639 = int_to_ptr.vmem [resolvable:$true] %s638
          %641 = dma.hbm_to_vmem [thread:$0]  %s636, 32, %s639, %s626
        $region24: #{tpu_custom_call.1} parent=15 // pred_fallthru
          _
        // Predicated region
        $region25: #{tpu_custom_call.1} parent=15 // pred_check
          %p642 = pneg %p140
        $region26: #{tpu_custom_call.1} parent=15 // pred_check_branch
          %644 = sbr.rel (%p642) target = $region28
        $region27: #{tpu_custom_call.1} parent=15 // pred_region
          %s645 = sand.u32 %s52, 1
          %s646 = scalar_lea.sflag [#allocation7], %s645
          %s647 = sand.u32 %s130, 1
          %s648 = smul.addr %s647, 2
          %s649 = scalar_lea.vmem [#allocation8], %s648
          %s651 = ssub.s32 32, 32
          %652 = vsyncadd %s646, %s651
          %s653 = smul.addr %s59, 3
          %s654 = sadd.s32 %s60, %s653
          %s655 = smul.addr %s654, 32
          %s656 = scalar_lea.hbm %s2, %s655
          %s658 = sshll.u32 %s649, 4
          %s659 = int_to_ptr.vmem [resolvable:$true] %s658
          %661 = dma.hbm_to_vmem [thread:$0]  %s656, 32, %s659, %s646
        $region28: #{tpu_custom_call.1} parent=15 // pred_fallthru
          _
        // Predicated region
        $region29: #{tpu_custom_call.1} parent=15 // pred_check
          %p662 = pneg %p168
        $region30: #{tpu_custom_call.1} parent=15 // pred_check_branch
          %664 = sbr.rel (%p662) target = $region32
        $region31: #{tpu_custom_call.1} parent=15 // pred_region
          %p665 = scmp.lt.s32.totalorder %s59, 1
          %s666 = scalar_select %p665, %s59, 1
          %p667 = scmp.lt.s32.totalorder %s60, 2
          %s668 = scalar_select %p667, %s60, 2
          %s669 = smul.addr %s666, 3
          %s670 = sadd.s32 %s668, %s669
          %s671 = smul.addr %s670, 8
          %s672 = scalar_lea.vmem %s3, %s671
        $region32: #{tpu_custom_call.1} parent=15 // pred_fallthru
          _
        // Predicated region
        $region33: #{tpu_custom_call.1} parent=15 // pred_check
          %p673 = pneg %p196
        $region34: #{tpu_custom_call.1} parent=15 // pred_check_branch
          %675 = sbr.rel (%p673) target = $region36
        $region35: #{tpu_custom_call.1} parent=15 // pred_region
          %s676 = sand.u32 %s52, 1
          %s677 = scalar_lea.sflag [#allocation10], %s676
          %s678 = sand.u32 %s186, 1
          %s679 = smul.addr %s678, 2
          %s680 = scalar_lea.vmem [#allocation9], %s679
          %s682 = ssub.s32 32, 32
          %683 = vsyncadd %s677, %s682
          %s684 = smul.addr %s59, 3
          %s685 = sadd.s32 %s60, %s684
          %s686 = smul.addr %s685, 32
          %s687 = scalar_lea.hbm %s4, %s686
          %s689 = sshll.u32 %s680, 4
          %s690 = int_to_ptr.vmem [resolvable:$true] %s689
          %692 = dma.hbm_to_vmem [thread:$0]  %s687, 32, %s690, %s677
        $region36: #{tpu_custom_call.1} parent=15 // pred_fallthru
          _
        // Predicated region
        $region37: #{tpu_custom_call.1} parent=15 // pred_check
          %p693 = pneg %p224
        $region38: #{tpu_custom_call.1} parent=15 // pred_check_branch
          %695 = sbr.rel (%p693) target = $region40
        $region39: #{tpu_custom_call.1} parent=15 // pred_region
          %p696 = scmp.lt.s32.totalorder %s59, 1
          %s697 = scalar_select %p696, %s59, 1
          %p698 = scmp.lt.s32.totalorder %s60, 2
          %s699 = scalar_select %p698, %s60, 2
          %s700 = smul.addr %s699, 2
          %s701 = smul.addr %s697, 6
          %s702 = sadd.s32 %s700, %s701
          %s703 = smul.addr %s702, 8
          %s704 = scalar_lea.vmem %s5, %s703
        $region40: #{tpu_custom_call.1} parent=15 // pred_fallthru
          _
        // Predicated region
        $region41: #{tpu_custom_call.1} parent=15 // pred_check
          %p705 = pneg %p252
        $region42: #{tpu_custom_call.1} parent=15 // pred_check_branch
          %707 = sbr.rel (%p705) target = $region44
        $region43: #{tpu_custom_call.1} parent=15 // pred_region
          %s708 = sand.u32 %s52, 1
          %s709 = scalar_lea.sflag [#allocation10], %s708
          %s710 = sand.u32 %s242, 1
          %s711 = smul.addr %s710, 2
          %s712 = scalar_lea.vmem [#allocation11], %s711
          %s714 = ssub.s32 32, 32
          %715 = vsyncadd %s709, %s714
          %s716 = smul.addr %s59, 3
          %s717 = sadd.s32 %s60, %s716
          %s718 = smul.addr %s717, 32
          %s719 = scalar_lea.hbm %s6, %s718
          %s721 = sshll.u32 %s712, 4
          %s722 = int_to_ptr.vmem [resolvable:$true] %s721
          %724 = dma.hbm_to_vmem [thread:$0]  %s719, 32, %s722, %s709
        $region44: #{tpu_custom_call.1} parent=15 // pred_fallthru
          _
        // Predicated region
        $region45: #{tpu_custom_call.1} parent=15 // pred_check
          %p725 = pneg %p278
        $region46: #{tpu_custom_call.1} parent=15 // pred_check_branch
          %727 = sbr.rel (%p725) target = $region48
        $region47: #{tpu_custom_call.1} parent=15 // pred_region
          #allocation28 [shape = 'u32[6]{0}', space=smem, size = 0x18, scoped, tag = 'DMA stride descriptor']
          %s728 = sand.u32 %s52, 1
          %s729 = scalar_lea.sflag [#allocation13], %s728
          %s730 = sand.u32 %s268, 1
          %s731 = smul.addr %s730, 1152
          %s732 = scalar_lea.vmem [#allocation12], %s731
          %s734 = ssub.s32 18432, 18432
          %735 = vsyncadd %s729, %s734
          %s736 = smul.addr %s60, 48
          %s737 = smul.addr %s736, 128
          %s738 = scalar_lea.hbm %s7, %s737
          %s740 = sshll.u32 1, 14
          %s741 = sxor.u32 4294967295, %s740
          %s743 = sld [smem:[#allocation0]]
          %s744 = sadd.s32 2, %s743
          %s746 = sshll.u32 7, 26
          %s747 = sxor.u32 4294967295, %s746
          %s748 = sand.u32 0, %s747
          %s749 = sshll.u32 %s744, 26
          %s750 = sor.u32 %s748, %s749
          %s751 = sshll.u32 %s732, 4
          %s752 = int_to_ptr.vmem [resolvable:$true] %s751
          %758 = sst [smem:[#allocation28]] 18432
          %s759 = scalar_lea.smem [#allocation28], 1
          %760 = sst [smem:[%s759]] 6144
          %s761 = scalar_lea.smem [#allocation28], 2
          %762 = sst [smem:[%s761]] 48
          %s763 = scalar_lea.smem [#allocation28], 3
          %764 = sst [smem:[%s763]] 128
          %s765 = scalar_lea.smem [#allocation28], 4
          %766 = sst [smem:[%s765]] 128
          %s767 = scalar_lea.smem [#allocation28], 5
          %768 = sst [smem:[%s767]] 8
          %770 = dma.general %s738, 18432, %s752, %s729, [#allocation27], [#allocation28], %s750, 0
        $region48: #{tpu_custom_call.1} parent=15 // pred_fallthru
          _
        // Predicated region
        $region49: #{tpu_custom_call.1} parent=15 // pred_check
          %p771 = pneg %p304
        $region50: #{tpu_custom_call.1} parent=15 // pred_check_branch
          %773 = sbr.rel (%p771) target = $region52
        $region51: #{tpu_custom_call.1} parent=15 // pred_region
          %s774 = sand.u32 %s52, 1
          %s775 = scalar_lea.sflag [#allocation13], %s774
          %s776 = sand.u32 %s294, 1
          %s777 = smul.addr %s776, 3
          %s778 = scalar_lea.vmem [#allocation14], %s777
          %s780 = ssub.s32 48, 48
          %781 = vsyncadd %s775, %s780
          %s782 = smul.addr %s60, 16
          %s783 = scalar_lea.hbm %s8, %s782
          %s784 = sshll.u32 %s778, 4
          %s785 = int_to_ptr.vmem [resolvable:$true] %s784
          %790 = dma.hbm_to_vmem [thread:$0]  %s783, 48, %s785, %s775, 48, 16, 1
        $region52: #{tpu_custom_call.1} parent=15 // pred_fallthru
          _
        // Predicated region
        $region53: #{tpu_custom_call.1} parent=15 // pred_check
          %p791 = pneg %p330
        $region54: #{tpu_custom_call.1} parent=15 // pred_check_branch
          %793 = sbr.rel (%p791) target = $region56
        $region55: #{tpu_custom_call.1} parent=15 // pred_region
          #allocation30 [shape = 'u32[6]{0}', space=smem, size = 0x18, scoped, tag = 'DMA stride descriptor']
          %s794 = sand.u32 %s52, 1
          %s795 = scalar_lea.sflag [#allocation16], %s794
          %s796 = sand.u32 %s320, 1
          %s797 = smul.addr %s796, 1152
          %s798 = scalar_lea.vmem [#allocation15], %s797
          %s800 = ssub.s32 18432, 18432
          %801 = vsyncadd %s795, %s800
          %s802 = smul.addr %s60, 48
          %s803 = smul.addr %s802, 128
          %s804 = scalar_lea.hbm %s9, %s803
          %s806 = sshll.u32 1, 14
          %s807 = sxor.u32 4294967295, %s806
          %s809 = sld [smem:[#allocation0]]
          %s810 = sadd.s32 2, %s809
          %s812 = sshll.u32 7, 26
          %s813 = sxor.u32 4294967295, %s812
          %s814 = sand.u32 0, %s813
          %s815 = sshll.u32 %s810, 26
          %s816 = sor.u32 %s814, %s815
          %s817 = sshll.u32 %s798, 4
          %s818 = int_to_ptr.vmem [resolvable:$true] %s817
          %824 = sst [smem:[#allocation30]] 18432
          %s825 = scalar_lea.smem [#allocation30], 1
          %826 = sst [smem:[%s825]] 6144
          %s827 = scalar_lea.smem [#allocation30], 2
          %828 = sst [smem:[%s827]] 48
          %s829 = scalar_lea.smem [#allocation30], 3
          %830 = sst [smem:[%s829]] 128
          %s831 = scalar_lea.smem [#allocation30], 4
          %832 = sst [smem:[%s831]] 128
          %s833 = scalar_lea.smem [#allocation30], 5
          %834 = sst [smem:[%s833]] 8
          %836 = dma.general %s804, 18432, %s818, %s795, [#allocation29], [#allocation30], %s816, 0
        $region56: #{tpu_custom_call.1} parent=15 // pred_fallthru
          _
        // Predicated region
        $region57: #{tpu_custom_call.1} parent=15 // pred_check
          %p837 = pneg %p356
        $region58: #{tpu_custom_call.1} parent=15 // pred_check_branch
          %839 = sbr.rel (%p837) target = $region60
        $region59: #{tpu_custom_call.1} parent=15 // pred_region
          %s840 = sand.u32 %s52, 1
          %s841 = scalar_lea.sflag [#allocation16], %s840
          %s842 = sand.u32 %s346, 1
          %s843 = smul.addr %s842, 3
          %s844 = scalar_lea.vmem [#allocation17], %s843
          %s846 = ssub.s32 48, 48
          %847 = vsyncadd %s841, %s846
          %s848 = smul.addr %s60, 16
          %s849 = scalar_lea.hbm %s10, %s848
          %s850 = sshll.u32 %s844, 4
          %s851 = int_to_ptr.vmem [resolvable:$true] %s850
          %856 = dma.hbm_to_vmem [thread:$0]  %s849, 48, %s851, %s841, 48, 16, 1
        $region60: #{tpu_custom_call.1} parent=15 // pred_fallthru
          _
        // Predicated region
        $region61: #{tpu_custom_call.1} parent=15 // pred_check
          %p857 = pneg %p382
        $region62: #{tpu_custom_call.1} parent=15 // pred_check_branch
          %859 = sbr.rel (%p857) target = $region64
        $region63: #{tpu_custom_call.1} parent=15 // pred_region
          %s860 = sand.u32 %s372, 1
          %s861 = scalar_lea.sflag [#allocation19], %s860
          %s862 = sand.u32 %s372, 1
          %s863 = smul.addr %s862, 128
          %s864 = scalar_lea.vmem [#allocation18], %s863
          %s866 = ssub.s32 2048, 2048
          %867 = vsyncadd %s861, %s866
          %s868 = smul.addr %s60, 16
          %s869 = smul.addr %s868, 128
          %s870 = scalar_lea.hbm %s11, %s869
          %s871 = sshll.u32 %s864, 4
          %s872 = int_to_ptr.vmem [resolvable:$true] %s871
          %877 = dma.hbm_to_vmem [thread:$0]  %s870, 2048, %s872, %s861, 128, 128, 8
        $region64: #{tpu_custom_call.1} parent=15 // pred_fallthru
          _
      $region16: #{tpu_custom_call.1} parent=5 // pred_fallthru
        _
      %p878 = scmp.le.s32.totalorder 1, %s52
      %p879 = scmp.lt.s32.totalorder %s52, 7
      %p880 = pnand %p878, %p879
      %p881 = pneg %p880
      // Predicated region
      $region65: #{tpu_custom_call.1} parent=5 // pred_check
        _
      $region66: #{tpu_custom_call.1} parent=5 // pred_check_branch
        %883 = sbr.rel (%p880) target = $region68
      $region67: #{tpu_custom_call.1} parent=5 // pred_region
        %s884 = ssub.s32 %s52, 1
        %s885 = sand.u32 %s77, 1
        %s886 = scalar_lea.sflag [#allocation4], %s885
        %s887 = sand.u32 %s77, 1
        %s888 = smul.addr %s887, 16
        %s889 = scalar_lea.vmem [#allocation3], %s888
        // Predicated region
        $region69: #{tpu_custom_call.1} parent=67 // pred_check
          %p890 = pneg %p90
        $region70: #{tpu_custom_call.1} parent=67 // pred_check_branch
          %892 = sbr.rel (%p890) target = $region72
        $region71: #{tpu_custom_call.1} parent=67 // pred_region
          %893 = dma.done %s886, 256
        $region72: #{tpu_custom_call.1} parent=67 // pred_fallthru
          _
        %s894 = sand.u32 %s57, 1
        %s895 = scalar_lea.sflag [#allocation7], %s894
        %s896 = sand.u32 %s105, 1
        %s897 = smul.addr %s896, 2
        %s898 = scalar_lea.vmem [#allocation6], %s897
        // Predicated region
        $region73: #{tpu_custom_call.1} parent=67 // pred_check
          %p899 = pneg %p118
        $region74: #{tpu_custom_call.1} parent=67 // pred_check_branch
          %901 = sbr.rel (%p899) target = $region76
        $region75: #{tpu_custom_call.1} parent=67 // pred_region
          %902 = dma.done %s895, 32
        $region76: #{tpu_custom_call.1} parent=67 // pred_fallthru
          _
        %s903 = sand.u32 %s57, 1
        %s904 = scalar_lea.sflag [#allocation7], %s903
        %s905 = sand.u32 %s133, 1
        %s906 = smul.addr %s905, 2
        %s907 = scalar_lea.vmem [#allocation8], %s906
        // Predicated region
        $region77: #{tpu_custom_call.1} parent=67 // pred_check
          %p908 = pneg %p146
        $region78: #{tpu_custom_call.1} parent=67 // pred_check_branch
          %910 = sbr.rel (%p908) target = $region80
        $region79: #{tpu_custom_call.1} parent=67 // pred_region
          %911 = dma.done %s904, 32
        $region80: #{tpu_custom_call.1} parent=67 // pred_fallthru
          _
        %s912 = sand.u32 %s57, 1
        %s913 = scalar_lea.sflag [#allocation10], %s912
        %s914 = sand.u32 %s189, 1
        %s915 = smul.addr %s914, 2
        %s916 = scalar_lea.vmem [#allocation9], %s915
        // Predicated region
        $region81: #{tpu_custom_call.1} parent=67 // pred_check
          %p917 = pneg %p202
        $region82: #{tpu_custom_call.1} parent=67 // pred_check_branch
          %919 = sbr.rel (%p917) target = $region84
        $region83: #{tpu_custom_call.1} parent=67 // pred_region
          %920 = dma.done %s913, 32
        $region84: #{tpu_custom_call.1} parent=67 // pred_fallthru
          _
        %s921 = sand.u32 %s57, 1
        %s922 = scalar_lea.sflag [#allocation10], %s921
        %s923 = sand.u32 %s245, 1
        %s924 = smul.addr %s923, 2
        %s925 = scalar_lea.vmem [#allocation11], %s924
        // Predicated region
        $region85: #{tpu_custom_call.1} parent=67 // pred_check
          %p926 = pneg %p258
        $region86: #{tpu_custom_call.1} parent=67 // pred_check_branch
          %928 = sbr.rel (%p926) target = $region88
        $region87: #{tpu_custom_call.1} parent=67 // pred_region
          %929 = dma.done %s922, 32
        $region88: #{tpu_custom_call.1} parent=67 // pred_fallthru
          _
        %s930 = sand.u32 %s57, 1
        %s931 = scalar_lea.sflag [#allocation13], %s930
        %s932 = sand.u32 %s271, 1
        %s933 = smul.addr %s932, 1152
        %s934 = scalar_lea.vmem [#allocation12], %s933
        // Predicated region
        $region89: #{tpu_custom_call.1} parent=67 // pred_check
          %p935 = pneg %p284
        $region90: #{tpu_custom_call.1} parent=67 // pred_check_branch
          %937 = sbr.rel (%p935) target = $region92
        $region91: #{tpu_custom_call.1} parent=67 // pred_region
          %938 = dma.done %s931, 18432
        $region92: #{tpu_custom_call.1} parent=67 // pred_fallthru
          _
        %s939 = sand.u32 %s57, 1
        %s940 = scalar_lea.sflag [#allocation13], %s939
        %s941 = sand.u32 %s297, 1
        %s942 = smul.addr %s941, 3
        %s943 = scalar_lea.vmem [#allocation14], %s942
        // Predicated region
        $region93: #{tpu_custom_call.1} parent=67 // pred_check
          %p944 = pneg %p310
        $region94: #{tpu_custom_call.1} parent=67 // pred_check_branch
          %946 = sbr.rel (%p944) target = $region96
        $region95: #{tpu_custom_call.1} parent=67 // pred_region
          %947 = dma.done %s940, 48
        $region96: #{tpu_custom_call.1} parent=67 // pred_fallthru
          _
        %s948 = sand.u32 %s57, 1
        %s949 = scalar_lea.sflag [#allocation16], %s948
        %s950 = sand.u32 %s323, 1
        %s951 = smul.addr %s950, 1152
        %s952 = scalar_lea.vmem [#allocation15], %s951
        // Predicated region
        $region97: #{tpu_custom_call.1} parent=67 // pred_check
          %p953 = pneg %p336
        $region98: #{tpu_custom_call.1} parent=67 // pred_check_branch
          %955 = sbr.rel (%p953) target = $region100
        $region99: #{tpu_custom_call.1} parent=67 // pred_region
          %956 = dma.done %s949, 18432
        $region100: #{tpu_custom_call.1} parent=67 // pred_fallthru
          _
        %s957 = sand.u32 %s57, 1
        %s958 = scalar_lea.sflag [#allocation16], %s957
        %s959 = sand.u32 %s349, 1
        %s960 = smul.addr %s959, 3
        %s961 = scalar_lea.vmem [#allocation17], %s960
        // Predicated region
        $region101: #{tpu_custom_call.1} parent=67 // pred_check
          %p962 = pneg %p362
        $region102: #{tpu_custom_call.1} parent=67 // pred_check_branch
          %964 = sbr.rel (%p962) target = $region104
        $region103: #{tpu_custom_call.1} parent=67 // pred_region
          %965 = dma.done %s958, 48
        $region104: #{tpu_custom_call.1} parent=67 // pred_fallthru
          _
        %s966 = sand.u32 %s375, 1
        %s967 = scalar_lea.sflag [#allocation19], %s966
        %s968 = sand.u32 %s375, 1
        %s969 = smul.addr %s968, 128
        %s970 = scalar_lea.vmem [#allocation18], %s969
        // Predicated region
        $region105: #{tpu_custom_call.1} parent=67 // pred_check
          %p971 = pneg %p388
        $region106: #{tpu_custom_call.1} parent=67 // pred_check_branch
          %973 = sbr.rel (%p971) target = $region108
        $region107: #{tpu_custom_call.1} parent=67 // pred_region
          %974 = dma.done %s967, 2048
        $region108: #{tpu_custom_call.1} parent=67 // pred_fallthru
          _
        %s975 = sand.u32 %s77, 1
        %s976 = scalar_lea.sflag [#allocation4], %s975
        %s977 = sand.u32 %s77, 1
        %s978 = smul.addr %s977, 16
        %s979 = scalar_lea.vmem [#allocation3], %s978
        %p980 = pneg %p90
        %p981 = pneg %p87
        %s982 = sand.u32 %s57, 1
        %s983 = scalar_lea.sflag [#allocation7], %s982
        %s984 = sand.u32 %s105, 1
        %s985 = smul.addr %s984, 2
        %s986 = scalar_lea.vmem [#allocation6], %s985
        %p987 = pneg %p118
        %p988 = pneg %p115
        %s989 = sand.u32 %s57, 1
        %s990 = scalar_lea.sflag [#allocation7], %s989
        %s991 = sand.u32 %s133, 1
        %s992 = smul.addr %s991, 2
        %s993 = scalar_lea.vmem [#allocation8], %s992
        %p994 = pneg %p146
        %p995 = pneg %p143
        %p996 = scmp.lt.s32.totalorder %s61, 1
        %s997 = scalar_select %p996, %s61, 1
        %p998 = scmp.lt.s32.totalorder %s62, 2
        %s999 = scalar_select %p998, %s62, 2
        %s1000 = smul.addr %s997, 3
        %s1001 = sadd.s32 %s999, %s1000
        %s1002 = smul.addr %s1001, 8
        %s1003 = scalar_lea.vmem %s3, %s1002
        %p1004 = pneg %p174
        %p1005 = pneg %p171
        %s1006 = sand.u32 %s57, 1
        %s1007 = scalar_lea.sflag [#allocation10], %s1006
        %s1008 = sand.u32 %s189, 1
        %s1009 = smul.addr %s1008, 2
        %s1010 = scalar_lea.vmem [#allocation9], %s1009
        %p1011 = pneg %p202
        %p1012 = pneg %p199
        %p1013 = scmp.lt.s32.totalorder %s61, 1
        %s1014 = scalar_select %p1013, %s61, 1
        %p1015 = scmp.lt.s32.totalorder %s62, 2
        %s1016 = scalar_select %p1015, %s62, 2
        %s1017 = smul.addr %s1016, 2
        %s1018 = smul.addr %s1014, 6
        %s1019 = sadd.s32 %s1017, %s1018
        %s1020 = smul.addr %s1019, 8
        %s1021 = scalar_lea.vmem %s5, %s1020
        %p1022 = pneg %p230
        %p1023 = pneg %p227
        %s1024 = sand.u32 %s57, 1
        %s1025 = scalar_lea.sflag [#allocation10], %s1024
        %s1026 = sand.u32 %s245, 1
        %s1027 = smul.addr %s1026, 2
        %s1028 = scalar_lea.vmem [#allocation11], %s1027
        %p1029 = pneg %p258
        %p1030 = pneg %p255
        %s1031 = sand.u32 %s57, 1
        %s1032 = scalar_lea.sflag [#allocation13], %s1031
        %s1033 = sand.u32 %s271, 1
        %s1034 = smul.addr %s1033, 1152
        %s1035 = scalar_lea.vmem [#allocation12], %s1034
        %p1036 = pneg %p284
        %p1037 = pneg %p281
        %s1038 = sand.u32 %s57, 1
        %s1039 = scalar_lea.sflag [#allocation13], %s1038
        %s1040 = sand.u32 %s297, 1
        %s1041 = smul.addr %s1040, 3
        %s1042 = scalar_lea.vmem [#allocation14], %s1041
        %p1043 = pneg %p310
        %p1044 = pneg %p307
        %s1045 = sand.u32 %s57, 1
        %s1046 = scalar_lea.sflag [#allocation16], %s1045
        %s1047 = sand.u32 %s323, 1
        %s1048 = smul.addr %s1047, 1152
        %s1049 = scalar_lea.vmem [#allocation15], %s1048
        %p1050 = pneg %p336
        %p1051 = pneg %p333
        %s1052 = sand.u32 %s57, 1
        %s1053 = scalar_lea.sflag [#allocation16], %s1052
        %s1054 = sand.u32 %s349, 1
        %s1055 = smul.addr %s1054, 3
        %s1056 = scalar_lea.vmem [#allocation17], %s1055
        %p1057 = pneg %p362
        %p1058 = pneg %p359
        %s1059 = sand.u32 %s375, 1
        %s1060 = scalar_lea.sflag [#allocation19], %s1059
        %s1061 = sand.u32 %s375, 1
        %s1062 = smul.addr %s1061, 128
        %s1063 = scalar_lea.vmem [#allocation18], %s1062
        %p1064 = pneg %p388
        %p1065 = pneg %p385
        %p1066 = pneg %p414
        %p1067 = pneg %p411
        %s1068 = sand.u32 %s401, 1
        %s1069 = scalar_lea.sflag [#allocation5], %s1068
        %s1070 = sand.u32 %s401, 1
        %s1071 = smul.addr %s1070, 16
        %s1072 = scalar_lea.vmem [#allocation20], %s1071
        %p1073 = pneg %p442
        %p1074 = pneg %p439
        %s1075 = sand.u32 %s57, 1
        %s1076 = scalar_lea.sflag [#allocation22], %s1075
        %s1077 = sand.u32 %s429, 1
        %s1078 = smul.addr %s1077, 2
        %s1079 = scalar_lea.vmem [#allocation21], %s1078
        %p1080 = pneg %p470
        %p1081 = pneg %p467
        %s1082 = sand.u32 %s57, 1
        %s1083 = scalar_lea.sflag [#allocation22], %s1082
        %s1084 = sand.u32 %s457, 1
        %s1085 = smul.addr %s1084, 2
        %s1086 = scalar_lea.vmem [#allocation23], %s1085
        %p1087 = pneg %p498
        %p1088 = pneg %p495
        %p1089 = scmp.lt.s32.totalorder %s61, 1
        %s1090 = scalar_select %p1089, %s61, 1
        %p1091 = scmp.lt.s32.totalorder %s62, 2
        %s1092 = scalar_select %p1091, %s62, 2
        %s1093 = smul.addr %s1090, 3
        %s1094 = sadd.s32 %s1092, %s1093
        %s1095 = smul.addr %s1094, 8
        %s1096 = scalar_lea.vmem %s15, %s1095
        %p1097 = pneg %p526
        %p1098 = pneg %p523
        %s1099 = sand.u32 %s57, 1
        %s1100 = scalar_lea.sflag [#allocation25], %s1099
        %s1101 = sand.u32 %s513, 1
        %s1102 = smul.addr %s1101, 2
        %s1103 = scalar_lea.vmem [#allocation24], %s1102
        %p1104 = pneg %p554
        %p1105 = pneg %p551
        %p1106 = scmp.lt.s32.totalorder %s61, 1
        %s1107 = scalar_select %p1106, %s61, 1
        %p1108 = scmp.lt.s32.totalorder %s62, 2
        %s1109 = scalar_select %p1108, %s62, 2
        %s1110 = smul.addr %s1109, 2
        %s1111 = smul.addr %s1107, 6
        %s1112 = sadd.s32 %s1110, %s1111
        %s1113 = smul.addr %s1112, 8
        %s1114 = scalar_lea.vmem %s17, %s1113
        %p1115 = pneg %p582
        %p1116 = pneg %p579
        %s1117 = sand.u32 %s57, 1
        %s1118 = scalar_lea.sflag [#allocation25], %s1117
        %s1119 = sand.u32 %s569, 1
        %s1120 = smul.addr %s1119, 2
        %s1121 = scalar_lea.vmem [#allocation26], %s1120
        %p1122 = scmp.lt.s32.totalorder %s61, 1
        %s1123 = scalar_select %p1122, %s61, 1
        %p1124 = scmp.lt.s32.totalorder %s62, 2
        %s1125 = scalar_select %p1124, %s62, 2
        %s1126 = smul.addr %s1123, 3
        %s1127 = sadd.s32 %s1125, %s1126
        %s1128 = smul.addr %s1127, 8
        %s1129 = scalar_lea.vmem %s3, %s1128
        %p1130 = scmp.lt.s32.totalorder %s61, 1
        %s1131 = scalar_select %p1130, %s61, 1
        %p1132 = scmp.lt.s32.totalorder %s62, 2
        %s1133 = scalar_select %p1132, %s62, 2
        %s1134 = smul.addr %s1133, 2
        %s1135 = smul.addr %s1131, 6
        %s1136 = sadd.s32 %s1134, %s1135
        %s1137 = smul.addr %s1136, 8
        %s1138 = scalar_lea.vmem %s5, %s1137
        %p1139 = scmp.lt.s32.totalorder %s61, 1
        %s1140 = scalar_select %p1139, %s61, 1
        %p1141 = scmp.lt.s32.totalorder %s62, 2
        %s1142 = scalar_select %p1141, %s62, 2
        %s1143 = smul.addr %s1140, 3
        %s1144 = sadd.s32 %s1142, %s1143
        %s1145 = smul.addr %s1144, 8
        %s1146 = scalar_lea.vmem %s15, %s1145
        %p1147 = scmp.lt.s32.totalorder %s61, 1
        %s1148 = scalar_select %p1147, %s61, 1
        %p1149 = scmp.lt.s32.totalorder %s62, 2
        %s1150 = scalar_select %p1149, %s62, 2
        %s1151 = smul.addr %s1150, 2
        %s1152 = smul.addr %s1148, 6
        %s1153 = sadd.s32 %s1151, %s1152
        %s1154 = smul.addr %s1153, 8
        %s1155 = scalar_lea.vmem %s17, %s1154
        %v1156 = vld [vmem:[%s889] sm:$0xff]
        %v1157 = vld [vmem:[%s889 + $0x8] sm:$0xff]
        %vm1158 = vcmp.gt.f32.partialorder %v1156, 0.0
        %vm1159 = vcmp.gt.f32.partialorder %v1157, 0.0
        %v1160 = vmul.f32 %v1156, 0.1
        %v1161 = vmul.f32 %v1157, 0.1
        %v1162 = vsel %vm1158, %v1156, %v1160
        %v1163 = vsel %vm1159, %v1157, %v1161
        %v1164 = vld [vmem:[%s934] sm:$0xff]
        %v1165 = vld [vmem:[%s934 + $0x8] sm:$0xff]
        %v1166 = vld [vmem:[%s934 + $0x10] sm:$0xff]
        %v1167 = vld [vmem:[%s934 + $0x18] sm:$0xff]
        %v1168 = vld [vmem:[%s934 + $0x20] sm:$0xff]
        %v1169 = vld [vmem:[%s934 + $0x28] sm:$0xff]
        %v1170 = vld [vmem:[%s934 + $0x30] sm:$0xff]
        %v1171 = vld [vmem:[%s934 + $0x38] sm:$0xff]
        %v1172 = vld [vmem:[%s934 + $0x40] sm:$0xff]
        %v1173 = vld [vmem:[%s934 + $0x48] sm:$0xff]
        %v1174 = vld [vmem:[%s934 + $0x50] sm:$0xff]
        %v1175 = vld [vmem:[%s934 + $0x58] sm:$0xff]
        %v1176 = vld [vmem:[%s934 + $0x60] sm:$0xff]
        %v1177 = vld [vmem:[%s934 + $0x68] sm:$0xff]
        %v1178 = vld [vmem:[%s934 + $0x70] sm:$0xff]
        %v1179 = vld [vmem:[%s934 + $0x78] sm:$0xff]
        %v1180 = vld [vmem:[%s934 + $0x80] sm:$0xff]
        %v1181 = vld [vmem:[%s934 + $0x88] sm:$0xff]
        %v1182 = vld [vmem:[%s934 + $0x90] sm:$0xff]
        %v1183 = vld [vmem:[%s934 + $0x98] sm:$0xff]
        %v1184 = vld [vmem:[%s934 + $0xa0] sm:$0xff]
        %v1185 = vld [vmem:[%s934 + $0xa8] sm:$0xff]
        %v1186 = vld [vmem:[%s934 + $0xb0] sm:$0xff]
        %v1187 = vld [vmem:[%s934 + $0xb8] sm:$0xff]
        %v1188 = vld [vmem:[%s934 + $0xc0] sm:$0xff]
        %v1189 = vld [vmem:[%s934 + $0xc8] sm:$0xff]
        %v1190 = vld [vmem:[%s934 + $0xd0] sm:$0xff]
        %v1191 = vld [vmem:[%s934 + $0xd8] sm:$0xff]
        %v1192 = vld [vmem:[%s934 + $0xe0] sm:$0xff]
        %v1193 = vld [vmem:[%s934 + $0xe8] sm:$0xff]
        %v1194 = vld [vmem:[%s934 + $0xf0] sm:$0xff]
        %v1195 = vld [vmem:[%s934 + $0xf8] sm:$0xff]
        %v1196 = vld [vmem:[%s934 + $0x100] sm:$0xff]
        %v1197 = vld [vmem:[%s934 + $0x108] sm:$0xff]
        %v1198 = vld [vmem:[%s934 + $0x110] sm:$0xff]
        %v1199 = vld [vmem:[%s934 + $0x118] sm:$0xff]
        %v1200 = vld [vmem:[%s934 + $0x120] sm:$0xff]
        %v1201 = vld [vmem:[%s934 + $0x128] sm:$0xff]
        %v1202 = vld [vmem:[%s934 + $0x130] sm:$0xff]
        %v1203 = vld [vmem:[%s934 + $0x138] sm:$0xff]
        %v1204 = vld [vmem:[%s934 + $0x140] sm:$0xff]
        %v1205 = vld [vmem:[%s934 + $0x148] sm:$0xff]
        %v1206 = vld [vmem:[%s934 + $0x150] sm:$0xff]
        %v1207 = vld [vmem:[%s934 + $0x158] sm:$0xff]
        %v1208 = vld [vmem:[%s934 + $0x160] sm:$0xff]
        %v1209 = vld [vmem:[%s934 + $0x168] sm:$0xff]
        %v1210 = vld [vmem:[%s934 + $0x170] sm:$0xff]
        %v1211 = vld [vmem:[%s934 + $0x178] sm:$0xff]
        %v1212 = vld [vmem:[%s943] sm:$0x1]
        %v1213 = vld [vmem:[%s898] sm:$0x3]
        %1214 = vst [vmem:[#allocation2 + $0x8] sm:$0x3] %v1213
        %1215 = vst [vmem:[#allocation2 + $0xa] sm:$0xff] %v1162
        %1216 = vst [vmem:[#allocation2 + $0x12] sm:$0xff] %v1163
        %v1217 = vld [vmem:[#allocation2 + $0x18] sm:$0x3]
        %1218 = vst [vmem:[%s1079] sm:$0x3] %v1217
        %v1219 = vld [vmem:[#allocation2 + $0x8] sm:$0xff]
        %v1220 = vld [vmem:[#allocation2 + $0x10] sm:$0xff]
        %v1221 = vld [vmem:[#allocation2 + $0x9] sm:$0xff]
        %v1222 = vld [vmem:[#allocation2 + $0x11] sm:$0xff]
        %v1223 = vld [vmem:[#allocation2 + $0xa] sm:$0xff]
        %v1224 = vld [vmem:[#allocation2 + $0x12] sm:$0xff]
        %v1226 = vlaneseq
        %v1227 = vshrl.u32 %v1226, 7
        %v1228 = vsub.s32 0, %v1227
        %v1229 = vrot.slane %v1212, %v1228
        %1231 = vmatprep.subr.mxu0 0.0
        %1232 = vmatpush1.msra.mxu0 %v1164
        %1233 = vmatprep.subr.mxu0 0.0
        %1234 = vmatpush1.msra.mxu0 %v1165
        %1235 = vmatprep.subr.mxu0 0.0
        %1236 = vmatpush1.msra.mxu0 %v1166
        %1237 = vmatprep.subr.mxu0 0.0
        %1238 = vmatpush1.msra.mxu0 %v1167
        %1239 = vmatprep.subr.mxu0 0.0
        %1240 = vmatpush1.msra.mxu0 %v1168
        %1241 = vmatprep.subr.mxu0 0.0
        %1242 = vmatpush1.msra.mxu0 %v1169
        %1243 = vmatprep.subr.mxu0 0.0
        %1244 = vmatpush1.msra.mxu0 %v1170
        %1245 = vmatprep.subr.mxu0 0.0
        %1246 = vmatpush1.msra.mxu0 %v1171
        %1247 = vmatprep.subr.mxu0 0.0
        %1248 = vmatpush1.msra.mxu0 %v1172
        %1249 = vmatprep.subr.mxu0 0.0
        %1250 = vmatpush1.msra.mxu0 %v1173
        %1251 = vmatprep.subr.mxu0 0.0
        %1252 = vmatpush1.msra.mxu0 %v1174
        %1253 = vmatprep.subr.mxu0 0.0
        %1254 = vmatpush1.msra.mxu0 %v1175
        %1255 = vmatprep.subr.mxu0 0.0
        %1256 = vmatpush1.msra.mxu0 %v1176
        %1257 = vmatprep.subr.mxu0 0.0
        %1258 = vmatpush1.msra.mxu0 %v1177
        %1259 = vmatprep.subr.mxu0 0.0
        %1260 = vmatpush1.msra.mxu0 %v1178
        %1261 = vmatprep.subr.mxu0 0.0
        %1262 = vmatpush1.msra.mxu0 %v1179
        %1263 = vmatprep.subr.mxu0 0.0
        %1264 = vmatpush1.msra.mxu0 %v1180
        %1265 = vmatprep.subr.mxu0 0.0
        %1266 = vmatpush1.msra.mxu0 %v1181
        %1267 = vmatprep.subr.mxu0 0.0
        %1268 = vmatpush1.msra.mxu0 %v1182
        %1269 = vmatprep.subr.mxu0 0.0
        %1270 = vmatpush1.msra.mxu0 %v1183
        %1271 = vmatprep.subr.mxu0 0.0
        %1272 = vmatpush1.msra.mxu0 %v1184
        %1273 = vmatprep.subr.mxu0 0.0
        %1274 = vmatpush1.msra.mxu0 %v1185
        %1275 = vmatprep.subr.mxu0 0.0
        %1276 = vmatpush1.msra.mxu0 %v1186
        %1277 = vmatprep.subr.mxu0 0.0
        %1278 = vmatpush1.msra.mxu0 %v1187
        %1279 = vmatprep.subr.mxu0 0.0
        %1280 = vmatpush1.msra.mxu0 %v1188
        %1281 = vmatprep.subr.mxu0 0.0
        %1282 = vmatpush1.msra.mxu0 %v1189
        %1283 = vmatprep.subr.mxu0 0.0
        %1284 = vmatpush1.msra.mxu0 %v1190
        %1285 = vmatprep.subr.mxu0 0.0
        %1286 = vmatpush1.msra.mxu0 %v1191
        %1287 = vmatprep.subr.mxu0 0.0
        %1288 = vmatpush1.msra.mxu0 %v1192
        %1289 = vmatprep.subr.mxu0 0.0
        %1290 = vmatpush1.msra.mxu0 %v1193
        %1291 = vmatprep.subr.mxu0 0.0
        %1292 = vmatpush1.msra.mxu0 %v1194
        %1293 = vmatprep.subr.mxu0 0.0
        %1294 = vmatpush1.msra.mxu0 %v1195
        %1295 = vmatprep.mubr.f32.mxu0 %v1221
        %1296 = vmatmul.mubr.f32.gmra.mrb[0].mxu0 %v1219
        %v1297 = vpop.f32.mrb[0].mxu0
        %v1298 = vadd.f32 %v1229, %v1297
        %v1299 = vpop.f32.mrb[0].mxu0
        %1300 = vmatprep.mubr.f32.mxu0 %v1222
        %1301 = vmatmul.mubr.f32.gmra.mrb[0].mxu0 %v1220
        %v1302 = vpop.f32.mrb[0].mxu0
        %v1303 = vadd.f32 %v1229, %v1302
        %v1304 = vpop.f32.mrb[0].mxu0
        %1305 = vdwg.mxu0
        %1306 = vmatprep.subr.mxu0 0.0
        %1307 = vmatpush1.msra.mxu0 %v1196
        %1308 = vmatprep.subr.mxu0 0.0
        %1309 = vmatpush1.msra.mxu0 %v1197
        %1310 = vmatprep.subr.mxu0 0.0
        %1311 = vmatpush1.msra.mxu0 %v1198
        %1312 = vmatprep.subr.mxu0 0.0
        %1313 = vmatpush1.msra.mxu0 %v1199
        %1314 = vmatprep.subr.mxu0 0.0
        %1315 = vmatpush1.msra.mxu0 %v1200
        %1316 = vmatprep.subr.mxu0 0.0
        %1317 = vmatpush1.msra.mxu0 %v1201
        %1318 = vmatprep.subr.mxu0 0.0
        %1319 = vmatpush1.msra.mxu0 %v1202
        %1320 = vmatprep.subr.mxu0 0.0
        %1321 = vmatpush1.msra.mxu0 %v1203
        %1322 = vmatprep.subr.mxu0 0.0
        %1323 = vmatpush1.msra.mxu0 %v1204
        %1324 = vmatprep.subr.mxu0 0.0
        %1325 = vmatpush1.msra.mxu0 %v1205
        %1326 = vmatprep.subr.mxu0 0.0
        %1327 = vmatpush1.msra.mxu0 %v1206
        %1328 = vmatprep.subr.mxu0 0.0
        %1329 = vmatpush1.msra.mxu0 %v1207
        %1330 = vmatprep.subr.mxu0 0.0
        %1331 = vmatpush1.msra.mxu0 %v1208
        %1332 = vmatprep.subr.mxu0 0.0
        %1333 = vmatpush1.msra.mxu0 %v1209
        %1334 = vmatprep.subr.mxu0 0.0
        %1335 = vmatpush1.msra.mxu0 %v1210
        %1336 = vmatprep.subr.mxu0 0.0
        %1337 = vmatpush1.msra.mxu0 %v1211
        %1338 = vmatprep.subr.mxu0 0.0
        %1339 = vmatpush1.msra.mxu0 0.0
        %1340 = vmatprep.subr.mxu0 0.0
        %1341 = vmatpush1.msra.mxu0 0.0
        %1342 = vmatprep.subr.mxu0 0.0
        %1343 = vmatpush1.msra.mxu0 0.0
        %1344 = vmatprep.subr.mxu0 0.0
        %1345 = vmatpush1.msra.mxu0 0.0
        %1346 = vmatprep.subr.mxu0 0.0
        %1347 = vmatpush1.msra.mxu0 0.0
        %1348 = vmatprep.subr.mxu0 0.0
        %1349 = vmatpush1.msra.mxu0 0.0
        %1350 = vmatprep.subr.mxu0 0.0
        %1351 = vmatpush1.msra.mxu0 0.0
        %1352 = vmatprep.subr.mxu0 0.0
        %1353 = vmatpush1.msra.mxu0 0.0
        %1354 = vmatprep.subr.mxu0 0.0
        %1355 = vmatpush1.msra.mxu0 0.0
        %1356 = vmatprep.subr.mxu0 0.0
        %1357 = vmatpush1.msra.mxu0 0.0
        %1358 = vmatprep.subr.mxu0 0.0
        %1359 = vmatpush1.msra.mxu0 0.0
        %1360 = vmatprep.subr.mxu0 0.0
        %1361 = vmatpush1.msra.mxu0 0.0
        %1362 = vmatprep.subr.mxu0 0.0
        %1363 = vmatpush1.msra.mxu0 0.0
        %1364 = vmatprep.subr.mxu0 0.0
        %1365 = vmatpush1.msra.mxu0 0.0
        %1366 = vmatprep.subr.mxu0 0.0
        %1367 = vmatpush1.msra.mxu0 0.0
        %1368 = vmatprep.subr.mxu0 0.0
        %1369 = vmatpush1.msra.mxu0 0.0
        %1370 = vmatprep.mubr.f32.mxu0 0.0
        %1371 = vmatmul.mubr.f32.gmra.mrb[0].mxu0 %v1223
        %v1372 = vpop.f32.mrb[0].mxu0
        %v1373 = vadd.f32 %v1298, %v1372
        %v1374 = vpop.f32.mrb[0].mxu0
        %1375 = vmatprep.mubr.f32.mxu0 0.0
        %1376 = vmatmul.mubr.f32.gmra.mrb[0].mxu0 %v1224
        %v1377 = vpop.f32.mrb[0].mxu0
        %v1378 = vadd.f32 %v1303, %v1377
        %v1379 = vpop.f32.mrb[0].mxu0
        %1380 = vdwg.mxu0
        %vm1381 = vcmp.gt.f32.partialorder %v1373, 0.0
        %vm1382 = vcmp.gt.f32.partialorder %v1378, 0.0
        %v1383 = vmul.f32 %v1373, 0.1
        %v1384 = vmul.f32 %v1378, 0.1
        %v1385 = vsel %vm1381, %v1373, %v1383
        %v1386 = vsel %vm1382, %v1378, %v1384
        %v1387 = vld [vmem:[%s952] sm:$0xff]
        %v1388 = vld [vmem:[%s952 + $0x8] sm:$0xff]
        %v1389 = vld [vmem:[%s952 + $0x10] sm:$0xff]
        %v1390 = vld [vmem:[%s952 + $0x18] sm:$0xff]
        %v1391 = vld [vmem:[%s952 + $0x20] sm:$0xff]
        %v1392 = vld [vmem:[%s952 + $0x28] sm:$0xff]
        %v1393 = vld [vmem:[%s952 + $0x30] sm:$0xff]
        %v1394 = vld [vmem:[%s952 + $0x38] sm:$0xff]
        %v1395 = vld [vmem:[%s952 + $0x40] sm:$0xff]
        %v1396 = vld [vmem:[%s952 + $0x48] sm:$0xff]
        %v1397 = vld [vmem:[%s952 + $0x50] sm:$0xff]
        %v1398 = vld [vmem:[%s952 + $0x58] sm:$0xff]
        %v1399 = vld [vmem:[%s952 + $0x60] sm:$0xff]
        %v1400 = vld [vmem:[%s952 + $0x68] sm:$0xff]
        %v1401 = vld [vmem:[%s952 + $0x70] sm:$0xff]
        %v1402 = vld [vmem:[%s952 + $0x78] sm:$0xff]
        %v1403 = vld [vmem:[%s952 + $0x80] sm:$0xff]
        %v1404 = vld [vmem:[%s952 + $0x88] sm:$0xff]
        %v1405 = vld [vmem:[%s952 + $0x90] sm:$0xff]
        %v1406 = vld [vmem:[%s952 + $0x98] sm:$0xff]
        %v1407 = vld [vmem:[%s952 + $0xa0] sm:$0xff]
        %v1408 = vld [vmem:[%s952 + $0xa8] sm:$0xff]
        %v1409 = vld [vmem:[%s952 + $0xb0] sm:$0xff]
        %v1410 = vld [vmem:[%s952 + $0xb8] sm:$0xff]
        %v1411 = vld [vmem:[%s952 + $0xc0] sm:$0xff]
        %v1412 = vld [vmem:[%s952 + $0xc8] sm:$0xff]
        %v1413 = vld [vmem:[%s952 + $0xd0] sm:$0xff]
        %v1414 = vld [vmem:[%s952 + $0xd8] sm:$0xff]
        %v1415 = vld [vmem:[%s952 + $0xe0] sm:$0xff]
        %v1416 = vld [vmem:[%s952 + $0xe8] sm:$0xff]
        %v1417 = vld [vmem:[%s952 + $0xf0] sm:$0xff]
        %v1418 = vld [vmem:[%s952 + $0xf8] sm:$0xff]
        %v1419 = vld [vmem:[%s952 + $0x100] sm:$0xff]
        %v1420 = vld [vmem:[%s952 + $0x108] sm:$0xff]
        %v1421 = vld [vmem:[%s952 + $0x110] sm:$0xff]
        %v1422 = vld [vmem:[%s952 + $0x118] sm:$0xff]
        %v1423 = vld [vmem:[%s952 + $0x120] sm:$0xff]
        %v1424 = vld [vmem:[%s952 + $0x128] sm:$0xff]
        %v1425 = vld [vmem:[%s952 + $0x130] sm:$0xff]
        %v1426 = vld [vmem:[%s952 + $0x138] sm:$0xff]
        %v1427 = vld [vmem:[%s952 + $0x140] sm:$0xff]
        %v1428 = vld [vmem:[%s952 + $0x148] sm:$0xff]
        %v1429 = vld [vmem:[%s952 + $0x150] sm:$0xff]
        %v1430 = vld [vmem:[%s952 + $0x158] sm:$0xff]
        %v1431 = vld [vmem:[%s952 + $0x160] sm:$0xff]
        %v1432 = vld [vmem:[%s952 + $0x168] sm:$0xff]
        %v1433 = vld [vmem:[%s952 + $0x170] sm:$0xff]
        %v1434 = vld [vmem:[%s952 + $0x178] sm:$0xff]
        %v1435 = vld [vmem:[%s961] sm:$0x1]
        %v1436 = vld [vmem:[%s907] sm:$0x3]
        %1437 = vst [vmem:[#allocation2 + $0x8] sm:$0x3] %v1436
        %1438 = vst [vmem:[#allocation2 + $0xa] sm:$0xff] %v1385
        %1439 = vst [vmem:[#allocation2 + $0x12] sm:$0xff] %v1386
        %v1440 = vld [vmem:[#allocation2 + $0x18] sm:$0x3]
        %1441 = vst [vmem:[%s1086] sm:$0x3] %v1440
        %v1442 = vld [vmem:[#allocation2 + $0x8] sm:$0xff]
        %v1443 = vld [vmem:[#allocation2 + $0x10] sm:$0xff]
        %v1444 = vld [vmem:[#allocation2 + $0x9] sm:$0xff]
        %v1445 = vld [vmem:[#allocation2 + $0x11] sm:$0xff]
        %v1446 = vld [vmem:[#allocation2 + $0xa] sm:$0xff]
        %v1447 = vld [vmem:[#allocation2 + $0x12] sm:$0xff]
        %v1449 = vlaneseq
        %v1450 = vshrl.u32 %v1449, 7
        %v1451 = vsub.s32 0, %v1450
        %v1452 = vrot.slane %v1435, %v1451
        %1454 = vmatprep.subr.mxu0 0.0
        %1455 = vmatpush1.msra.mxu0 %v1387
        %1456 = vmatprep.subr.mxu0 0.0
        %1457 = vmatpush1.msra.mxu0 %v1388
        %1458 = vmatprep.subr.mxu0 0.0
        %1459 = vmatpush1.msra.mxu0 %v1389
        %1460 = vmatprep.subr.mxu0 0.0
        %1461 = vmatpush1.msra.mxu0 %v1390
        %1462 = vmatprep.subr.mxu0 0.0
        %1463 = vmatpush1.msra.mxu0 %v1391
        %1464 = vmatprep.subr.mxu0 0.0
        %1465 = vmatpush1.msra.mxu0 %v1392
        %1466 = vmatprep.subr.mxu0 0.0
        %1467 = vmatpush1.msra.mxu0 %v1393
        %1468 = vmatprep.subr.mxu0 0.0
        %1469 = vmatpush1.msra.mxu0 %v1394
        %1470 = vmatprep.subr.mxu0 0.0
        %1471 = vmatpush1.msra.mxu0 %v1395
        %1472 = vmatprep.subr.mxu0 0.0
        %1473 = vmatpush1.msra.mxu0 %v1396
        %1474 = vmatprep.subr.mxu0 0.0
        %1475 = vmatpush1.msra.mxu0 %v1397
        %1476 = vmatprep.subr.mxu0 0.0
        %1477 = vmatpush1.msra.mxu0 %v1398
        %1478 = vmatprep.subr.mxu0 0.0
        %1479 = vmatpush1.msra.mxu0 %v1399
        %1480 = vmatprep.subr.mxu0 0.0
        %1481 = vmatpush1.msra.mxu0 %v1400
        %1482 = vmatprep.subr.mxu0 0.0
        %1483 = vmatpush1.msra.mxu0 %v1401
        %1484 = vmatprep.subr.mxu0 0.0
        %1485 = vmatpush1.msra.mxu0 %v1402
        %1486 = vmatprep.subr.mxu0 0.0
        %1487 = vmatpush1.msra.mxu0 %v1403
        %1488 = vmatprep.subr.mxu0 0.0
        %1489 = vmatpush1.msra.mxu0 %v1404
        %1490 = vmatprep.subr.mxu0 0.0
        %1491 = vmatpush1.msra.mxu0 %v1405
        %1492 = vmatprep.subr.mxu0 0.0
        %1493 = vmatpush1.msra.mxu0 %v1406
        %1494 = vmatprep.subr.mxu0 0.0
        %1495 = vmatpush1.msra.mxu0 %v1407
        %1496 = vmatprep.subr.mxu0 0.0
        %1497 = vmatpush1.msra.mxu0 %v1408
        %1498 = vmatprep.subr.mxu0 0.0
        %1499 = vmatpush1.msra.mxu0 %v1409
        %1500 = vmatprep.subr.mxu0 0.0
        %1501 = vmatpush1.msra.mxu0 %v1410
        %1502 = vmatprep.subr.mxu0 0.0
        %1503 = vmatpush1.msra.mxu0 %v1411
        %1504 = vmatprep.subr.mxu0 0.0
        %1505 = vmatpush1.msra.mxu0 %v1412
        %1506 = vmatprep.subr.mxu0 0.0
        %1507 = vmatpush1.msra.mxu0 %v1413
        %1508 = vmatprep.subr.mxu0 0.0
        %1509 = vmatpush1.msra.mxu0 %v1414
        %1510 = vmatprep.subr.mxu0 0.0
        %1511 = vmatpush1.msra.mxu0 %v1415
        %1512 = vmatprep.subr.mxu0 0.0
        %1513 = vmatpush1.msra.mxu0 %v1416
        %1514 = vmatprep.subr.mxu0 0.0
        %1515 = vmatpush1.msra.mxu0 %v1417
        %1516 = vmatprep.subr.mxu0 0.0
        %1517 = vmatpush1.msra.mxu0 %v1418
        %1518 = vmatprep.mubr.f32.mxu0 %v1444
        %1519 = vmatmul.mubr.f32.gmra.mrb[0].mxu0 %v1442
        %v1520 = vpop.f32.mrb[0].mxu0
        %v1521 = vadd.f32 %v1452, %v1520
        %v1522 = vpop.f32.mrb[0].mxu0
        %1523 = vmatprep.mubr.f32.mxu0 %v1445
        %1524 = vmatmul.mubr.f32.gmra.mrb[0].mxu0 %v1443
        %v1525 = vpop.f32.mrb[0].mxu0
        %v1526 = vadd.f32 %v1452, %v1525
        %v1527 = vpop.f32.mrb[0].mxu0
        %1528 = vdwg.mxu0
        %1529 = vmatprep.subr.mxu0 0.0
        %1530 = vmatpush1.msra.mxu0 %v1419
        %1531 = vmatprep.subr.mxu0 0.0
        %1532 = vmatpush1.msra.mxu0 %v1420
        %1533 = vmatprep.subr.mxu0 0.0
        %1534 = vmatpush1.msra.mxu0 %v1421
        %1535 = vmatprep.subr.mxu0 0.0
        %1536 = vmatpush1.msra.mxu0 %v1422
        %1537 = vmatprep.subr.mxu0 0.0
        %1538 = vmatpush1.msra.mxu0 %v1423
        %1539 = vmatprep.subr.mxu0 0.0
        %1540 = vmatpush1.msra.mxu0 %v1424
        %1541 = vmatprep.subr.mxu0 0.0
        %1542 = vmatpush1.msra.mxu0 %v1425
        %1543 = vmatprep.subr.mxu0 0.0
        %1544 = vmatpush1.msra.mxu0 %v1426
        %1545 = vmatprep.subr.mxu0 0.0
        %1546 = vmatpush1.msra.mxu0 %v1427
        %1547 = vmatprep.subr.mxu0 0.0
        %1548 = vmatpush1.msra.mxu0 %v1428
        %1549 = vmatprep.subr.mxu0 0.0
        %1550 = vmatpush1.msra.mxu0 %v1429
        %1551 = vmatprep.subr.mxu0 0.0
        %1552 = vmatpush1.msra.mxu0 %v1430
        %1553 = vmatprep.subr.mxu0 0.0
        %1554 = vmatpush1.msra.mxu0 %v1431
        %1555 = vmatprep.subr.mxu0 0.0
        %1556 = vmatpush1.msra.mxu0 %v1432
        %1557 = vmatprep.subr.mxu0 0.0
        %1558 = vmatpush1.msra.mxu0 %v1433
        %1559 = vmatprep.subr.mxu0 0.0
        %1560 = vmatpush1.msra.mxu0 %v1434
        %1561 = vmatprep.subr.mxu0 0.0
        %1562 = vmatpush1.msra.mxu0 0.0
        %1563 = vmatprep.subr.mxu0 0.0
        %1564 = vmatpush1.msra.mxu0 0.0
        %1565 = vmatprep.subr.mxu0 0.0
        %1566 = vmatpush1.msra.mxu0 0.0
        %1567 = vmatprep.subr.mxu0 0.0
        %1568 = vmatpush1.msra.mxu0 0.0
        %1569 = vmatprep.subr.mxu0 0.0
        %1570 = vmatpush1.msra.mxu0 0.0
        %1571 = vmatprep.subr.mxu0 0.0
        %1572 = vmatpush1.msra.mxu0 0.0
        %1573 = vmatprep.subr.mxu0 0.0
        %1574 = vmatpush1.msra.mxu0 0.0
        %1575 = vmatprep.subr.mxu0 0.0
        %1576 = vmatpush1.msra.mxu0 0.0
        %1577 = vmatprep.subr.mxu0 0.0
        %1578 = vmatpush1.msra.mxu0 0.0
        %1579 = vmatprep.subr.mxu0 0.0
        %1580 = vmatpush1.msra.mxu0 0.0
        %1581 = vmatprep.subr.mxu0 0.0
        %1582 = vmatpush1.msra.mxu0 0.0
        %1583 = vmatprep.subr.mxu0 0.0
        %1584 = vmatpush1.msra.mxu0 0.0
        %1585 = vmatprep.subr.mxu0 0.0
        %1586 = vmatpush1.msra.mxu0 0.0
        %1587 = vmatprep.subr.mxu0 0.0
        %1588 = vmatpush1.msra.mxu0 0.0
        %1589 = vmatprep.subr.mxu0 0.0
        %1590 = vmatpush1.msra.mxu0 0.0
        %1591 = vmatprep.subr.mxu0 0.0
        %1592 = vmatpush1.msra.mxu0 0.0
        %1593 = vmatprep.mubr.f32.mxu0 0.0
        %1594 = vmatmul.mubr.f32.gmra.mrb[0].mxu0 %v1446
        %v1595 = vpop.f32.mrb[0].mxu0
        %v1596 = vadd.f32 %v1521, %v1595
        %v1597 = vpop.f32.mrb[0].mxu0
        %1598 = vmatprep.mubr.f32.mxu0 0.0
        %1599 = vmatmul.mubr.f32.gmra.mrb[0].mxu0 %v1447
        %v1600 = vpop.f32.mrb[0].mxu0
        %v1601 = vadd.f32 %v1526, %v1600
        %v1602 = vpop.f32.mrb[0].mxu0
        %1603 = vdwg.mxu0
        %v1604 = vadd.f32 %v1596, %v1156
        %v1605 = vadd.f32 %v1601, %v1157
        %vm1606 = vcmp.gt.f32.partialorder %v1604, 0.0
        %vm1607 = vcmp.gt.f32.partialorder %v1605, 0.0
        %v1608 = vmul.f32 %v1604, 0.1
        %v1609 = vmul.f32 %v1605, 0.1
        %v1610 = vsel %vm1606, %v1604, %v1608
        %v1611 = vsel %vm1607, %v1605, %v1609
        %s1612 = scalar_lea.vmem %s934, 384 [#allocation12]
        %v1613 = vld [vmem:[%s1612] sm:$0xff]
        %v1614 = vld [vmem:[%s1612 + $0x8] sm:$0xff]
        %v1615 = vld [vmem:[%s1612 + $0x10] sm:$0xff]
        %v1616 = vld [vmem:[%s1612 + $0x18] sm:$0xff]
        %v1617 = vld [vmem:[%s1612 + $0x20] sm:$0xff]
        %v1618 = vld [vmem:[%s1612 + $0x28] sm:$0xff]
        %v1619 = vld [vmem:[%s1612 + $0x30] sm:$0xff]
        %v1620 = vld [vmem:[%s1612 + $0x38] sm:$0xff]
        %v1621 = vld [vmem:[%s1612 + $0x40] sm:$0xff]
        %v1622 = vld [vmem:[%s1612 + $0x48] sm:$0xff]
        %v1623 = vld [vmem:[%s1612 + $0x50] sm:$0xff]
        %v1624 = vld [vmem:[%s1612 + $0x58] sm:$0xff]
        %v1625 = vld [vmem:[%s1612 + $0x60] sm:$0xff]
        %v1626 = vld [vmem:[%s1612 + $0x68] sm:$0xff]
        %v1627 = vld [vmem:[%s1612 + $0x70] sm:$0xff]
        %v1628 = vld [vmem:[%s1612 + $0x78] sm:$0xff]
        %v1629 = vld [vmem:[%s1612 + $0x80] sm:$0xff]
        %v1630 = vld [vmem:[%s1612 + $0x88] sm:$0xff]
        %v1631 = vld [vmem:[%s1612 + $0x90] sm:$0xff]
        %v1632 = vld [vmem:[%s1612 + $0x98] sm:$0xff]
        %v1633 = vld [vmem:[%s1612 + $0xa0] sm:$0xff]
        %v1634 = vld [vmem:[%s1612 + $0xa8] sm:$0xff]
        %v1635 = vld [vmem:[%s1612 + $0xb0] sm:$0xff]
        %v1636 = vld [vmem:[%s1612 + $0xb8] sm:$0xff]
        %v1637 = vld [vmem:[%s1612 + $0xc0] sm:$0xff]
        %v1638 = vld [vmem:[%s1612 + $0xc8] sm:$0xff]
        %v1639 = vld [vmem:[%s1612 + $0xd0] sm:$0xff]
        %v1640 = vld [vmem:[%s1612 + $0xd8] sm:$0xff]
        %v1641 = vld [vmem:[%s1612 + $0xe0] sm:$0xff]
        %v1642 = vld [vmem:[%s1612 + $0xe8] sm:$0xff]
        %v1643 = vld [vmem:[%s1612 + $0xf0] sm:$0xff]
        %v1644 = vld [vmem:[%s1612 + $0xf8] sm:$0xff]
        %v1645 = vld [vmem:[%s1612 + $0x100] sm:$0xff]
        %v1646 = vld [vmem:[%s1612 + $0x108] sm:$0xff]
        %v1647 = vld [vmem:[%s1612 + $0x110] sm:$0xff]
        %v1648 = vld [vmem:[%s1612 + $0x118] sm:$0xff]
        %v1649 = vld [vmem:[%s1612 + $0x120] sm:$0xff]
        %v1650 = vld [vmem:[%s1612 + $0x128] sm:$0xff]
        %v1651 = vld [vmem:[%s1612 + $0x130] sm:$0xff]
        %v1652 = vld [vmem:[%s1612 + $0x138] sm:$0xff]
        %v1653 = vld [vmem:[%s1612 + $0x140] sm:$0xff]
        %v1654 = vld [vmem:[%s1612 + $0x148] sm:$0xff]
        %v1655 = vld [vmem:[%s1612 + $0x150] sm:$0xff]
        %v1656 = vld [vmem:[%s1612 + $0x158] sm:$0xff]
        %v1657 = vld [vmem:[%s1612 + $0x160] sm:$0xff]
        %v1658 = vld [vmem:[%s1612 + $0x168] sm:$0xff]
        %v1659 = vld [vmem:[%s1612 + $0x170] sm:$0xff]
        %v1660 = vld [vmem:[%s1612 + $0x178] sm:$0xff]
        %s1661 = scalar_lea.vmem %s943, 1 [#allocation14]
        %v1662 = vld [vmem:[%s1661] sm:$0x1]
        %v1663 = vld [vmem:[%s1129] sm:$0x3f]
        %1664 = vst [vmem:[#allocation2 + $0x4] sm:$0x3f] %v1663
        %1665 = vst [vmem:[#allocation2 + $0xa] sm:$0xff] %v1610
        %1666 = vst [vmem:[#allocation2 + $0x12] sm:$0xff] %v1611
        %v1667 = vld [vmem:[#allocation2 + $0x14] sm:$0x3f]
        %1668 = vst [vmem:[%s1146] sm:$0x3f] %v1667
        %v1669 = vld [vmem:[#allocation2 + $0x4] sm:$0xff]
        %v1670 = vld [vmem:[#allocation2 + $0xc] sm:$0xff]
        %v1671 = vld [vmem:[#allocation2 + $0x7] sm:$0xff]
        %v1672 = vld [vmem:[#allocation2 + $0xf] sm:$0xff]
        %v1673 = vld [vmem:[#allocation2 + $0xa] sm:$0xff]
        %v1674 = vld [vmem:[#allocation2 + $0x12] sm:$0xff]
        %v1676 = vlaneseq
        %v1677 = vshrl.u32 %v1676, 7
        %v1678 = vsub.s32 0, %v1677
        %v1679 = vrot.slane %v1662, %v1678
        %1681 = vmatprep.subr.mxu0 0.0
        %1682 = vmatpush1.msra.mxu0 %v1613
        %1683 = vmatprep.subr.mxu0 0.0
        %1684 = vmatpush1.msra.mxu0 %v1614
        %1685 = vmatprep.subr.mxu0 0.0
        %1686 = vmatpush1.msra.mxu0 %v1615
        %1687 = vmatprep.subr.mxu0 0.0
        %1688 = vmatpush1.msra.mxu0 %v1616
        %1689 = vmatprep.subr.mxu0 0.0
        %1690 = vmatpush1.msra.mxu0 %v1617
        %1691 = vmatprep.subr.mxu0 0.0
        %1692 = vmatpush1.msra.mxu0 %v1618
        %1693 = vmatprep.subr.mxu0 0.0
        %1694 = vmatpush1.msra.mxu0 %v1619
        %1695 = vmatprep.subr.mxu0 0.0
        %1696 = vmatpush1.msra.mxu0 %v1620
        %1697 = vmatprep.subr.mxu0 0.0
        %1698 = vmatpush1.msra.mxu0 %v1621
        %1699 = vmatprep.subr.mxu0 0.0
        %1700 = vmatpush1.msra.mxu0 %v1622
        %1701 = vmatprep.subr.mxu0 0.0
        %1702 = vmatpush1.msra.mxu0 %v1623
        %1703 = vmatprep.subr.mxu0 0.0
        %1704 = vmatpush1.msra.mxu0 %v1624
        %1705 = vmatprep.subr.mxu0 0.0
        %1706 = vmatpush1.msra.mxu0 %v1625
        %1707 = vmatprep.subr.mxu0 0.0
        %1708 = vmatpush1.msra.mxu0 %v1626
        %1709 = vmatprep.subr.mxu0 0.0
        %1710 = vmatpush1.msra.mxu0 %v1627
        %1711 = vmatprep.subr.mxu0 0.0
        %1712 = vmatpush1.msra.mxu0 %v1628
        %1713 = vmatprep.subr.mxu0 0.0
        %1714 = vmatpush1.msra.mxu0 %v1629
        %1715 = vmatprep.subr.mxu0 0.0
        %1716 = vmatpush1.msra.mxu0 %v1630
        %1717 = vmatprep.subr.mxu0 0.0
        %1718 = vmatpush1.msra.mxu0 %v1631
        %1719 = vmatprep.subr.mxu0 0.0
        %1720 = vmatpush1.msra.mxu0 %v1632
        %1721 = vmatprep.subr.mxu0 0.0
        %1722 = vmatpush1.msra.mxu0 %v1633
        %1723 = vmatprep.subr.mxu0 0.0
        %1724 = vmatpush1.msra.mxu0 %v1634
        %1725 = vmatprep.subr.mxu0 0.0
        %1726 = vmatpush1.msra.mxu0 %v1635
        %1727 = vmatprep.subr.mxu0 0.0
        %1728 = vmatpush1.msra.mxu0 %v1636
        %1729 = vmatprep.subr.mxu0 0.0
        %1730 = vmatpush1.msra.mxu0 %v1637
        %1731 = vmatprep.subr.mxu0 0.0
        %1732 = vmatpush1.msra.mxu0 %v1638
        %1733 = vmatprep.subr.mxu0 0.0
        %1734 = vmatpush1.msra.mxu0 %v1639
        %1735 = vmatprep.subr.mxu0 0.0
        %1736 = vmatpush1.msra.mxu0 %v1640
        %1737 = vmatprep.subr.mxu0 0.0
        %1738 = vmatpush1.msra.mxu0 %v1641
        %1739 = vmatprep.subr.mxu0 0.0
        %1740 = vmatpush1.msra.mxu0 %v1642
        %1741 = vmatprep.subr.mxu0 0.0
        %1742 = vmatpush1.msra.mxu0 %v1643
        %1743 = vmatprep.subr.mxu0 0.0
        %1744 = vmatpush1.msra.mxu0 %v1644
        %1745 = vmatprep.mubr.f32.mxu0 %v1671
        %1746 = vmatmul.mubr.f32.gmra.mrb[0].mxu0 %v1669
        %v1747 = vpop.f32.mrb[0].mxu0
        %v1748 = vadd.f32 %v1679, %v1747
        %v1749 = vpop.f32.mrb[0].mxu0
        %1750 = vmatprep.mubr.f32.mxu0 %v1672
        %1751 = vmatmul.mubr.f32.gmra.mrb[0].mxu0 %v1670
        %v1752 = vpop.f32.mrb[0].mxu0
        %v1753 = vadd.f32 %v1679, %v1752
        %v1754 = vpop.f32.mrb[0].mxu0
        %1755 = vdwg.mxu0
        %1756 = vmatprep.subr.mxu0 0.0
        %1757 = vmatpush1.msra.mxu0 %v1645
        %1758 = vmatprep.subr.mxu0 0.0
        %1759 = vmatpush1.msra.mxu0 %v1646
        %1760 = vmatprep.subr.mxu0 0.0
        %1761 = vmatpush1.msra.mxu0 %v1647
        %1762 = vmatprep.subr.mxu0 0.0
        %1763 = vmatpush1.msra.mxu0 %v1648
        %1764 = vmatprep.subr.mxu0 0.0
        %1765 = vmatpush1.msra.mxu0 %v1649
        %1766 = vmatprep.subr.mxu0 0.0
        %1767 = vmatpush1.msra.mxu0 %v1650
        %1768 = vmatprep.subr.mxu0 0.0
        %1769 = vmatpush1.msra.mxu0 %v1651
        %1770 = vmatprep.subr.mxu0 0.0
        %1771 = vmatpush1.msra.mxu0 %v1652
        %1772 = vmatprep.subr.mxu0 0.0
        %1773 = vmatpush1.msra.mxu0 %v1653
        %1774 = vmatprep.subr.mxu0 0.0
        %1775 = vmatpush1.msra.mxu0 %v1654
        %1776 = vmatprep.subr.mxu0 0.0
        %1777 = vmatpush1.msra.mxu0 %v1655
        %1778 = vmatprep.subr.mxu0 0.0
        %1779 = vmatpush1.msra.mxu0 %v1656
        %1780 = vmatprep.subr.mxu0 0.0
        %1781 = vmatpush1.msra.mxu0 %v1657
        %1782 = vmatprep.subr.mxu0 0.0
        %1783 = vmatpush1.msra.mxu0 %v1658
        %1784 = vmatprep.subr.mxu0 0.0
        %1785 = vmatpush1.msra.mxu0 %v1659
        %1786 = vmatprep.subr.mxu0 0.0
        %1787 = vmatpush1.msra.mxu0 %v1660
        %1788 = vmatprep.subr.mxu0 0.0
        %1789 = vmatpush1.msra.mxu0 0.0
        %1790 = vmatprep.subr.mxu0 0.0
        %1791 = vmatpush1.msra.mxu0 0.0
        %1792 = vmatprep.subr.mxu0 0.0
        %1793 = vmatpush1.msra.mxu0 0.0
        %1794 = vmatprep.subr.mxu0 0.0
        %1795 = vmatpush1.msra.mxu0 0.0
        %1796 = vmatprep.subr.mxu0 0.0
        %1797 = vmatpush1.msra.mxu0 0.0
        %1798 = vmatprep.subr.mxu0 0.0
        %1799 = vmatpush1.msra.mxu0 0.0
        %1800 = vmatprep.subr.mxu0 0.0
        %1801 = vmatpush1.msra.mxu0 0.0
        %1802 = vmatprep.subr.mxu0 0.0
        %1803 = vmatpush1.msra.mxu0 0.0
        %1804 = vmatprep.subr.mxu0 0.0
        %1805 = vmatpush1.msra.mxu0 0.0
        %1806 = vmatprep.subr.mxu0 0.0
        %1807 = vmatpush1.msra.mxu0 0.0
        %1808 = vmatprep.subr.mxu0 0.0
        %1809 = vmatpush1.msra.mxu0 0.0
        %1810 = vmatprep.subr.mxu0 0.0
        %1811 = vmatpush1.msra.mxu0 0.0
        %1812 = vmatprep.subr.mxu0 0.0
        %1813 = vmatpush1.msra.mxu0 0.0
        %1814 = vmatprep.subr.mxu0 0.0
        %1815 = vmatpush1.msra.mxu0 0.0
        %1816 = vmatprep.subr.mxu0 0.0
        %1817 = vmatpush1.msra.mxu0 0.0
        %1818 = vmatprep.subr.mxu0 0.0
        %1819 = vmatpush1.msra.mxu0 0.0
        %1820 = vmatprep.mubr.f32.mxu0 0.0
        %1821 = vmatmul.mubr.f32.gmra.mrb[0].mxu0 %v1673
        %v1822 = vpop.f32.mrb[0].mxu0
        %v1823 = vadd.f32 %v1748, %v1822
        %v1824 = vpop.f32.mrb[0].mxu0
        %1825 = vmatprep.mubr.f32.mxu0 0.0
        %1826 = vmatmul.mubr.f32.gmra.mrb[0].mxu0 %v1674
        %v1827 = vpop.f32.mrb[0].mxu0
        %v1828 = vadd.f32 %v1753, %v1827
        %v1829 = vpop.f32.mrb[0].mxu0
        %1830 = vdwg.mxu0
        %vm1831 = vcmp.gt.f32.partialorder %v1823, 0.0
        %vm1832 = vcmp.gt.f32.partialorder %v1828, 0.0
        %v1833 = vmul.f32 %v1823, 0.1
        %v1834 = vmul.f32 %v1828, 0.1
        %v1835 = vsel %vm1831, %v1823, %v1833
        %v1836 = vsel %vm1832, %v1828, %v1834
        %s1837 = scalar_lea.vmem %s952, 384 [#allocation15]
        %v1838 = vld [vmem:[%s1837] sm:$0xff]
        %v1839 = vld [vmem:[%s1837 + $0x8] sm:$0xff]
        %v1840 = vld [vmem:[%s1837 + $0x10] sm:$0xff]
        %v1841 = vld [vmem:[%s1837 + $0x18] sm:$0xff]
        %v1842 = vld [vmem:[%s1837 + $0x20] sm:$0xff]
        %v1843 = vld [vmem:[%s1837 + $0x28] sm:$0xff]
        %v1844 = vld [vmem:[%s1837 + $0x30] sm:$0xff]
        %v1845 = vld [vmem:[%s1837 + $0x38] sm:$0xff]
        %v1846 = vld [vmem:[%s1837 + $0x40] sm:$0xff]
        %v1847 = vld [vmem:[%s1837 + $0x48] sm:$0xff]
        %v1848 = vld [vmem:[%s1837 + $0x50] sm:$0xff]
        %v1849 = vld [vmem:[%s1837 + $0x58] sm:$0xff]
        %v1850 = vld [vmem:[%s1837 + $0x60] sm:$0xff]
        %v1851 = vld [vmem:[%s1837 + $0x68] sm:$0xff]
        %v1852 = vld [vmem:[%s1837 + $0x70] sm:$0xff]
        %v1853 = vld [vmem:[%s1837 + $0x78] sm:$0xff]
        %v1854 = vld [vmem:[%s1837 + $0x80] sm:$0xff]
        %v1855 = vld [vmem:[%s1837 + $0x88] sm:$0xff]
        %v1856 = vld [vmem:[%s1837 + $0x90] sm:$0xff]
        %v1857 = vld [vmem:[%s1837 + $0x98] sm:$0xff]
        %v1858 = vld [vmem:[%s1837 + $0xa0] sm:$0xff]
        %v1859 = vld [vmem:[%s1837 + $0xa8] sm:$0xff]
        %v1860 = vld [vmem:[%s1837 + $0xb0] sm:$0xff]
        %v1861 = vld [vmem:[%s1837 + $0xb8] sm:$0xff]
        %v1862 = vld [vmem:[%s1837 + $0xc0] sm:$0xff]
        %v1863 = vld [vmem:[%s1837 + $0xc8] sm:$0xff]
        %v1864 = vld [vmem:[%s1837 + $0xd0] sm:$0xff]
        %v1865 = vld [vmem:[%s1837 + $0xd8] sm:$0xff]
        %v1866 = vld [vmem:[%s1837 + $0xe0] sm:$0xff]
        %v1867 = vld [vmem:[%s1837 + $0xe8] sm:$0xff]
        %v1868 = vld [vmem:[%s1837 + $0xf0] sm:$0xff]
        %v1869 = vld [vmem:[%s1837 + $0xf8] sm:$0xff]
        %v1870 = vld [vmem:[%s1837 + $0x100] sm:$0xff]
        %v1871 = vld [vmem:[%s1837 + $0x108] sm:$0xff]
        %v1872 = vld [vmem:[%s1837 + $0x110] sm:$0xff]
        %v1873 = vld [vmem:[%s1837 + $0x118] sm:$0xff]
        %v1874 = vld [vmem:[%s1837 + $0x120] sm:$0xff]
        %v1875 = vld [vmem:[%s1837 + $0x128] sm:$0xff]
        %v1876 = vld [vmem:[%s1837 + $0x130] sm:$0xff]
        %v1877 = vld [vmem:[%s1837 + $0x138] sm:$0xff]
        %v1878 = vld [vmem:[%s1837 + $0x140] sm:$0xff]
        %v1879 = vld [vmem:[%s1837 + $0x148] sm:$0xff]
        %v1880 = vld [vmem:[%s1837 + $0x150] sm:$0xff]
        %v1881 = vld [vmem:[%s1837 + $0x158] sm:$0xff]
        %v1882 = vld [vmem:[%s1837 + $0x160] sm:$0xff]
        %v1883 = vld [vmem:[%s1837 + $0x168] sm:$0xff]
        %v1884 = vld [vmem:[%s1837 + $0x170] sm:$0xff]
        %v1885 = vld [vmem:[%s1837 + $0x178] sm:$0xff]
        %s1886 = scalar_lea.vmem %s961, 1 [#allocation17]
        %v1887 = vld [vmem:[%s1886] sm:$0x1]
        %v1888 = vld [vmem:[%s916] sm:$0x3]
        %1889 = vst [vmem:[#allocation2 + $0x8] sm:$0x3] %v1888
        %1890 = vst [vmem:[#allocation2 + $0xa] sm:$0xff] %v1835
        %1891 = vst [vmem:[#allocation2 + $0x12] sm:$0xff] %v1836
        %v1892 = vld [vmem:[#allocation2 + $0x18] sm:$0x3]
        %1893 = vst [vmem:[%s1103] sm:$0x3] %v1892
        %v1894 = vld [vmem:[#allocation2 + $0x8] sm:$0xff]
        %v1895 = vld [vmem:[#allocation2 + $0x10] sm:$0xff]
        %v1896 = vld [vmem:[#allocation2 + $0x9] sm:$0xff]
        %v1897 = vld [vmem:[#allocation2 + $0x11] sm:$0xff]
        %v1898 = vld [vmem:[#allocation2 + $0xa] sm:$0xff]
        %v1899 = vld [vmem:[#allocation2 + $0x12] sm:$0xff]
        %v1901 = vlaneseq
        %v1902 = vshrl.u32 %v1901, 7
        %v1903 = vsub.s32 0, %v1902
        %v1904 = vrot.slane %v1887, %v1903
        %1906 = vmatprep.subr.mxu0 0.0
        %1907 = vmatpush1.msra.mxu0 %v1838
        %1908 = vmatprep.subr.mxu0 0.0
        %1909 = vmatpush1.msra.mxu0 %v1839
        %1910 = vmatprep.subr.mxu0 0.0
        %1911 = vmatpush1.msra.mxu0 %v1840
        %1912 = vmatprep.subr.mxu0 0.0
        %1913 = vmatpush1.msra.mxu0 %v1841
        %1914 = vmatprep.subr.mxu0 0.0
        %1915 = vmatpush1.msra.mxu0 %v1842
        %1916 = vmatprep.subr.mxu0 0.0
        %1917 = vmatpush1.msra.mxu0 %v1843
        %1918 = vmatprep.subr.mxu0 0.0
        %1919 = vmatpush1.msra.mxu0 %v1844
        %1920 = vmatprep.subr.mxu0 0.0
        %1921 = vmatpush1.msra.mxu0 %v1845
        %1922 = vmatprep.subr.mxu0 0.0
        %1923 = vmatpush1.msra.mxu0 %v1846
        %1924 = vmatprep.subr.mxu0 0.0
        %1925 = vmatpush1.msra.mxu0 %v1847
        %1926 = vmatprep.subr.mxu0 0.0
        %1927 = vmatpush1.msra.mxu0 %v1848
        %1928 = vmatprep.subr.mxu0 0.0
        %1929 = vmatpush1.msra.mxu0 %v1849
        %1930 = vmatprep.subr.mxu0 0.0
        %1931 = vmatpush1.msra.mxu0 %v1850
        %1932 = vmatprep.subr.mxu0 0.0
        %1933 = vmatpush1.msra.mxu0 %v1851
        %1934 = vmatprep.subr.mxu0 0.0
        %1935 = vmatpush1.msra.mxu0 %v1852
        %1936 = vmatprep.subr.mxu0 0.0
        %1937 = vmatpush1.msra.mxu0 %v1853
        %1938 = vmatprep.subr.mxu0 0.0
        %1939 = vmatpush1.msra.mxu0 %v1854
        %1940 = vmatprep.subr.mxu0 0.0
        %1941 = vmatpush1.msra.mxu0 %v1855
        %1942 = vmatprep.subr.mxu0 0.0
        %1943 = vmatpush1.msra.mxu0 %v1856
        %1944 = vmatprep.subr.mxu0 0.0
        %1945 = vmatpush1.msra.mxu0 %v1857
        %1946 = vmatprep.subr.mxu0 0.0
        %1947 = vmatpush1.msra.mxu0 %v1858
        %1948 = vmatprep.subr.mxu0 0.0
        %1949 = vmatpush1.msra.mxu0 %v1859
        %1950 = vmatprep.subr.mxu0 0.0
        %1951 = vmatpush1.msra.mxu0 %v1860
        %1952 = vmatprep.subr.mxu0 0.0
        %1953 = vmatpush1.msra.mxu0 %v1861
        %1954 = vmatprep.subr.mxu0 0.0
        %1955 = vmatpush1.msra.mxu0 %v1862
        %1956 = vmatprep.subr.mxu0 0.0
        %1957 = vmatpush1.msra.mxu0 %v1863
        %1958 = vmatprep.subr.mxu0 0.0
        %1959 = vmatpush1.msra.mxu0 %v1864
        %1960 = vmatprep.subr.mxu0 0.0
        %1961 = vmatpush1.msra.mxu0 %v1865
        %1962 = vmatprep.subr.mxu0 0.0
        %1963 = vmatpush1.msra.mxu0 %v1866
        %1964 = vmatprep.subr.mxu0 0.0
        %1965 = vmatpush1.msra.mxu0 %v1867
        %1966 = vmatprep.subr.mxu0 0.0
        %1967 = vmatpush1.msra.mxu0 %v1868
        %1968 = vmatprep.subr.mxu0 0.0
        %1969 = vmatpush1.msra.mxu0 %v1869
        %1970 = vmatprep.mubr.f32.mxu0 %v1896
        %1971 = vmatmul.mubr.f32.gmra.mrb[0].mxu0 %v1894
        %v1972 = vpop.f32.mrb[0].mxu0
        %v1973 = vadd.f32 %v1904, %v1972
        %v1974 = vpop.f32.mrb[0].mxu0
        %1975 = vmatprep.mubr.f32.mxu0 %v1897
        %1976 = vmatmul.mubr.f32.gmra.mrb[0].mxu0 %v1895
        %v1977 = vpop.f32.mrb[0].mxu0
        %v1978 = vadd.f32 %v1904, %v1977
        %v1979 = vpop.f32.mrb[0].mxu0
        %1980 = vdwg.mxu0
        %1981 = vmatprep.subr.mxu0 0.0
        %1982 = vmatpush1.msra.mxu0 %v1870
        %1983 = vmatprep.subr.mxu0 0.0
        %1984 = vmatpush1.msra.mxu0 %v1871
        %1985 = vmatprep.subr.mxu0 0.0
        %1986 = vmatpush1.msra.mxu0 %v1872
        %1987 = vmatprep.subr.mxu0 0.0
        %1988 = vmatpush1.msra.mxu0 %v1873
        %1989 = vmatprep.subr.mxu0 0.0
        %1990 = vmatpush1.msra.mxu0 %v1874
        %1991 = vmatprep.subr.mxu0 0.0
        %1992 = vmatpush1.msra.mxu0 %v1875
        %1993 = vmatprep.subr.mxu0 0.0
        %1994 = vmatpush1.msra.mxu0 %v1876
        %1995 = vmatprep.subr.mxu0 0.0
        %1996 = vmatpush1.msra.mxu0 %v1877
        %1997 = vmatprep.subr.mxu0 0.0
        %1998 = vmatpush1.msra.mxu0 %v1878
        %1999 = vmatprep.subr.mxu0 0.0
        %2000 = vmatpush1.msra.mxu0 %v1879
        %2001 = vmatprep.subr.mxu0 0.0
        %2002 = vmatpush1.msra.mxu0 %v1880
        %2003 = vmatprep.subr.mxu0 0.0
        %2004 = vmatpush1.msra.mxu0 %v1881
        %2005 = vmatprep.subr.mxu0 0.0
        %2006 = vmatpush1.msra.mxu0 %v1882
        %2007 = vmatprep.subr.mxu0 0.0
        %2008 = vmatpush1.msra.mxu0 %v1883
        %2009 = vmatprep.subr.mxu0 0.0
        %2010 = vmatpush1.msra.mxu0 %v1884
        %2011 = vmatprep.subr.mxu0 0.0
        %2012 = vmatpush1.msra.mxu0 %v1885
        %2013 = vmatprep.subr.mxu0 0.0
        %2014 = vmatpush1.msra.mxu0 0.0
        %2015 = vmatprep.subr.mxu0 0.0
        %2016 = vmatpush1.msra.mxu0 0.0
        %2017 = vmatprep.subr.mxu0 0.0
        %2018 = vmatpush1.msra.mxu0 0.0
        %2019 = vmatprep.subr.mxu0 0.0
        %2020 = vmatpush1.msra.mxu0 0.0
        %2021 = vmatprep.subr.mxu0 0.0
        %2022 = vmatpush1.msra.mxu0 0.0
        %2023 = vmatprep.subr.mxu0 0.0
        %2024 = vmatpush1.msra.mxu0 0.0
        %2025 = vmatprep.subr.mxu0 0.0
        %2026 = vmatpush1.msra.mxu0 0.0
        %2027 = vmatprep.subr.mxu0 0.0
        %2028 = vmatpush1.msra.mxu0 0.0
        %2029 = vmatprep.subr.mxu0 0.0
        %2030 = vmatpush1.msra.mxu0 0.0
        %2031 = vmatprep.subr.mxu0 0.0
        %2032 = vmatpush1.msra.mxu0 0.0
        %2033 = vmatprep.subr.mxu0 0.0
        %2034 = vmatpush1.msra.mxu0 0.0
        %2035 = vmatprep.subr.mxu0 0.0
        %2036 = vmatpush1.msra.mxu0 0.0
        %2037 = vmatprep.subr.mxu0 0.0
        %2038 = vmatpush1.msra.mxu0 0.0
        %2039 = vmatprep.subr.mxu0 0.0
        %2040 = vmatpush1.msra.mxu0 0.0
        %2041 = vmatprep.subr.mxu0 0.0
        %2042 = vmatpush1.msra.mxu0 0.0
        %2043 = vmatprep.subr.mxu0 0.0
        %2044 = vmatpush1.msra.mxu0 0.0
        %2045 = vmatprep.mubr.f32.mxu0 0.0
        %2046 = vmatmul.mubr.f32.gmra.mrb[0].mxu0 %v1898
        %v2047 = vpop.f32.mrb[0].mxu0
        %v2048 = vadd.f32 %v1973, %v2047
        %v2049 = vpop.f32.mrb[0].mxu0
        %2050 = vmatprep.mubr.f32.mxu0 0.0
        %2051 = vmatmul.mubr.f32.gmra.mrb[0].mxu0 %v1899
        %v2052 = vpop.f32.mrb[0].mxu0
        %v2053 = vadd.f32 %v1978, %v2052
        %v2054 = vpop.f32.mrb[0].mxu0
        %2055 = vdwg.mxu0
        %v2056 = vadd.f32 %v2048, %v1604
        %v2057 = vadd.f32 %v2053, %v1605
        %vm2058 = vcmp.gt.f32.partialorder %v2056, 0.0
        %vm2059 = vcmp.gt.f32.partialorder %v2057, 0.0
        %v2060 = vmul.f32 %v2056, 0.1
        %v2061 = vmul.f32 %v2057, 0.1
        %v2062 = vsel %vm2058, %v2056, %v2060
        %v2063 = vsel %vm2059, %v2057, %v2061
        %s2064 = scalar_lea.vmem %s934, 768 [#allocation12]
        %v2065 = vld [vmem:[%s2064] sm:$0xff]
        %v2066 = vld [vmem:[%s2064 + $0x8] sm:$0xff]
        %v2067 = vld [vmem:[%s2064 + $0x10] sm:$0xff]
        %v2068 = vld [vmem:[%s2064 + $0x18] sm:$0xff]
        %v2069 = vld [vmem:[%s2064 + $0x20] sm:$0xff]
        %v2070 = vld [vmem:[%s2064 + $0x28] sm:$0xff]
        %v2071 = vld [vmem:[%s2064 + $0x30] sm:$0xff]
        %v2072 = vld [vmem:[%s2064 + $0x38] sm:$0xff]
        %v2073 = vld [vmem:[%s2064 + $0x40] sm:$0xff]
        %v2074 = vld [vmem:[%s2064 + $0x48] sm:$0xff]
        %v2075 = vld [vmem:[%s2064 + $0x50] sm:$0xff]
        %v2076 = vld [vmem:[%s2064 + $0x58] sm:$0xff]
        %v2077 = vld [vmem:[%s2064 + $0x60] sm:$0xff]
        %v2078 = vld [vmem:[%s2064 + $0x68] sm:$0xff]
        %v2079 = vld [vmem:[%s2064 + $0x70] sm:$0xff]
        %v2080 = vld [vmem:[%s2064 + $0x78] sm:$0xff]
        %v2081 = vld [vmem:[%s2064 + $0x80] sm:$0xff]
        %v2082 = vld [vmem:[%s2064 + $0x88] sm:$0xff]
        %v2083 = vld [vmem:[%s2064 + $0x90] sm:$0xff]
        %v2084 = vld [vmem:[%s2064 + $0x98] sm:$0xff]
        %v2085 = vld [vmem:[%s2064 + $0xa0] sm:$0xff]
        %v2086 = vld [vmem:[%s2064 + $0xa8] sm:$0xff]
        %v2087 = vld [vmem:[%s2064 + $0xb0] sm:$0xff]
        %v2088 = vld [vmem:[%s2064 + $0xb8] sm:$0xff]
        %v2089 = vld [vmem:[%s2064 + $0xc0] sm:$0xff]
        %v2090 = vld [vmem:[%s2064 + $0xc8] sm:$0xff]
        %v2091 = vld [vmem:[%s2064 + $0xd0] sm:$0xff]
        %v2092 = vld [vmem:[%s2064 + $0xd8] sm:$0xff]
        %v2093 = vld [vmem:[%s2064 + $0xe0] sm:$0xff]
        %v2094 = vld [vmem:[%s2064 + $0xe8] sm:$0xff]
        %v2095 = vld [vmem:[%s2064 + $0xf0] sm:$0xff]
        %v2096 = vld [vmem:[%s2064 + $0xf8] sm:$0xff]
        %v2097 = vld [vmem:[%s2064 + $0x100] sm:$0xff]
        %v2098 = vld [vmem:[%s2064 + $0x108] sm:$0xff]
        %v2099 = vld [vmem:[%s2064 + $0x110] sm:$0xff]
        %v2100 = vld [vmem:[%s2064 + $0x118] sm:$0xff]
        %v2101 = vld [vmem:[%s2064 + $0x120] sm:$0xff]
        %v2102 = vld [vmem:[%s2064 + $0x128] sm:$0xff]
        %v2103 = vld [vmem:[%s2064 + $0x130] sm:$0xff]
        %v2104 = vld [vmem:[%s2064 + $0x138] sm:$0xff]
        %v2105 = vld [vmem:[%s2064 + $0x140] sm:$0xff]
        %v2106 = vld [vmem:[%s2064 + $0x148] sm:$0xff]
        %v2107 = vld [vmem:[%s2064 + $0x150] sm:$0xff]
        %v2108 = vld [vmem:[%s2064 + $0x158] sm:$0xff]
        %v2109 = vld [vmem:[%s2064 + $0x160] sm:$0xff]
        %v2110 = vld [vmem:[%s2064 + $0x168] sm:$0xff]
        %v2111 = vld [vmem:[%s2064 + $0x170] sm:$0xff]
        %v2112 = vld [vmem:[%s2064 + $0x178] sm:$0xff]
        %s2113 = scalar_lea.vmem %s943, 2 [#allocation14]
        %v2114 = vld [vmem:[%s2113] sm:$0x1]
        %v2115 = vld [vmem:[%s1138] sm:$0xff]
        %v2116 = vld [vmem:[%s1138 + $0x8] sm:$0x3]
        %2117 = vst [vmem:[#allocation2] sm:$0xff] %v2115
        %2118 = vst [vmem:[#allocation2 + $0x8] sm:$0x3] %v2116
        %2119 = vst [vmem:[#allocation2 + $0xa] sm:$0xff] %v2062
        %2120 = vst [vmem:[#allocation2 + $0x12] sm:$0xff] %v2063
        %v2121 = vld [vmem:[#allocation2 + $0x10] sm:$0xff]
        %v2122 = vld [vmem:[#allocation2 + $0x18] sm:$0x3]
        %2123 = vst [vmem:[%s1155] sm:$0xff] %v2121
        %2124 = vst [vmem:[%s1155 + $0x8] sm:$0x3] %v2122
        %v2125 = vld [vmem:[#allocation2] sm:$0xff]
        %v2126 = vld [vmem:[#allocation2 + $0x8] sm:$0xff]
        %v2127 = vld [vmem:[#allocation2 + $0x5] sm:$0xff]
        %v2128 = vld [vmem:[#allocation2 + $0xd] sm:$0xff]
        %v2129 = vld [vmem:[#allocation2 + $0xa] sm:$0xff]
        %v2130 = vld [vmem:[#allocation2 + $0x12] sm:$0xff]
        %v2132 = vlaneseq
        %v2133 = vshrl.u32 %v2132, 7
        %v2134 = vsub.s32 0, %v2133
        %v2135 = vrot.slane %v2114, %v2134
        %2137 = vmatprep.subr.mxu0 0.0
        %2138 = vmatpush1.msra.mxu0 %v2065
        %2139 = vmatprep.subr.mxu0 0.0
        %2140 = vmatpush1.msra.mxu0 %v2066
        %2141 = vmatprep.subr.mxu0 0.0
        %2142 = vmatpush1.msra.mxu0 %v2067
        %2143 = vmatprep.subr.mxu0 0.0
        %2144 = vmatpush1.msra.mxu0 %v2068
        %2145 = vmatprep.subr.mxu0 0.0
        %2146 = vmatpush1.msra.mxu0 %v2069
        %2147 = vmatprep.subr.mxu0 0.0
        %2148 = vmatpush1.msra.mxu0 %v2070
        %2149 = vmatprep.subr.mxu0 0.0
        %2150 = vmatpush1.msra.mxu0 %v2071
        %2151 = vmatprep.subr.mxu0 0.0
        %2152 = vmatpush1.msra.mxu0 %v2072
        %2153 = vmatprep.subr.mxu0 0.0
        %2154 = vmatpush1.msra.mxu0 %v2073
        %2155 = vmatprep.subr.mxu0 0.0
        %2156 = vmatpush1.msra.mxu0 %v2074
        %2157 = vmatprep.subr.mxu0 0.0
        %2158 = vmatpush1.msra.mxu0 %v2075
        %2159 = vmatprep.subr.mxu0 0.0
        %2160 = vmatpush1.msra.mxu0 %v2076
        %2161 = vmatprep.subr.mxu0 0.0
        %2162 = vmatpush1.msra.mxu0 %v2077
        %2163 = vmatprep.subr.mxu0 0.0
        %2164 = vmatpush1.msra.mxu0 %v2078
        %2165 = vmatprep.subr.mxu0 0.0
        %2166 = vmatpush1.msra.mxu0 %v2079
        %2167 = vmatprep.subr.mxu0 0.0
        %2168 = vmatpush1.msra.mxu0 %v2080
        %2169 = vmatprep.subr.mxu0 0.0
        %2170 = vmatpush1.msra.mxu0 %v2081
        %2171 = vmatprep.subr.mxu0 0.0
        %2172 = vmatpush1.msra.mxu0 %v2082
        %2173 = vmatprep.subr.mxu0 0.0
        %2174 = vmatpush1.msra.mxu0 %v2083
        %2175 = vmatprep.subr.mxu0 0.0
        %2176 = vmatpush1.msra.mxu0 %v2084
        %2177 = vmatprep.subr.mxu0 0.0
        %2178 = vmatpush1.msra.mxu0 %v2085
        %2179 = vmatprep.subr.mxu0 0.0
        %2180 = vmatpush1.msra.mxu0 %v2086
        %2181 = vmatprep.subr.mxu0 0.0
        %2182 = vmatpush1.msra.mxu0 %v2087
        %2183 = vmatprep.subr.mxu0 0.0
        %2184 = vmatpush1.msra.mxu0 %v2088
        %2185 = vmatprep.subr.mxu0 0.0
        %2186 = vmatpush1.msra.mxu0 %v2089
        %2187 = vmatprep.subr.mxu0 0.0
        %2188 = vmatpush1.msra.mxu0 %v2090
        %2189 = vmatprep.subr.mxu0 0.0
        %2190 = vmatpush1.msra.mxu0 %v2091
        %2191 = vmatprep.subr.mxu0 0.0
        %2192 = vmatpush1.msra.mxu0 %v2092
        %2193 = vmatprep.subr.mxu0 0.0
        %2194 = vmatpush1.msra.mxu0 %v2093
        %2195 = vmatprep.subr.mxu0 0.0
        %2196 = vmatpush1.msra.mxu0 %v2094
        %2197 = vmatprep.subr.mxu0 0.0
        %2198 = vmatpush1.msra.mxu0 %v2095
        %2199 = vmatprep.subr.mxu0 0.0
        %2200 = vmatpush1.msra.mxu0 %v2096
        %2201 = vmatprep.mubr.f32.mxu0 %v2127
        %2202 = vmatmul.mubr.f32.gmra.mrb[0].mxu0 %v2125
        %v2203 = vpop.f32.mrb[0].mxu0
        %v2204 = vadd.f32 %v2135, %v2203
        %v2205 = vpop.f32.mrb[0].mxu0
        %2206 = vmatprep.mubr.f32.mxu0 %v2128
        %2207 = vmatmul.mubr.f32.gmra.mrb[0].mxu0 %v2126
        %v2208 = vpop.f32.mrb[0].mxu0
        %v2209 = vadd.f32 %v2135, %v2208
        %v2210 = vpop.f32.mrb[0].mxu0
        %2211 = vdwg.mxu0
        %2212 = vmatprep.subr.mxu0 0.0
        %2213 = vmatpush1.msra.mxu0 %v2097
        %2214 = vmatprep.subr.mxu0 0.0
        %2215 = vmatpush1.msra.mxu0 %v2098
        %2216 = vmatprep.subr.mxu0 0.0
        %2217 = vmatpush1.msra.mxu0 %v2099
        %2218 = vmatprep.subr.mxu0 0.0
        %2219 = vmatpush1.msra.mxu0 %v2100
        %2220 = vmatprep.subr.mxu0 0.0
        %2221 = vmatpush1.msra.mxu0 %v2101
        %2222 = vmatprep.subr.mxu0 0.0
        %2223 = vmatpush1.msra.mxu0 %v2102
        %2224 = vmatprep.subr.mxu0 0.0
        %2225 = vmatpush1.msra.mxu0 %v2103
        %2226 = vmatprep.subr.mxu0 0.0
        %2227 = vmatpush1.msra.mxu0 %v2104
        %2228 = vmatprep.subr.mxu0 0.0
        %2229 = vmatpush1.msra.mxu0 %v2105
        %2230 = vmatprep.subr.mxu0 0.0
        %2231 = vmatpush1.msra.mxu0 %v2106
        %2232 = vmatprep.subr.mxu0 0.0
        %2233 = vmatpush1.msra.mxu0 %v2107
        %2234 = vmatprep.subr.mxu0 0.0
        %2235 = vmatpush1.msra.mxu0 %v2108
        %2236 = vmatprep.subr.mxu0 0.0
        %2237 = vmatpush1.msra.mxu0 %v2109
        %2238 = vmatprep.subr.mxu0 0.0
        %2239 = vmatpush1.msra.mxu0 %v2110
        %2240 = vmatprep.subr.mxu0 0.0
        %2241 = vmatpush1.msra.mxu0 %v2111
        %2242 = vmatprep.subr.mxu0 0.0
        %2243 = vmatpush1.msra.mxu0 %v2112
        %2244 = vmatprep.subr.mxu0 0.0
        %2245 = vmatpush1.msra.mxu0 0.0
        %2246 = vmatprep.subr.mxu0 0.0
        %2247 = vmatpush1.msra.mxu0 0.0
        %2248 = vmatprep.subr.mxu0 0.0
        %2249 = vmatpush1.msra.mxu0 0.0
        %2250 = vmatprep.subr.mxu0 0.0
        %2251 = vmatpush1.msra.mxu0 0.0
        %2252 = vmatprep.subr.mxu0 0.0
        %2253 = vmatpush1.msra.mxu0 0.0
        %2254 = vmatprep.subr.mxu0 0.0
        %2255 = vmatpush1.msra.mxu0 0.0
        %2256 = vmatprep.subr.mxu0 0.0
        %2257 = vmatpush1.msra.mxu0 0.0
        %2258 = vmatprep.subr.mxu0 0.0
        %2259 = vmatpush1.msra.mxu0 0.0
        %2260 = vmatprep.subr.mxu0 0.0
        %2261 = vmatpush1.msra.mxu0 0.0
        %2262 = vmatprep.subr.mxu0 0.0
        %2263 = vmatpush1.msra.mxu0 0.0
        %2264 = vmatprep.subr.mxu0 0.0
        %2265 = vmatpush1.msra.mxu0 0.0
        %2266 = vmatprep.subr.mxu0 0.0
        %2267 = vmatpush1.msra.mxu0 0.0
        %2268 = vmatprep.subr.mxu0 0.0
        %2269 = vmatpush1.msra.mxu0 0.0
        %2270 = vmatprep.subr.mxu0 0.0
        %2271 = vmatpush1.msra.mxu0 0.0
        %2272 = vmatprep.subr.mxu0 0.0
        %2273 = vmatpush1.msra.mxu0 0.0
        %2274 = vmatprep.subr.mxu0 0.0
        %2275 = vmatpush1.msra.mxu0 0.0
        %2276 = vmatprep.mubr.f32.mxu0 0.0
        %2277 = vmatmul.mubr.f32.gmra.mrb[0].mxu0 %v2129
        %v2278 = vpop.f32.mrb[0].mxu0
        %v2279 = vadd.f32 %v2204, %v2278
        %v2280 = vpop.f32.mrb[0].mxu0
        %2281 = vmatprep.mubr.f32.mxu0 0.0
        %2282 = vmatmul.mubr.f32.gmra.mrb[0].mxu0 %v2130
        %v2283 = vpop.f32.mrb[0].mxu0
        %v2284 = vadd.f32 %v2209, %v2283
        %v2285 = vpop.f32.mrb[0].mxu0
        %2286 = vdwg.mxu0
        %vm2287 = vcmp.gt.f32.partialorder %v2279, 0.0
        %vm2288 = vcmp.gt.f32.partialorder %v2284, 0.0
        %v2289 = vmul.f32 %v2279, 0.1
        %v2290 = vmul.f32 %v2284, 0.1
        %v2291 = vsel %vm2287, %v2279, %v2289
        %v2292 = vsel %vm2288, %v2284, %v2290
        %s2293 = scalar_lea.vmem %s952, 768 [#allocation15]
        %v2294 = vld [vmem:[%s2293] sm:$0xff]
        %v2295 = vld [vmem:[%s2293 + $0x8] sm:$0xff]
        %v2296 = vld [vmem:[%s2293 + $0x10] sm:$0xff]
        %v2297 = vld [vmem:[%s2293 + $0x18] sm:$0xff]
        %v2298 = vld [vmem:[%s2293 + $0x20] sm:$0xff]
        %v2299 = vld [vmem:[%s2293 + $0x28] sm:$0xff]
        %v2300 = vld [vmem:[%s2293 + $0x30] sm:$0xff]
        %v2301 = vld [vmem:[%s2293 + $0x38] sm:$0xff]
        %v2302 = vld [vmem:[%s2293 + $0x40] sm:$0xff]
        %v2303 = vld [vmem:[%s2293 + $0x48] sm:$0xff]
        %v2304 = vld [vmem:[%s2293 + $0x50] sm:$0xff]
        %v2305 = vld [vmem:[%s2293 + $0x58] sm:$0xff]
        %v2306 = vld [vmem:[%s2293 + $0x60] sm:$0xff]
        %v2307 = vld [vmem:[%s2293 + $0x68] sm:$0xff]
        %v2308 = vld [vmem:[%s2293 + $0x70] sm:$0xff]
        %v2309 = vld [vmem:[%s2293 + $0x78] sm:$0xff]
        %v2310 = vld [vmem:[%s2293 + $0x80] sm:$0xff]
        %v2311 = vld [vmem:[%s2293 + $0x88] sm:$0xff]
        %v2312 = vld [vmem:[%s2293 + $0x90] sm:$0xff]
        %v2313 = vld [vmem:[%s2293 + $0x98] sm:$0xff]
        %v2314 = vld [vmem:[%s2293 + $0xa0] sm:$0xff]
        %v2315 = vld [vmem:[%s2293 + $0xa8] sm:$0xff]
        %v2316 = vld [vmem:[%s2293 + $0xb0] sm:$0xff]
        %v2317 = vld [vmem:[%s2293 + $0xb8] sm:$0xff]
        %v2318 = vld [vmem:[%s2293 + $0xc0] sm:$0xff]
        %v2319 = vld [vmem:[%s2293 + $0xc8] sm:$0xff]
        %v2320 = vld [vmem:[%s2293 + $0xd0] sm:$0xff]
        %v2321 = vld [vmem:[%s2293 + $0xd8] sm:$0xff]
        %v2322 = vld [vmem:[%s2293 + $0xe0] sm:$0xff]
        %v2323 = vld [vmem:[%s2293 + $0xe8] sm:$0xff]
        %v2324 = vld [vmem:[%s2293 + $0xf0] sm:$0xff]
        %v2325 = vld [vmem:[%s2293 + $0xf8] sm:$0xff]
        %v2326 = vld [vmem:[%s2293 + $0x100] sm:$0xff]
        %v2327 = vld [vmem:[%s2293 + $0x108] sm:$0xff]
        %v2328 = vld [vmem:[%s2293 + $0x110] sm:$0xff]
        %v2329 = vld [vmem:[%s2293 + $0x118] sm:$0xff]
        %v2330 = vld [vmem:[%s2293 + $0x120] sm:$0xff]
        %v2331 = vld [vmem:[%s2293 + $0x128] sm:$0xff]
        %v2332 = vld [vmem:[%s2293 + $0x130] sm:$0xff]
        %v2333 = vld [vmem:[%s2293 + $0x138] sm:$0xff]
        %v2334 = vld [vmem:[%s2293 + $0x140] sm:$0xff]
        %v2335 = vld [vmem:[%s2293 + $0x148] sm:$0xff]
        %v2336 = vld [vmem:[%s2293 + $0x150] sm:$0xff]
        %v2337 = vld [vmem:[%s2293 + $0x158] sm:$0xff]
        %v2338 = vld [vmem:[%s2293 + $0x160] sm:$0xff]
        %v2339 = vld [vmem:[%s2293 + $0x168] sm:$0xff]
        %v2340 = vld [vmem:[%s2293 + $0x170] sm:$0xff]
        %v2341 = vld [vmem:[%s2293 + $0x178] sm:$0xff]
        %s2342 = scalar_lea.vmem %s961, 2 [#allocation17]
        %v2343 = vld [vmem:[%s2342] sm:$0x1]
        %v2344 = vld [vmem:[%s925] sm:$0x3]
        %2345 = vst [vmem:[#allocation2 + $0x8] sm:$0x3] %v2344
        %2346 = vst [vmem:[#allocation2 + $0xa] sm:$0xff] %v2291
        %2347 = vst [vmem:[#allocation2 + $0x12] sm:$0xff] %v2292
        %v2348 = vld [vmem:[#allocation2 + $0x18] sm:$0x3]
        %2349 = vst [vmem:[%s1121] sm:$0x3] %v2348
        %v2350 = vld [vmem:[#allocation2 + $0x8] sm:$0xff]
        %v2351 = vld [vmem:[#allocation2 + $0x10] sm:$0xff]
        %v2352 = vld [vmem:[#allocation2 + $0x9] sm:$0xff]
        %v2353 = vld [vmem:[#allocation2 + $0x11] sm:$0xff]
        %v2354 = vld [vmem:[#allocation2 + $0xa] sm:$0xff]
        %v2355 = vld [vmem:[#allocation2 + $0x12] sm:$0xff]
        %v2357 = vlaneseq
        %v2358 = vshrl.u32 %v2357, 7
        %v2359 = vsub.s32 0, %v2358
        %v2360 = vrot.slane %v2343, %v2359
        %2362 = vmatprep.subr.mxu0 0.0
        %2363 = vmatpush1.msra.mxu0 %v2294
        %2364 = vmatprep.subr.mxu0 0.0
        %2365 = vmatpush1.msra.mxu0 %v2295
        %2366 = vmatprep.subr.mxu0 0.0
        %2367 = vmatpush1.msra.mxu0 %v2296
        %2368 = vmatprep.subr.mxu0 0.0
        %2369 = vmatpush1.msra.mxu0 %v2297
        %2370 = vmatprep.subr.mxu0 0.0
        %2371 = vmatpush1.msra.mxu0 %v2298
        %2372 = vmatprep.subr.mxu0 0.0
        %2373 = vmatpush1.msra.mxu0 %v2299
        %2374 = vmatprep.subr.mxu0 0.0
        %2375 = vmatpush1.msra.mxu0 %v2300
        %2376 = vmatprep.subr.mxu0 0.0
        %2377 = vmatpush1.msra.mxu0 %v2301
        %2378 = vmatprep.subr.mxu0 0.0
        %2379 = vmatpush1.msra.mxu0 %v2302
        %2380 = vmatprep.subr.mxu0 0.0
        %2381 = vmatpush1.msra.mxu0 %v2303
        %2382 = vmatprep.subr.mxu0 0.0
        %2383 = vmatpush1.msra.mxu0 %v2304
        %2384 = vmatprep.subr.mxu0 0.0
        %2385 = vmatpush1.msra.mxu0 %v2305
        %2386 = vmatprep.subr.mxu0 0.0
        %2387 = vmatpush1.msra.mxu0 %v2306
        %2388 = vmatprep.subr.mxu0 0.0
        %2389 = vmatpush1.msra.mxu0 %v2307
        %2390 = vmatprep.subr.mxu0 0.0
        %2391 = vmatpush1.msra.mxu0 %v2308
        %2392 = vmatprep.subr.mxu0 0.0
        %2393 = vmatpush1.msra.mxu0 %v2309
        %2394 = vmatprep.subr.mxu0 0.0
        %2395 = vmatpush1.msra.mxu0 %v2310
        %2396 = vmatprep.subr.mxu0 0.0
        %2397 = vmatpush1.msra.mxu0 %v2311
        %2398 = vmatprep.subr.mxu0 0.0
        %2399 = vmatpush1.msra.mxu0 %v2312
        %2400 = vmatprep.subr.mxu0 0.0
        %2401 = vmatpush1.msra.mxu0 %v2313
        %2402 = vmatprep.subr.mxu0 0.0
        %2403 = vmatpush1.msra.mxu0 %v2314
        %2404 = vmatprep.subr.mxu0 0.0
        %2405 = vmatpush1.msra.mxu0 %v2315
        %2406 = vmatprep.subr.mxu0 0.0
        %2407 = vmatpush1.msra.mxu0 %v2316
        %2408 = vmatprep.subr.mxu0 0.0
        %2409 = vmatpush1.msra.mxu0 %v2317
        %2410 = vmatprep.subr.mxu0 0.0
        %2411 = vmatpush1.msra.mxu0 %v2318
        %2412 = vmatprep.subr.mxu0 0.0
        %2413 = vmatpush1.msra.mxu0 %v2319
        %2414 = vmatprep.subr.mxu0 0.0
        %2415 = vmatpush1.msra.mxu0 %v2320
        %2416 = vmatprep.subr.mxu0 0.0
        %2417 = vmatpush1.msra.mxu0 %v2321
        %2418 = vmatprep.subr.mxu0 0.0
        %2419 = vmatpush1.msra.mxu0 %v2322
        %2420 = vmatprep.subr.mxu0 0.0
        %2421 = vmatpush1.msra.mxu0 %v2323
        %2422 = vmatprep.subr.mxu0 0.0
        %2423 = vmatpush1.msra.mxu0 %v2324
        %2424 = vmatprep.subr.mxu0 0.0
        %2425 = vmatpush1.msra.mxu0 %v2325
        %2426 = vmatprep.mubr.f32.mxu0 %v2352
        %2427 = vmatmul.mubr.f32.gmra.mrb[0].mxu0 %v2350
        %v2428 = vpop.f32.mrb[0].mxu0
        %v2429 = vadd.f32 %v2360, %v2428
        %v2430 = vpop.f32.mrb[0].mxu0
        %2431 = vmatprep.mubr.f32.mxu0 %v2353
        %2432 = vmatmul.mubr.f32.gmra.mrb[0].mxu0 %v2351
        %v2433 = vpop.f32.mrb[0].mxu0
        %v2434 = vadd.f32 %v2360, %v2433
        %v2435 = vpop.f32.mrb[0].mxu0
        %2436 = vdwg.mxu0
        %2437 = vmatprep.subr.mxu0 0.0
        %2438 = vmatpush1.msra.mxu0 %v2326
        %2439 = vmatprep.subr.mxu0 0.0
        %2440 = vmatpush1.msra.mxu0 %v2327
        %2441 = vmatprep.subr.mxu0 0.0
        %2442 = vmatpush1.msra.mxu0 %v2328
        %2443 = vmatprep.subr.mxu0 0.0
        %2444 = vmatpush1.msra.mxu0 %v2329
        %2445 = vmatprep.subr.mxu0 0.0
        %2446 = vmatpush1.msra.mxu0 %v2330
        %2447 = vmatprep.subr.mxu0 0.0
        %2448 = vmatpush1.msra.mxu0 %v2331
        %2449 = vmatprep.subr.mxu0 0.0
        %2450 = vmatpush1.msra.mxu0 %v2332
        %2451 = vmatprep.subr.mxu0 0.0
        %2452 = vmatpush1.msra.mxu0 %v2333
        %2453 = vmatprep.subr.mxu0 0.0
        %2454 = vmatpush1.msra.mxu0 %v2334
        %2455 = vmatprep.subr.mxu0 0.0
        %2456 = vmatpush1.msra.mxu0 %v2335
        %2457 = vmatprep.subr.mxu0 0.0
        %2458 = vmatpush1.msra.mxu0 %v2336
        %2459 = vmatprep.subr.mxu0 0.0
        %2460 = vmatpush1.msra.mxu0 %v2337
        %2461 = vmatprep.subr.mxu0 0.0
        %2462 = vmatpush1.msra.mxu0 %v2338
        %2463 = vmatprep.subr.mxu0 0.0
        %2464 = vmatpush1.msra.mxu0 %v2339
        %2465 = vmatprep.subr.mxu0 0.0
        %2466 = vmatpush1.msra.mxu0 %v2340
        %2467 = vmatprep.subr.mxu0 0.0
        %2468 = vmatpush1.msra.mxu0 %v2341
        %2469 = vmatprep.subr.mxu0 0.0
        %2470 = vmatpush1.msra.mxu0 0.0
        %2471 = vmatprep.subr.mxu0 0.0
        %2472 = vmatpush1.msra.mxu0 0.0
        %2473 = vmatprep.subr.mxu0 0.0
        %2474 = vmatpush1.msra.mxu0 0.0
        %2475 = vmatprep.subr.mxu0 0.0
        %2476 = vmatpush1.msra.mxu0 0.0
        %2477 = vmatprep.subr.mxu0 0.0
        %2478 = vmatpush1.msra.mxu0 0.0
        %2479 = vmatprep.subr.mxu0 0.0
        %2480 = vmatpush1.msra.mxu0 0.0
        %2481 = vmatprep.subr.mxu0 0.0
        %2482 = vmatpush1.msra.mxu0 0.0
        %2483 = vmatprep.subr.mxu0 0.0
        %2484 = vmatpush1.msra.mxu0 0.0
        %2485 = vmatprep.subr.mxu0 0.0
        %2486 = vmatpush1.msra.mxu0 0.0
        %2487 = vmatprep.subr.mxu0 0.0
        %2488 = vmatpush1.msra.mxu0 0.0
        %2489 = vmatprep.subr.mxu0 0.0
        %2490 = vmatpush1.msra.mxu0 0.0
        %2491 = vmatprep.subr.mxu0 0.0
        %2492 = vmatpush1.msra.mxu0 0.0
        %2493 = vmatprep.subr.mxu0 0.0
        %2494 = vmatpush1.msra.mxu0 0.0
        %2495 = vmatprep.subr.mxu0 0.0
        %2496 = vmatpush1.msra.mxu0 0.0
        %2497 = vmatprep.subr.mxu0 0.0
        %2498 = vmatpush1.msra.mxu0 0.0
        %2499 = vmatprep.subr.mxu0 0.0
        %2500 = vmatpush1.msra.mxu0 0.0
        %2501 = vmatprep.mubr.f32.mxu0 0.0
        %2502 = vmatmul.mubr.f32.gmra.mrb[0].mxu0 %v2354
        %v2503 = vpop.f32.mrb[0].mxu0
        %v2504 = vadd.f32 %v2429, %v2503
        %v2505 = vpop.f32.mrb[0].mxu0
        %2506 = vmatprep.mubr.f32.mxu0 0.0
        %2507 = vmatmul.mubr.f32.gmra.mrb[0].mxu0 %v2355
        %v2508 = vpop.f32.mrb[0].mxu0
        %v2509 = vadd.f32 %v2434, %v2508
        %v2510 = vpop.f32.mrb[0].mxu0
        %2511 = vdwg.mxu0
        %v2512 = vadd.f32 %v2504, %v2056
        %v2513 = vadd.f32 %v2509, %v2057
        %v2514 = vld [vmem:[%s970] sm:$0xff]
        %v2515 = vld [vmem:[%s970 + $0x8] sm:$0xff]
        %v2516 = vld [vmem:[%s970 + $0x10] sm:$0xff]
        %v2517 = vld [vmem:[%s970 + $0x18] sm:$0xff]
        %v2518 = vld [vmem:[%s970 + $0x20] sm:$0xff]
        %v2519 = vld [vmem:[%s970 + $0x28] sm:$0xff]
        %v2520 = vld [vmem:[%s970 + $0x30] sm:$0xff]
        %v2521 = vld [vmem:[%s970 + $0x38] sm:$0xff]
        %v2522 = vld [vmem:[%s970 + $0x40] sm:$0xff]
        %v2523 = vld [vmem:[%s970 + $0x48] sm:$0xff]
        %v2524 = vld [vmem:[%s970 + $0x50] sm:$0xff]
        %v2525 = vld [vmem:[%s970 + $0x58] sm:$0xff]
        %v2526 = vld [vmem:[%s970 + $0x60] sm:$0xff]
        %v2527 = vld [vmem:[%s970 + $0x68] sm:$0xff]
        %v2528 = vld [vmem:[%s970 + $0x70] sm:$0xff]
        %v2529 = vld [vmem:[%s970 + $0x78] sm:$0xff]
        %2530 = vmatprep.subr.mxu0 0.0
        %2531 = vmatpush1.msra.mxu0 %v2514
        %2532 = vmatprep.subr.mxu0 0.0
        %2533 = vmatpush1.msra.mxu0 %v2515
        %2534 = vmatprep.subr.mxu0 0.0
        %2535 = vmatpush1.msra.mxu0 %v2516
        %2536 = vmatprep.subr.mxu0 0.0
        %2537 = vmatpush1.msra.mxu0 %v2517
        %2538 = vmatprep.subr.mxu0 0.0
        %2539 = vmatpush1.msra.mxu0 %v2518
        %2540 = vmatprep.subr.mxu0 0.0
        %2541 = vmatpush1.msra.mxu0 %v2519
        %2542 = vmatprep.subr.mxu0 0.0
        %2543 = vmatpush1.msra.mxu0 %v2520
        %2544 = vmatprep.subr.mxu0 0.0
        %2545 = vmatpush1.msra.mxu0 %v2521
        %2546 = vmatprep.subr.mxu0 0.0
        %2547 = vmatpush1.msra.mxu0 %v2522
        %2548 = vmatprep.subr.mxu0 0.0
        %2549 = vmatpush1.msra.mxu0 %v2523
        %2550 = vmatprep.subr.mxu0 0.0
        %2551 = vmatpush1.msra.mxu0 %v2524
        %2552 = vmatprep.subr.mxu0 0.0
        %2553 = vmatpush1.msra.mxu0 %v2525
        %2554 = vmatprep.subr.mxu0 0.0
        %2555 = vmatpush1.msra.mxu0 %v2526
        %2556 = vmatprep.subr.mxu0 0.0
        %2557 = vmatpush1.msra.mxu0 %v2527
        %2558 = vmatprep.subr.mxu0 0.0
        %2559 = vmatpush1.msra.mxu0 %v2528
        %2560 = vmatprep.subr.mxu0 0.0
        %2561 = vmatpush1.msra.mxu0 %v2529
        %2562 = vmatprep.subr.mxu0 0.0
        %2563 = vmatpush1.msra.mxu0 0.0
        %2564 = vmatprep.subr.mxu0 0.0
        %2565 = vmatpush1.msra.mxu0 0.0
        %2566 = vmatprep.subr.mxu0 0.0
        %2567 = vmatpush1.msra.mxu0 0.0
        %2568 = vmatprep.subr.mxu0 0.0
        %2569 = vmatpush1.msra.mxu0 0.0
        %2570 = vmatprep.subr.mxu0 0.0
        %2571 = vmatpush1.msra.mxu0 0.0
        %2572 = vmatprep.subr.mxu0 0.0
        %2573 = vmatpush1.msra.mxu0 0.0
        %2574 = vmatprep.subr.mxu0 0.0
        %2575 = vmatpush1.msra.mxu0 0.0
        %2576 = vmatprep.subr.mxu0 0.0
        %2577 = vmatpush1.msra.mxu0 0.0
        %2578 = vmatprep.subr.mxu0 0.0
        %2579 = vmatpush1.msra.mxu0 0.0
        %2580 = vmatprep.subr.mxu0 0.0
        %2581 = vmatpush1.msra.mxu0 0.0
        %2582 = vmatprep.subr.mxu0 0.0
        %2583 = vmatpush1.msra.mxu0 0.0
        %2584 = vmatprep.subr.mxu0 0.0
        %2585 = vmatpush1.msra.mxu0 0.0
        %2586 = vmatprep.subr.mxu0 0.0
        %2587 = vmatpush1.msra.mxu0 0.0
        %2588 = vmatprep.subr.mxu0 0.0
        %2589 = vmatpush1.msra.mxu0 0.0
        %2590 = vmatprep.subr.mxu0 0.0
        %2591 = vmatpush1.msra.mxu0 0.0
        %2592 = vmatprep.subr.mxu0 0.0
        %2593 = vmatpush1.msra.mxu0 0.0
        %2594 = vmatprep.mubr.f32.mxu0 0.0
        %2595 = vmatmul.mubr.f32.gmra.mrb[0].mxu0 %v2512
        %v2596 = vpop.f32.mrb[0].mxu0
        %v2597 = vadd.f32 0.0, %v2596
        %v2598 = vpop.f32.mrb[0].mxu0
        %2599 = vmatprep.mubr.f32.mxu0 0.0
        %2600 = vmatmul.mubr.f32.gmra.mrb[0].mxu0 %v2513
        %v2601 = vpop.f32.mrb[0].mxu0
        %v2602 = vadd.f32 0.0, %v2601
        %v2603 = vpop.f32.mrb[0].mxu0
        %2604 = vdwg.mxu0
        %p2605 = scmp.eq.s32.totalorder %s62, 0
        // Predicated region
        $region109: #{tpu_custom_call.1} parent=67 // pred_check
          %p2606 = pneg %p2605
        $region110: #{tpu_custom_call.1} parent=67 // pred_check_branch
          %2608 = sbr.rel (%p2606) target = $region112
        $region111: #{tpu_custom_call.1} parent=67 // pred_region
          %2609 = vst [vmem:[%s1072] sm:$0xff] %v2597
          %2610 = vst [vmem:[%s1072 + $0x8] sm:$0xff] %v2602
        $region112: #{tpu_custom_call.1} parent=67 // pred_fallthru
          _
        %p2611 = scmp.gt.s32.totalorder %s62, 0
        // Predicated region
        $region113: #{tpu_custom_call.1} parent=67 // pred_check
          %p2612 = pneg %p2611
        $region114: #{tpu_custom_call.1} parent=67 // pred_check_branch
          %2614 = sbr.rel (%p2612) target = $region116
        $region115: #{tpu_custom_call.1} parent=67 // pred_region
          %v2615 = vld [vmem:[%s1072] sm:$0xff]
          %v2616 = vld [vmem:[%s1072 + $0x8] sm:$0xff]
          %v2617 = vadd.f32 %v2615, %v2597
          %v2618 = vadd.f32 %v2616, %v2602
          %2619 = vst [vmem:[%s1072] sm:$0xff] %v2617
          %2620 = vst [vmem:[%s1072 + $0x8] sm:$0xff] %v2618
        $region116: #{tpu_custom_call.1} parent=67 // pred_fallthru
          _
        %s2621 = sand.u32 %s401, 1
        %s2622 = scalar_lea.sflag [#allocation5], %s2621
        %s2623 = sand.u32 %s401, 1
        %s2624 = smul.addr %s2623, 16
        %s2625 = scalar_lea.vmem [#allocation20], %s2624
        %s2626 = sand.u32 %s57, 1
        %s2627 = scalar_lea.sflag [#allocation22], %s2626
        %s2628 = sand.u32 %s429, 1
        %s2629 = smul.addr %s2628, 2
        %s2630 = scalar_lea.vmem [#allocation21], %s2629
        %s2631 = sand.u32 %s57, 1
        %s2632 = scalar_lea.sflag [#allocation22], %s2631
        %s2633 = sand.u32 %s457, 1
        %s2634 = smul.addr %s2633, 2
        %s2635 = scalar_lea.vmem [#allocation23], %s2634
        %p2636 = scmp.lt.s32.totalorder %s61, 1
        %s2637 = scalar_select %p2636, %s61, 1
        %p2638 = scmp.lt.s32.totalorder %s62, 2
        %s2639 = scalar_select %p2638, %s62, 2
        %s2640 = smul.addr %s2637, 3
        %s2641 = sadd.s32 %s2639, %s2640
        %s2642 = smul.addr %s2641, 8
        %s2643 = scalar_lea.vmem %s15, %s2642
        %s2644 = sand.u32 %s57, 1
        %s2645 = scalar_lea.sflag [#allocation25], %s2644
        %s2646 = sand.u32 %s513, 1
        %s2647 = smul.addr %s2646, 2
        %s2648 = scalar_lea.vmem [#allocation24], %s2647
        %p2649 = scmp.lt.s32.totalorder %s61, 1
        %s2650 = scalar_select %p2649, %s61, 1
        %p2651 = scmp.lt.s32.totalorder %s62, 2
        %s2652 = scalar_select %p2651, %s62, 2
        %s2653 = smul.addr %s2652, 2
        %s2654 = smul.addr %s2650, 6
        %s2655 = sadd.s32 %s2653, %s2654
        %s2656 = smul.addr %s2655, 8
        %s2657 = scalar_lea.vmem %s17, %s2656
        %s2658 = sand.u32 %s57, 1
        %s2659 = scalar_lea.sflag [#allocation25], %s2658
        %s2660 = sand.u32 %s569, 1
        %s2661 = smul.addr %s2660, 2
        %s2662 = scalar_lea.vmem [#allocation26], %s2661
        // Predicated region
        $region117: #{tpu_custom_call.1} parent=67 // pred_check
          %p2663 = pneg %p411
        $region118: #{tpu_custom_call.1} parent=67 // pred_check_branch
          %2665 = sbr.rel (%p2663) target = $region120
        $region119: #{tpu_custom_call.1} parent=67 // pred_region
          %s2667 = ssub.s32 256, 256
          %2668 = vsyncadd %s2622, %s2667
          %s2669 = smul.addr %s61, 2
          %s2670 = smul.addr %s2669, 128
          %s2671 = scalar_lea.hbm %s12, %s2670
          %s2672 = sshll.u32 %s2625, 4
          %s2673 = int_to_ptr.vmem [resolvable:$true] %s2672
          %2678 = dma.vmem_to_hbm [thread:$0]  %s2673, 256, %s2671, %s2622, 128, 128, 8
        $region120: #{tpu_custom_call.1} parent=67 // pred_fallthru
          _
        // Predicated region
        $region121: #{tpu_custom_call.1} parent=67 // pred_check
          %p2679 = pneg %p439
        $region122: #{tpu_custom_call.1} parent=67 // pred_check_branch
          %2681 = sbr.rel (%p2679) target = $region124
        $region123: #{tpu_custom_call.1} parent=67 // pred_region
          %s2683 = ssub.s32 32, 32
          %2684 = vsyncadd %s2627, %s2683
          %s2685 = smul.addr %s61, 3
          %s2686 = sadd.s32 %s62, %s2685
          %s2687 = smul.addr %s2686, 32
          %s2688 = scalar_lea.hbm %s13, %s2687
          %s2690 = sshll.u32 %s2630, 4
          %s2691 = int_to_ptr.vmem [resolvable:$true] %s2690
          %2693 = dma.vmem_to_hbm [thread:$0]  %s2691, 32, %s2688, %s2627
        $region124: #{tpu_custom_call.1} parent=67 // pred_fallthru
          _
        // Predicated region
        $region125: #{tpu_custom_call.1} parent=67 // pred_check
          %p2694 = pneg %p467
        $region126: #{tpu_custom_call.1} parent=67 // pred_check_branch
          %2696 = sbr.rel (%p2694) target = $region128
        $region127: #{tpu_custom_call.1} parent=67 // pred_region
          %s2698 = ssub.s32 32, 32
          %2699 = vsyncadd %s2632, %s2698
          %s2700 = smul.addr %s61, 3
          %s2701 = sadd.s32 %s62, %s2700
          %s2702 = smul.addr %s2701, 32
          %s2703 = scalar_lea.hbm %s14, %s2702
          %s2705 = sshll.u32 %s2635, 4
          %s2706 = int_to_ptr.vmem [resolvable:$true] %s2705
          %2708 = dma.vmem_to_hbm [thread:$0]  %s2706, 32, %s2703, %s2632
        $region128: #{tpu_custom_call.1} parent=67 // pred_fallthru
          _
        // Predicated region
        $region129: #{tpu_custom_call.1} parent=67 // pred_check
          %p2709 = pneg %p495
        $region130: #{tpu_custom_call.1} parent=67 // pred_check_branch
          %2711 = sbr.rel (%p2709) target = $region132
        $region131: #{tpu_custom_call.1} parent=67 // pred_region
          _
        $region132: #{tpu_custom_call.1} parent=67 // pred_fallthru
          _
        // Predicated region
        $region133: #{tpu_custom_call.1} parent=67 // pred_check
          %p2712 = pneg %p523
        $region134: #{tpu_custom_call.1} parent=67 // pred_check_branch
          %2714 = sbr.rel (%p2712) target = $region136
        $region135: #{tpu_custom_call.1} parent=67 // pred_region
          %s2716 = ssub.s32 32, 32
          %2717 = vsyncadd %s2645, %s2716
          %s2718 = smul.addr %s61, 3
          %s2719 = sadd.s32 %s62, %s2718
          %s2720 = smul.addr %s2719, 32
          %s2721 = scalar_lea.hbm %s16, %s2720
          %s2723 = sshll.u32 %s2648, 4
          %s2724 = int_to_ptr.vmem [resolvable:$true] %s2723
          %2726 = dma.vmem_to_hbm [thread:$0]  %s2724, 32, %s2721, %s2645
        $region136: #{tpu_custom_call.1} parent=67 // pred_fallthru
          _
        // Predicated region
        $region137: #{tpu_custom_call.1} parent=67 // pred_check
          %p2727 = pneg %p551
        $region138: #{tpu_custom_call.1} parent=67 // pred_check_branch
          %2729 = sbr.rel (%p2727) target = $region140
        $region139: #{tpu_custom_call.1} parent=67 // pred_region
          _
        $region140: #{tpu_custom_call.1} parent=67 // pred_fallthru
          _
        // Predicated region
        $region141: #{tpu_custom_call.1} parent=67 // pred_check
          %p2730 = pneg %p579
        $region142: #{tpu_custom_call.1} parent=67 // pred_check_branch
          %2732 = sbr.rel (%p2730) target = $region144
        $region143: #{tpu_custom_call.1} parent=67 // pred_region
          %s2734 = ssub.s32 32, 32
          %2735 = vsyncadd %s2659, %s2734
          %s2736 = smul.addr %s61, 3
          %s2737 = sadd.s32 %s62, %s2736
          %s2738 = smul.addr %s2737, 32
          %s2739 = scalar_lea.hbm %s18, %s2738
          %s2741 = sshll.u32 %s2662, 4
          %s2742 = int_to_ptr.vmem [resolvable:$true] %s2741
          %2744 = dma.vmem_to_hbm [thread:$0]  %s2742, 32, %s2739, %s2659
        $region144: #{tpu_custom_call.1} parent=67 // pred_fallthru
          _
      $region68: #{tpu_custom_call.1} parent=5 // pred_fallthru
        _
      %p2745 = scmp.le.s32.totalorder 2, %s52
      // Predicated region
      $region145: #{tpu_custom_call.1} parent=5 // pred_check
        %p2746 = pneg %p2745
      $region146: #{tpu_custom_call.1} parent=5 // pred_check_branch
        %2748 = sbr.rel (%p2746) target = $region148
      $region147: #{tpu_custom_call.1} parent=5 // pred_region
        %s2749 = ssub.s32 %s52, 2
        // Predicated region
        $region149: #{tpu_custom_call.1} parent=147 // pred_check
          %p2750 = pneg %p417
        $region150: #{tpu_custom_call.1} parent=147 // pred_check_branch
          %2752 = sbr.rel (%p2750) target = $region152
        $region151: #{tpu_custom_call.1} parent=147 // pred_region
          %s2753 = sand.u32 %s402, 1
          %s2754 = scalar_lea.sflag [#allocation5], %s2753
          %s2755 = sand.u32 %s402, 1
          %s2756 = smul.addr %s2755, 16
          %s2757 = scalar_lea.vmem [#allocation20], %s2756
          %2758 = dma.done %s2754, 256
        $region152: #{tpu_custom_call.1} parent=147 // pred_fallthru
          _
        // Predicated region
        $region153: #{tpu_custom_call.1} parent=147 // pred_check
          %p2759 = pneg %p445
        $region154: #{tpu_custom_call.1} parent=147 // pred_check_branch
          %2761 = sbr.rel (%p2759) target = $region156
        $region155: #{tpu_custom_call.1} parent=147 // pred_region
          %s2762 = sand.u32 %s58, 1
          %s2763 = scalar_lea.sflag [#allocation22], %s2762
          %s2764 = sand.u32 %s430, 1
          %s2765 = smul.addr %s2764, 2
          %s2766 = scalar_lea.vmem [#allocation21], %s2765
          %2767 = dma.done %s2763, 32
        $region156: #{tpu_custom_call.1} parent=147 // pred_fallthru
          _
        // Predicated region
        $region157: #{tpu_custom_call.1} parent=147 // pred_check
          %p2768 = pneg %p473
        $region158: #{tpu_custom_call.1} parent=147 // pred_check_branch
          %2770 = sbr.rel (%p2768) target = $region160
        $region159: #{tpu_custom_call.1} parent=147 // pred_region
          %s2771 = sand.u32 %s58, 1
          %s2772 = scalar_lea.sflag [#allocation22], %s2771
          %s2773 = sand.u32 %s458, 1
          %s2774 = smul.addr %s2773, 2
          %s2775 = scalar_lea.vmem [#allocation23], %s2774
          %2776 = dma.done %s2772, 32
        $region160: #{tpu_custom_call.1} parent=147 // pred_fallthru
          _
        // Predicated region
        $region161: #{tpu_custom_call.1} parent=147 // pred_check
          %p2777 = pneg %p501
        $region162: #{tpu_custom_call.1} parent=147 // pred_check_branch
          %2779 = sbr.rel (%p2777) target = $region164
        $region163: #{tpu_custom_call.1} parent=147 // pred_region
          %p2780 = scmp.lt.s32.totalorder %s63, 1
          %s2781 = scalar_select %p2780, %s63, 1
          %p2782 = scmp.lt.s32.totalorder %s64, 2
          %s2783 = scalar_select %p2782, %s64, 2
          %s2784 = smul.addr %s2781, 3
          %s2785 = sadd.s32 %s2783, %s2784
          %s2786 = smul.addr %s2785, 8
          %s2787 = scalar_lea.vmem %s15, %s2786
        $region164: #{tpu_custom_call.1} parent=147 // pred_fallthru
          _
        // Predicated region
        $region165: #{tpu_custom_call.1} parent=147 // pred_check
          %p2788 = pneg %p529
        $region166: #{tpu_custom_call.1} parent=147 // pred_check_branch
          %2790 = sbr.rel (%p2788) target = $region168
        $region167: #{tpu_custom_call.1} parent=147 // pred_region
          %s2791 = sand.u32 %s58, 1
          %s2792 = scalar_lea.sflag [#allocation25], %s2791
          %s2793 = sand.u32 %s514, 1
          %s2794 = smul.addr %s2793, 2
          %s2795 = scalar_lea.vmem [#allocation24], %s2794
          %2796 = dma.done %s2792, 32
        $region168: #{tpu_custom_call.1} parent=147 // pred_fallthru
          _
        // Predicated region
        $region169: #{tpu_custom_call.1} parent=147 // pred_check
          %p2797 = pneg %p557
        $region170: #{tpu_custom_call.1} parent=147 // pred_check_branch
          %2799 = sbr.rel (%p2797) target = $region172
        $region171: #{tpu_custom_call.1} parent=147 // pred_region
          %p2800 = scmp.lt.s32.totalorder %s63, 1
          %s2801 = scalar_select %p2800, %s63, 1
          %p2802 = scmp.lt.s32.totalorder %s64, 2
          %s2803 = scalar_select %p2802, %s64, 2
          %s2804 = smul.addr %s2803, 2
          %s2805 = smul.addr %s2801, 6
          %s2806 = sadd.s32 %s2804, %s2805
          %s2807 = smul.addr %s2806, 8
          %s2808 = scalar_lea.vmem %s17, %s2807
        $region172: #{tpu_custom_call.1} parent=147 // pred_fallthru
          _
        // Predicated region
        $region173: #{tpu_custom_call.1} parent=147 // pred_check
          %p2809 = pneg %p585
        $region174: #{tpu_custom_call.1} parent=147 // pred_check_branch
          %2811 = sbr.rel (%p2809) target = $region176
        $region175: #{tpu_custom_call.1} parent=147 // pred_region
          %s2812 = sand.u32 %s58, 1
          %s2813 = scalar_lea.sflag [#allocation25], %s2812
          %s2814 = sand.u32 %s570, 1
          %s2815 = smul.addr %s2814, 2
          %s2816 = scalar_lea.vmem [#allocation26], %s2815
          %2817 = dma.done %s2813, 32
        $region176: #{tpu_custom_call.1} parent=147 // pred_fallthru
          _
      $region148: #{tpu_custom_call.1} parent=5 // pred_fallthru
        _
    $region6: #{tpu_custom_call.1} parent=1 // loop_footer
      %s56 = sadd.s32 1, %s52
    $region7: #{tpu_custom_call.1} parent=1 // loop_footer_branch
      %51 = sbr.rel target = $region3
    $region8: #{tpu_custom_call.1} parent=1 // loop_exit
      _
    %2818 = vsyncpa [#allocation4], 1
    %s2819 = scalar_lea.sflag [#allocation4], 1
    %2820 = vsyncpa %s2819, 1
    %2821 = vsyncpa [#allocation7], 1
    %s2822 = scalar_lea.sflag [#allocation7], 1
    %2823 = vsyncpa %s2822, 1
    %2824 = vsyncpa [#allocation10], 1
    %s2825 = scalar_lea.sflag [#allocation10], 1
    %2826 = vsyncpa %s2825, 1
    %2827 = vsyncpa [#allocation13], 1
    %s2828 = scalar_lea.sflag [#allocation13], 1
    %2829 = vsyncpa %s2828, 1
    %2830 = vsyncpa [#allocation16], 1
    %s2831 = scalar_lea.sflag [#allocation16], 1
    %2832 = vsyncpa %s2831, 1
    %2833 = vsyncpa [#allocation19], 1
    %s2834 = scalar_lea.sflag [#allocation19], 1
    %2835 = vsyncpa %s2834, 1
    %2836 = vsyncpa [#allocation5], 1
    %s2837 = scalar_lea.sflag [#allocation5], 1
    %2838 = vsyncpa %s2837, 1
    %2839 = vsyncpa [#allocation22], 1
    %s2840 = scalar_lea.sflag [#allocation22], 1
    %2841 = vsyncpa %s2840, 1
    %2842 = vsyncpa [#allocation25], 1
    %s2843 = scalar_lea.sflag [#allocation25], 1
    %2844 = vsyncpa %s2843, 1

</llo_original>
